<compile_context>
chip_gen: v6e
topology: v6e:2x2x1
jax: 0.10.0
libtpu: 0.0.40
codegen_flags: <defaults>
</compile_context>

<pallas_src>
import functools

import jax
import jax.numpy as jnp
from jax import lax
from jax.experimental import pallas as pl
from jax.experimental.pallas import tpu as pltpu

PAD = 4                 # max "same" padding needed (9 // 2)
KSIZES = (3, 5, 7, 9)   # depthwise branch kernel sizes


def _msconv_kernel(x_ref, w1_ref, wf_ref, w3_ref, w5_ref, w7_ref, w9_ref,
                   sc_ref, sh_ref, o_ref, xp_ref, *, chan):
    # x_ref : (Nb, H, W*C)        bf16 lane-packed input block
    # w1_ref: (W*C, W*C)          bf16 block-diag 1x1 weight  kron(I_W, w1)
    # wf_ref: (5*W*C, W*C)        bf16 block-diag fuse weight (branch-stacked)
    # wK_ref: (K*K, W*C)          f32 depthwise taps, lane-tiled, W-edge
    #                             ("same" padding) mask baked in per column
    # sc/sh : (6, W*C)            f32 folded BN scale/shift, lane-tiled
    # o_ref : (Nb, H, W*C)        f32 output block (lane-dense store)
    # xp_ref: (Nb, H+2*PAD, W*C)  f32 scratch: input padded along H only
    nb, hh, wc = x_ref.shape
    f32 = jnp.float32
    bf16 = jnp.bfloat16

    # H "same" padding lives in VMEM; W padding is handled by lane rolls whose
    # wrapped lanes hit a zero (masked) weight.  Only the halo strips are
    # zeroed, but every step: with a "parallel" batch grid axis the steps may
    # be split across TensorCores, so a program_id()==0 guard could leave one
    # core's scratch halo uninitialized.
    halo = jnp.zeros((nb, PAD, wc), f32)
    xp_ref[:, :PAD, :] = halo
    xp_ref[:, PAD + hh:PAD + hh + PAD, :] = halo
    xp_ref[:, PAD:PAD + hh, :] = x_ref[...].astype(f32)

    sc = sc_ref[...]                              # (6, W*C) f32
    sh = sh_ref[...]

    def bn_relu(acc, idx):                        # acc: f32 (..., W*C)
        return jnp.maximum(acc * sc[idx] + sh[idx], 0.0)

    # ---- branch 1: 1x1 conv as a lane-block-diagonal matmul (K = W*C) ----
    x2 = x_ref[...].reshape(nb * hh, wc)                               # bf16
    y1 = bn_relu(jnp.dot(x2, w1_ref[...], preferred_element_type=f32), 0)

    # ---- depthwise branches: one shared 9x9 tap sweep, packed layout ----
    dw_refs = {3: w3_ref, 5: w5_ref, 7: w7_ref, 9: w9_ref}
    acc = {ks: jnp.zeros((nb, hh, wc), f32) for ks in KSIZES}
    # TODO(synk): if H/W/C are scaled up, convert this unrolled sweep to a
    # lax.fori_loop(..., unroll=True) over a stacked (81, W*C) weight table.
    for dh in range(2 * PAD + 1):
        xh = xp_ref[:, dh:dh + hh, :]                                  # f32
        for dw in range(2 * PAD + 1):
            r = max(abs(dh - PAD), abs(dw - PAD))
            # win[..., w*C+c] = xh[..., (w + (dw-PAD))*C + c]  (circular; the
            # wrapped lanes are killed by the zero-masked weight columns)
            shift = ((PAD - dw) * chan) % wc
            win = pltpu.roll(xh, shift, axis=2) if shift else xh
            for ks in KSIZES:
                if r <= ks // 2:
                    off = PAD - ks // 2
                    row = (dh - off) * ks + (dw - off)
                    wk = dw_refs[ks][row, :]                # (W*C,) f32
                    acc[ks] = acc[ks] + win * wk            # f32 MAC

    # ---- BN+ReLU per branch, lane-concat, ONE merged fuse matmul ----
    ys = [y1.astype(bf16)]
    for ks in KSIZES:
        idx = (ks - 1) // 2                       # 3->1, 5->2, 7->3, 9->4
        ys.append(bn_relu(acc[ks], idx).reshape(nb * hh, wc).astype(bf16))
    cat = jnp.concatenate(ys, axis=-1)                      # (Nb*H, 5*W*C)
    z = jnp.dot(cat, wf_ref[...], preferred_element_type=f32)
    o_ref[...] = bn_relu(z, 5).reshape(nb, hh, wc).astype(o_ref.dtype)


def _pick_batch_block(n):
    """Largest batch block (<=8) that still leaves >= 2 grid steps, so both
    v7x TensorCores get work while per-step overhead is amortized."""
    if n <= 1:
        return 1
    best = 1
    for nb in range(1, min(n, 8) + 1):
        if n % nb == 0 and n // nb >= 2:
            best = nb
    return best


def multi_scale_conv_nhwc(x_nhwc, params):
    """Core Pallas implementation: NHWC in, (N, H, W, C) f32 out."""
    N, H, W, C = x_nhwc.shape
    WC = W * C            # best perf when W*C % 128 == 0 (lane-dense); still
    f32 = jnp.float32     # correct otherwise.
    bf16 = jnp.bfloat16
    nb = _pick_batch_block(N)

    # ---- pack weights for the lane-dense (W*C) layout ----
    eye_w = jnp.eye(W, dtype=f32)
    w1blk = jnp.kron(eye_w, params['w1'].astype(f32)).astype(bf16)   # (WC,WC)
    wfblk = jnp.concatenate(
        [jnp.kron(eye_w, params['wf'][k].astype(f32)) for k in range(5)],
        axis=0).astype(bf16)                                         # (5WC,WC)

    w_of_lane = jnp.arange(WC, dtype=jnp.int32) // C                 # lane->w

    def pack_dw(wk, ks):
        # Tile per-channel taps across W and bake the "same"-padding W-edge
        # mask per kernel column, so wrapped rolled lanes meet zero weight.
        lane_w = jnp.tile(wk.astype(f32), (1, 1, W))                 # (ks,ks,WC)
        cols = []
        for d in range(ks):
            wpos = w_of_lane + (d - ks // 2)
            cols.append(((wpos >= 0) & (wpos < W)).astype(f32))
        mask = jnp.stack(cols, axis=0)                               # (ks, WC)
        return (lane_w * mask[None, :, :]).reshape(ks * ks, WC)

    dw_packed = [pack_dw(params[f'w{ks}'], ks) for ks in KSIZES]

    sc_lane = jnp.tile(params['bn_scale'].astype(f32), (1, W))       # (6, WC)
    sh_lane = jnp.tile(params['bn_shift'].astype(f32), (1, W))

    x = x_nhwc.reshape(N, H, WC).astype(bf16)
    args = (x, w1blk, wfblk, *dw_packed, sc_lane, sh_lane)

    def const_spec(a):
        nd = a.ndim
        # TODO(synk): pipeline_mode=pl.Buffered(1) would drop the pointless
        # double-buffer for these grid-invariant weights; only matters once C
        # grows enough to pressure v7x's 64 MiB VMEM.
        return pl.BlockSpec(a.shape, lambda n, _nd=nd: (0,) * _nd)

    in_specs = [pl.BlockSpec((nb, H, WC), lambda n: (n, 0, 0))]
    in_specs += [const_spec(a) for a in args[1:]]

    # Right-size the scoped-VMEM request from the actual footprint (double
    # buffers for every pipelined operand + scratch), capped under v7x's
    # 64 MiB physical VMEM.
    weight_bytes = ((w1blk.size + wfblk.size) * 2
                    + sum(a.size for a in dw_packed) * 4
                    + (sc_lane.size + sh_lane.size) * 4)
    block_bytes = nb * H * WC * (2 + 4)                  # bf16 in + f32 out
    scratch_bytes = nb * (H + 2 * PAD) * WC * 4
    footprint = 2 * (weight_bytes + block_bytes) + scratch_bytes
    vmem_limit = int(min(60 * 1024 * 1024,
                         max(16 * 1024 * 1024, 4 * footprint)))

    out = pl.pallas_call(
        functools.partial(_msconv_kernel, chan=C),
        out_shape=jax.ShapeDtypeStruct((N, H, WC), jnp.float32),
        grid=(N // nb,),
        in_specs=in_specs,
        out_specs=pl.BlockSpec((nb, H, WC), lambda n: (n, 0, 0)),
        scratch_shapes=[pltpu.VMEM((nb, H + 2 * PAD, WC), jnp.float32)],
        compiler_params=pltpu.CompilerParams(
            dimension_semantics=("parallel",),
            vmem_limit_bytes=vmem_limit),
    )(*args)
    return out.reshape(N, H, W, C)


@jax.jit
def multi_scale_conv(x_nchw, params):
    """NCHW wrapper matching the PyTorch module's convention."""
    # The boundary transposes exist only because of the NCHW contract;
    # channels-last models should call multi_scale_conv_nhwc directly.
    x = jnp.transpose(x_nchw, (0, 2, 3, 1))
    out = multi_scale_conv_nhwc(x, params)
    return jnp.transpose(out, (0, 3, 1, 2)).astype(jnp.float32)


def init_params(key, dim, eps=1e-5):
    """Deterministic synthetic parameters (PyTorch OIHW + kernel layouts)."""
    keys = jax.random.split(key, 32)
    it = iter(range(32))
    nxt = lambda: keys[next(it)]

    p = {}
    # conv weights (bias=False in the module)
    p['w1_oihw'] = 0.3 * jax.random.normal(nxt(), (dim, dim, 1, 1), jnp.float32)
    for ks in KSIZES:
        p[f'w{ks}_oihw'] = (0.5 / ks) * jax.random.normal(
            nxt(), (dim, 1, ks, ks), jnp.float32)          # depthwise OIHW
    p['wf_oihw'] = 0.2 * jax.random.normal(nxt(), (dim, 5 * dim, 1, 1),
                                           jnp.float32)

    # BatchNorm2d (inference mode) params for the 6 ConvRelu blocks
    gam, bet, mean, var = [], [], [], []
    for _ in range(6):
        gam.append(1.0 + 0.1 * jax.random.normal(nxt(), (dim,), jnp.float32))
        bet.append(0.1 * jax.random.normal(nxt(), (dim,), jnp.float32))
        mean.append(0.1 * jax.random.normal(nxt(), (dim,), jnp.float32))
        var.append(1.0 + 0.2 * jax.random.uniform(nxt(), (dim,), jnp.float32))
    sc = jnp.stack([g / jnp.sqrt(v + eps) for g, v in zip(gam, var)])
    sh = jnp.stack([b - m * s for b, m, s in zip(bet, mean, sc)])
    p['bn_scale'], p['bn_shift'] = sc, sh

    # kernel-layout weights
    p['w1'] = p['w1_oihw'][:, :, 0, 0].T                              # (in,out)
    for ks in KSIZES:
        p[f'w{ks}'] = jnp.transpose(p[f'w{ks}_oihw'][:, 0], (1, 2, 0))  # (k,k,C)
    wf2 = p['wf_oihw'][:, :, 0, 0]                                    # (out,5C)
    p['wf'] = jnp.transpose(wf2.reshape(dim, 5, dim), (1, 2, 0))      # (5,in,out)
    return p


def ref_forward(x, p):
    """Pure-JAX NCHW reference matching the PyTorch module (eval-mode BN)."""
    C = x.shape[1]

    def conv(inp, w, groups, pad):
        return lax.conv_general_dilated(
            inp, w, (1, 1), ((pad, pad), (pad, pad)),
            feature_group_count=groups,
            dimension_numbers=('NCHW', 'OIHW', 'NCHW'),
            precision=lax.Precision.HIGHEST)

    def bnrelu(y, i):
        s = p['bn_scale'][i][None, :, None, None]
        b = p['bn_shift'][i][None, :, None, None]
        return jnp.maximum(y * s + b, 0.0)

    x1 = bnrelu(conv(x, p['w1_oihw'], 1, 0), 0)
    x3 = bnrelu(conv(x, p['w3_oihw'], C, 1), 1)
    x5 = bnrelu(conv(x, p['w5_oihw'], C, 2), 2)
    x7 = bnrelu(conv(x, p['w7_oihw'], C, 3), 3)
    x9 = bnrelu(conv(x, p['w9_oihw'], C, 4), 4)
    cat = jnp.concatenate([x1, x3, x5, x7, x9], axis=1)
    return bnrelu(conv(cat, p['wf_oihw'], 1, 0), 5)


if __name__ == "__main__":
    dim, N, H, W = 8, 2, 16, 16          # W*C = 128 -> fully lane-dense
    key = jax.random.PRNGKey(0)
    kx, kp = jax.random.split(key)
    x_nchw = jax.random.normal(kx, (N, dim, H, W), jnp.float32)
    params = init_params(kp, dim)

    out = multi_scale_conv(x_nchw, params)
    out = jax.block_until_ready(out)

    ref = ref_forward(x_nchw, params)
    assert out.shape == (N, dim, H, W), out.shape
    err = float(jnp.max(jnp.abs(out - ref)))
    # bf16 input / bf16 MXU operands (f32 accumulation, f32 depthwise taps)
    # vs. an f32 HIGHEST-precision reference.
    if not jnp.allclose(out, ref, atol=2e-2, rtol=2e-2):
        raise AssertionError(f"kernel/reference mismatch, max abs err {err}")
    print("KERNEL_OK")
</pallas_src>

<mosaic_0001>
module attributes {stable_mosaic.version = 11 : i64} {
  func.func @_msconv_kernel(%arg0: i32, %arg1: memref<1x16x128xbf16, #tpu.memory_space<vmem>>, %arg2: memref<128x128xbf16, #tpu.memory_space<vmem>>, %arg3: memref<640x128xbf16, #tpu.memory_space<vmem>>, %arg4: memref<9x128xf32, #tpu.memory_space<vmem>>, %arg5: memref<25x128xf32, #tpu.memory_space<vmem>>, %arg6: memref<49x128xf32, #tpu.memory_space<vmem>>, %arg7: memref<81x128xf32, #tpu.memory_space<vmem>>, %arg8: memref<6x128xf32, #tpu.memory_space<vmem>>, %arg9: memref<6x128xf32, #tpu.memory_space<vmem>>, %arg10: memref<1x16x128xf32, #tpu.memory_space<vmem>>, %arg11: memref<1x24x128xf32, #tpu.memory_space<vmem>>) attributes {dimension_semantics = [#tpu.dimension_semantics<parallel>], iteration_bounds = array<i64: 2>, scalar_prefetch = 0 : i64, scratch_operands = 1 : i64, tpu.core_type = #tpu.core_type<tc>, window_params = [{transform_indices = @transform_0, window_bounds = array<i64: 1, 16, 128>}, {pipeline_mode = #tpu.pipeline_mode<synchronous>, transform_indices = @transform_1, window_bounds = array<i64: 128, 128>}, {pipeline_mode = #tpu.pipeline_mode<synchronous>, transform_indices = @transform_2, window_bounds = array<i64: 640, 128>}, {pipeline_mode = #tpu.pipeline_mode<synchronous>, transform_indices = @transform_3, window_bounds = array<i64: 9, 128>}, {pipeline_mode = #tpu.pipeline_mode<synchronous>, transform_indices = @transform_4, window_bounds = array<i64: 25, 128>}, {pipeline_mode = #tpu.pipeline_mode<synchronous>, transform_indices = @transform_5, window_bounds = array<i64: 49, 128>}, {pipeline_mode = #tpu.pipeline_mode<synchronous>, transform_indices = @transform_6, window_bounds = array<i64: 81, 128>}, {pipeline_mode = #tpu.pipeline_mode<synchronous>, transform_indices = @transform_7, window_bounds = array<i64: 6, 128>}, {pipeline_mode = #tpu.pipeline_mode<synchronous>, transform_indices = @transform_8, window_bounds = array<i64: 6, 128>}, {transform_indices = @transform_9, window_bounds = array<i64: 1, 16, 128>}]} {
    %cst = arith.constant 0.000000e+00 : f32
    %0 = vector.broadcast %cst : f32 to vector<1x4x128xf32>
    %c0 = arith.constant 0 : index
    %c0_0 = arith.constant 0 : index
    %c0_1 = arith.constant 0 : index
    %1 = vector.load %arg11[%c0, %c0_0, %c0_1] : memref<1x24x128xf32, #tpu.memory_space<vmem>>, vector<1x4x128xf32>
    tpu.vector_store %arg11[%c0, %c0_0, %c0_1], %0 {strides = array<i32>} : memref<1x24x128xf32, #tpu.memory_space<vmem>>, vector<1x4x128xf32>,
    %c0_2 = arith.constant 0 : index
    %c20 = arith.constant 20 : index
    %c0_3 = arith.constant 0 : index
    %2 = vector.load %arg11[%c0_2, %c20, %c0_3] : memref<1x24x128xf32, #tpu.memory_space<vmem>>, vector<1x4x128xf32>
    tpu.vector_store %arg11[%c0_2, %c20, %c0_3], %0 {strides = array<i32>} : memref<1x24x128xf32, #tpu.memory_space<vmem>>, vector<1x4x128xf32>,
    %c0_4 = arith.constant 0 : index
    %c0_5 = arith.constant 0 : index
    %c0_6 = arith.constant 0 : index
    %3 = vector.load %arg1[%c0_4, %c0_5, %c0_6] : memref<1x16x128xbf16, #tpu.memory_space<vmem>>, vector<1x16x128xbf16>
    %4 = arith.extf %3 : vector<1x16x128xbf16> to vector<1x16x128xf32>
    %c0_7 = arith.constant 0 : index
    %c4 = arith.constant 4 : index
    %c0_8 = arith.constant 0 : index
    %5 = vector.load %arg11[%c0_7, %c4, %c0_8] : memref<1x24x128xf32, #tpu.memory_space<vmem>>, vector<1x16x128xf32>
    tpu.vector_store %arg11[%c0_7, %c4, %c0_8], %4 {strides = array<i32>} : memref<1x24x128xf32, #tpu.memory_space<vmem>>, vector<1x16x128xf32>,
    %c0_9 = arith.constant 0 : index
    %c0_10 = arith.constant 0 : index
    %6 = vector.load %arg8[%c0_9, %c0_10] : memref<6x128xf32, #tpu.memory_space<vmem>>, vector<6x128xf32>
    %c0_11 = arith.constant 0 : index
    %c0_12 = arith.constant 0 : index
    %7 = vector.load %arg9[%c0_11, %c0_12] : memref<6x128xf32, #tpu.memory_space<vmem>>, vector<6x128xf32>
    %c0_13 = arith.constant 0 : index
    %c0_14 = arith.constant 0 : index
    %c0_15 = arith.constant 0 : index
    %8 = vector.load %arg1[%c0_13, %c0_14, %c0_15] : memref<1x16x128xbf16, #tpu.memory_space<vmem>>, vector<1x16x128xbf16>
    %9 = vector.shape_cast %8 : vector<1x16x128xbf16> to vector<16x128xbf16>
    %c0_16 = arith.constant 0 : index
    %c0_17 = arith.constant 0 : index
    %10 = vector.load %arg2[%c0_16, %c0_17] : memref<128x128xbf16, #tpu.memory_space<vmem>>, vector<128x128xbf16>
    %cst_18 = arith.constant dense<0.000000e+00> : vector<16x128xf32>
    %11 = tpu.matmul %9, %10, %cst_18 {dimension_numbers = #tpu.dot_dimension_numbers<[1], [0], [0], [1], [0, 0, 1, 1], [], []>} : vector<16x128xbf16>, vector<128x128xbf16>, vector<16x128xf32> -> vector<16x128xf32>
    %12 = vector.extract_strided_slice %6 {offsets = [0, 0], sizes = [1, 128], strides = [1, 1]} : vector<6x128xf32> to vector<1x128xf32>
    %13 = vector.shape_cast %12 : vector<1x128xf32> to vector<128xf32>
    %14 = vector.shape_cast %13 : vector<128xf32> to vector<1x128xf32>
    %15 = vector.broadcast %14 : vector<1x128xf32> to vector<16x128xf32>
    %16 = arith.mulf %11, %15 : vector<16x128xf32>
    %17 = vector.extract_strided_slice %7 {offsets = [0, 0], sizes = [1, 128], strides = [1, 1]} : vector<6x128xf32> to vector<1x128xf32>
    %18 = vector.shape_cast %17 : vector<1x128xf32> to vector<128xf32>
    %19 = vector.shape_cast %18 : vector<128xf32> to vector<1x128xf32>
    %20 = vector.broadcast %19 : vector<1x128xf32> to vector<16x128xf32>
    %21 = arith.addf %16, %20 : vector<16x128xf32>
    %cst_19 = arith.constant 0.000000e+00 : f32
    %22 = vector.broadcast %cst_19 : f32 to vector<16x128xf32>
    %23 = arith.maximumf %21, %22 : vector<16x128xf32>
    %cst_20 = arith.constant 0.000000e+00 : f32
    %24 = vector.broadcast %cst_20 : f32 to vector<1x16x128xf32>
    %cst_21 = arith.constant 0.000000e+00 : f32
    %25 = vector.broadcast %cst_21 : f32 to vector<1x16x128xf32>
    %cst_22 = arith.constant 0.000000e+00 : f32
    %26 = vector.broadcast %cst_22 : f32 to vector<1x16x128xf32>
    %cst_23 = arith.constant 0.000000e+00 : f32
    %27 = vector.broadcast %cst_23 : f32 to vector<1x16x128xf32>
    %c0_24 = arith.constant 0 : index
    %c0_25 = arith.constant 0 : index
    %c0_26 = arith.constant 0 : index
    %28 = vector.load %arg11[%c0_24, %c0_25, %c0_26] : memref<1x24x128xf32, #tpu.memory_space<vmem>>, vector<1x16x128xf32>
    %c32_i32 = arith.constant 32 : i32
    %29 = tpu.dynamic_rotate %28 by %c32_i32 dim 2 : vector<1x16x128xf32>, i32 -> vector<1x16x128xf32>
    %c0_27 = arith.constant 0 : index
    %c0_28 = arith.constant 0 : index
    %30 = vector.load %arg7[%c0_27, %c0_28] : memref<81x128xf32, #tpu.memory_space<vmem>>, vector<1x128xf32>
    %31 = vector.shape_cast %30 : vector<1x128xf32> to vector<128xf32>
    %32 = vector.shape_cast %31 : vector<128xf32> to vector<1x1x128xf32>
    %33 = vector.broadcast %32 : vector<1x1x128xf32> to vector<1x16x128xf32>
    %34 = arith.mulf %29, %33 : vector<1x16x128xf32>
    %35 = arith.addf %27, %34 : vector<1x16x128xf32>
    %c24_i32 = arith.constant 24 : i32
    %36 = tpu.dynamic_rotate %28 by %c24_i32 dim 2 : vector<1x16x128xf32>, i32 -> vector<1x16x128xf32>
    %c1 = arith.constant 1 : index
    %c0_29 = arith.constant 0 : index
    %37 = vector.load %arg7[%c1, %c0_29] : memref<81x128xf32, #tpu.memory_space<vmem>>, vector<1x128xf32>
    %38 = vector.shape_cast %37 : vector<1x128xf32> to vector<128xf32>
    %39 = vector.shape_cast %38 : vector<128xf32> to vector<1x1x128xf32>
    %40 = vector.broadcast %39 : vector<1x1x128xf32> to vector<1x16x128xf32>
    %41 = arith.mulf %36, %40 : vector<1x16x128xf32>
    %42 = arith.addf %35, %41 : vector<1x16x128xf32>
    %c16_i32 = arith.constant 16 : i32
    %43 = tpu.dynamic_rotate %28 by %c16_i32 dim 2 : vector<1x16x128xf32>, i32 -> vector<1x16x128xf32>
    %c2 = arith.constant 2 : index
    %c0_30 = arith.constant 0 : index
    %44 = vector.load %arg7[%c2, %c0_30] : memref<81x128xf32, #tpu.memory_space<vmem>>, vector<1x128xf32>
    %45 = vector.shape_cast %44 : vector<1x128xf32> to vector<128xf32>
    %46 = vector.shape_cast %45 : vector<128xf32> to vector<1x1x128xf32>
    %47 = vector.broadcast %46 : vector<1x1x128xf32> to vector<1x16x128xf32>
    %48 = arith.mulf %43, %47 : vector<1x16x128xf32>
    %49 = arith.addf %42, %48 : vector<1x16x128xf32>
    %c8_i32 = arith.constant 8 : i32
    %50 = tpu.dynamic_rotate %28 by %c8_i32 dim 2 : vector<1x16x128xf32>, i32 -> vector<1x16x128xf32>
    %c3 = arith.constant 3 : index
    %c0_31 = arith.constant 0 : index
    %51 = vector.load %arg7[%c3, %c0_31] : memref<81x128xf32, #tpu.memory_space<vmem>>, vector<1x128xf32>
    %52 = vector.shape_cast %51 : vector<1x128xf32> to vector<128xf32>
    %53 = vector.shape_cast %52 : vector<128xf32> to vector<1x1x128xf32>
    %54 = vector.broadcast %53 : vector<1x1x128xf32> to vector<1x16x128xf32>
    %55 = arith.mulf %50, %54 : vector<1x16x128xf32>
    %56 = arith.addf %49, %55 : vector<1x16x128xf32>
    %c4_32 = arith.constant 4 : index
    %c0_33 = arith.constant 0 : index
    %57 = vector.load %arg7[%c4_32, %c0_33] : memref<81x128xf32, #tpu.memory_space<vmem>>, vector<1x128xf32>
    %58 = vector.shape_cast %57 : vector<1x128xf32> to vector<128xf32>
    %59 = vector.shape_cast %58 : vector<128xf32> to vector<1x1x128xf32>
    %60 = vector.broadcast %59 : vector<1x1x128xf32> to vector<1x16x128xf32>
    %61 = arith.mulf %28, %60 : vector<1x16x128xf32>
    %62 = arith.addf %56, %61 : vector<1x16x128xf32>
    %c120_i32 = arith.constant 120 : i32
    %63 = tpu.dynamic_rotate %28 by %c120_i32 dim 2 : vector<1x16x128xf32>, i32 -> vector<1x16x128xf32>
    %c5 = arith.constant 5 : index
    %c0_34 = arith.constant 0 : index
    %64 = vector.load %arg7[%c5, %c0_34] : memref<81x128xf32, #tpu.memory_space<vmem>>, vector<1x128xf32>
    %65 = vector.shape_cast %64 : vector<1x128xf32> to vector<128xf32>
    %66 = vector.shape_cast %65 : vector<128xf32> to vector<1x1x128xf32>
    %67 = vector.broadcast %66 : vector<1x1x128xf32> to vector<1x16x128xf32>
    %68 = arith.mulf %63, %67 : vector<1x16x128xf32>
    %69 = arith.addf %62, %68 : vector<1x16x128xf32>
    %c112_i32 = arith.constant 112 : i32
    %70 = tpu.dynamic_rotate %28 by %c112_i32 dim 2 : vector<1x16x128xf32>, i32 -> vector<1x16x128xf32>
    %c6 = arith.constant 6 : index
    %c0_35 = arith.constant 0 : index
    %71 = vector.load %arg7[%c6, %c0_35] : memref<81x128xf32, #tpu.memory_space<vmem>>, vector<1x128xf32>
    %72 = vector.shape_cast %71 : vector<1x128xf32> to vector<128xf32>
    %73 = vector.shape_cast %72 : vector<128xf32> to vector<1x1x128xf32>
    %74 = vector.broadcast %73 : vector<1x1x128xf32> to vector<1x16x128xf32>
    %75 = arith.mulf %70, %74 : vector<1x16x128xf32>
    %76 = arith.addf %69, %75 : vector<1x16x128xf32>
    %c104_i32 = arith.constant 104 : i32
    %77 = tpu.dynamic_rotate %28 by %c104_i32 dim 2 : vector<1x16x128xf32>, i32 -> vector<1x16x128xf32>
    %c7 = arith.constant 7 : index
    %c0_36 = arith.constant 0 : index
    %78 = vector.load %arg7[%c7, %c0_36] : memref<81x128xf32, #tpu.memory_space<vmem>>, vector<1x128xf32>
    %79 = vector.shape_cast %78 : vector<1x128xf32> to vector<128xf32>
    %80 = vector.shape_cast %79 : vector<128xf32> to vector<1x1x128xf32>
    %81 = vector.broadcast %80 : vector<1x1x128xf32> to vector<1x16x128xf32>
    %82 = arith.mulf %77, %81 : vector<1x16x128xf32>
    %83 = arith.addf %76, %82 : vector<1x16x128xf32>
    %c96_i32 = arith.constant 96 : i32
    %84 = tpu.dynamic_rotate %28 by %c96_i32 dim 2 : vector<1x16x128xf32>, i32 -> vector<1x16x128xf32>
    %c8 = arith.constant 8 : index
    %c0_37 = arith.constant 0 : index
    %85 = vector.load %arg7[%c8, %c0_37] : memref<81x128xf32, #tpu.memory_space<vmem>>, vector<1x128xf32>
    %86 = vector.shape_cast %85 : vector<1x128xf32> to vector<128xf32>
    %87 = vector.shape_cast %86 : vector<128xf32> to vector<1x1x128xf32>
    %88 = vector.broadcast %87 : vector<1x1x128xf32> to vector<1x16x128xf32>
    %89 = arith.mulf %84, %88 : vector<1x16x128xf32>
    %90 = arith.addf %83, %89 : vector<1x16x128xf32>
    %c0_38 = arith.constant 0 : index
    %c1_39 = arith.constant 1 : index
    %c0_40 = arith.constant 0 : index
    %91 = vector.load %arg11[%c0_38, %c1_39, %c0_40] : memref<1x24x128xf32, #tpu.memory_space<vmem>>, vector<1x16x128xf32>
    %c32_i32_41 = arith.constant 32 : i32
    %92 = tpu.dynamic_rotate %91 by %c32_i32_41 dim 2 : vector<1x16x128xf32>, i32 -> vector<1x16x128xf32>
    %c9 = arith.constant 9 : index
    %c0_42 = arith.constant 0 : index
    %93 = vector.load %arg7[%c9, %c0_42] : memref<81x128xf32, #tpu.memory_space<vmem>>, vector<1x128xf32>
    %94 = vector.shape_cast %93 : vector<1x128xf32> to vector<128xf32>
    %95 = vector.shape_cast %94 : vector<128xf32> to vector<1x1x128xf32>
    %96 = vector.broadcast %95 : vector<1x1x128xf32> to vector<1x16x128xf32>
    %97 = arith.mulf %92, %96 : vector<1x16x128xf32>
    %98 = arith.addf %90, %97 : vector<1x16x128xf32>
    %c24_i32_43 = arith.constant 24 : i32
    %99 = tpu.dynamic_rotate %91 by %c24_i32_43 dim 2 : vector<1x16x128xf32>, i32 -> vector<1x16x128xf32>
    %c0_44 = arith.constant 0 : index
    %c0_45 = arith.constant 0 : index
    %100 = vector.load %arg6[%c0_44, %c0_45] : memref<49x128xf32, #tpu.memory_space<vmem>>, vector<1x128xf32>
    %101 = vector.shape_cast %100 : vector<1x128xf32> to vector<128xf32>
    %102 = vector.shape_cast %101 : vector<128xf32> to vector<1x1x128xf32>
    %103 = vector.broadcast %102 : vector<1x1x128xf32> to vector<1x16x128xf32>
    %104 = arith.mulf %99, %103 : vector<1x16x128xf32>
    %105 = arith.addf %26, %104 : vector<1x16x128xf32>
    %c10 = arith.constant 10 : index
    %c0_46 = arith.constant 0 : index
    %106 = vector.load %arg7[%c10, %c0_46] : memref<81x128xf32, #tpu.memory_space<vmem>>, vector<1x128xf32>
    %107 = vector.shape_cast %106 : vector<1x128xf32> to vector<128xf32>
    %108 = vector.shape_cast %107 : vector<128xf32> to vector<1x1x128xf32>
    %109 = vector.broadcast %108 : vector<1x1x128xf32> to vector<1x16x128xf32>
    %110 = arith.mulf %99, %109 : vector<1x16x128xf32>
    %111 = arith.addf %98, %110 : vector<1x16x128xf32>
    %c16_i32_47 = arith.constant 16 : i32
    %112 = tpu.dynamic_rotate %91 by %c16_i32_47 dim 2 : vector<1x16x128xf32>, i32 -> vector<1x16x128xf32>
    %c1_48 = arith.constant 1 : index
    %c0_49 = arith.constant 0 : index
    %113 = vector.load %arg6[%c1_48, %c0_49] : memref<49x128xf32, #tpu.memory_space<vmem>>, vector<1x128xf32>
    %114 = vector.shape_cast %113 : vector<1x128xf32> to vector<128xf32>
    %115 = vector.shape_cast %114 : vector<128xf32> to vector<1x1x128xf32>
    %116 = vector.broadcast %115 : vector<1x1x128xf32> to vector<1x16x128xf32>
    %117 = arith.mulf %112, %116 : vector<1x16x128xf32>
    %118 = arith.addf %105, %117 : vector<1x16x128xf32>
    %c11 = arith.constant 11 : index
    %c0_50 = arith.constant 0 : index
    %119 = vector.load %arg7[%c11, %c0_50] : memref<81x128xf32, #tpu.memory_space<vmem>>, vector<1x128xf32>
    %120 = vector.shape_cast %119 : vector<1x128xf32> to vector<128xf32>
    %121 = vector.shape_cast %120 : vector<128xf32> to vector<1x1x128xf32>
    %122 = vector.broadcast %121 : vector<1x1x128xf32> to vector<1x16x128xf32>
    %123 = arith.mulf %112, %122 : vector<1x16x128xf32>
    %124 = arith.addf %111, %123 : vector<1x16x128xf32>
    %c8_i32_51 = arith.constant 8 : i32
    %125 = tpu.dynamic_rotate %91 by %c8_i32_51 dim 2 : vector<1x16x128xf32>, i32 -> vector<1x16x128xf32>
    %c2_52 = arith.constant 2 : index
    %c0_53 = arith.constant 0 : index
    %126 = vector.load %arg6[%c2_52, %c0_53] : memref<49x128xf32, #tpu.memory_space<vmem>>, vector<1x128xf32>
    %127 = vector.shape_cast %126 : vector<1x128xf32> to vector<128xf32>
    %128 = vector.shape_cast %127 : vector<128xf32> to vector<1x1x128xf32>
    %129 = vector.broadcast %128 : vector<1x1x128xf32> to vector<1x16x128xf32>
    %130 = arith.mulf %125, %129 : vector<1x16x128xf32>
    %131 = arith.addf %118, %130 : vector<1x16x128xf32>
    %c12 = arith.constant 12 : index
    %c0_54 = arith.constant 0 : index
    %132 = vector.load %arg7[%c12, %c0_54] : memref<81x128xf32, #tpu.memory_space<vmem>>, vector<1x128xf32>
    %133 = vector.shape_cast %132 : vector<1x128xf32> to vector<128xf32>
    %134 = vector.shape_cast %133 : vector<128xf32> to vector<1x1x128xf32>
    %135 = vector.broadcast %134 : vector<1x1x128xf32> to vector<1x16x128xf32>
    %136 = arith.mulf %125, %135 : vector<1x16x128xf32>
    %137 = arith.addf %124, %136 : vector<1x16x128xf32>
    %c3_55 = arith.constant 3 : index
    %c0_56 = arith.constant 0 : index
    %138 = vector.load %arg6[%c3_55, %c0_56] : memref<49x128xf32, #tpu.memory_space<vmem>>, vector<1x128xf32>
    %139 = vector.shape_cast %138 : vector<1x128xf32> to vector<128xf32>
    %140 = vector.shape_cast %139 : vector<128xf32> to vector<1x1x128xf32>
    %141 = vector.broadcast %140 : vector<1x1x128xf32> to vector<1x16x128xf32>
    %142 = arith.mulf %91, %141 : vector<1x16x128xf32>
    %143 = arith.addf %131, %142 : vector<1x16x128xf32>
    %c13 = arith.constant 13 : index
    %c0_57 = arith.constant 0 : index
    %144 = vector.load %arg7[%c13, %c0_57] : memref<81x128xf32, #tpu.memory_space<vmem>>, vector<1x128xf32>
    %145 = vector.shape_cast %144 : vector<1x128xf32> to vector<128xf32>
    %146 = vector.shape_cast %145 : vector<128xf32> to vector<1x1x128xf32>
    %147 = vector.broadcast %146 : vector<1x1x128xf32> to vector<1x16x128xf32>
    %148 = arith.mulf %91, %147 : vector<1x16x128xf32>
    %149 = arith.addf %137, %148 : vector<1x16x128xf32>
    %c120_i32_58 = arith.constant 120 : i32
    %150 = tpu.dynamic_rotate %91 by %c120_i32_58 dim 2 : vector<1x16x128xf32>, i32 -> vector<1x16x128xf32>
    %c4_59 = arith.constant 4 : index
    %c0_60 = arith.constant 0 : index
    %151 = vector.load %arg6[%c4_59, %c0_60] : memref<49x128xf32, #tpu.memory_space<vmem>>, vector<1x128xf32>
    %152 = vector.shape_cast %151 : vector<1x128xf32> to vector<128xf32>
    %153 = vector.shape_cast %152 : vector<128xf32> to vector<1x1x128xf32>
    %154 = vector.broadcast %153 : vector<1x1x128xf32> to vector<1x16x128xf32>
    %155 = arith.mulf %150, %154 : vector<1x16x128xf32>
    %156 = arith.addf %143, %155 : vector<1x16x128xf32>
    %c14 = arith.constant 14 : index
    %c0_61 = arith.constant 0 : index
    %157 = vector.load %arg7[%c14, %c0_61] : memref<81x128xf32, #tpu.memory_space<vmem>>, vector<1x128xf32>
    %158 = vector.shape_cast %157 : vector<1x128xf32> to vector<128xf32>
    %159 = vector.shape_cast %158 : vector<128xf32> to vector<1x1x128xf32>
    %160 = vector.broadcast %159 : vector<1x1x128xf32> to vector<1x16x128xf32>
    %161 = arith.mulf %150, %160 : vector<1x16x128xf32>
    %162 = arith.addf %149, %161 : vector<1x16x128xf32>
    %c112_i32_62 = arith.constant 112 : i32
    %163 = tpu.dynamic_rotate %91 by %c112_i32_62 dim 2 : vector<1x16x128xf32>, i32 -> vector<1x16x128xf32>
    %c5_63 = arith.constant 5 : index
    %c0_64 = arith.constant 0 : index
    %164 = vector.load %arg6[%c5_63, %c0_64] : memref<49x128xf32, #tpu.memory_space<vmem>>, vector<1x128xf32>
    %165 = vector.shape_cast %164 : vector<1x128xf32> to vector<128xf32>
    %166 = vector.shape_cast %165 : vector<128xf32> to vector<1x1x128xf32>
    %167 = vector.broadcast %166 : vector<1x1x128xf32> to vector<1x16x128xf32>
    %168 = arith.mulf %163, %167 : vector<1x16x128xf32>
    %169 = arith.addf %156, %168 : vector<1x16x128xf32>
    %c15 = arith.constant 15 : index
    %c0_65 = arith.constant 0 : index
    %170 = vector.load %arg7[%c15, %c0_65] : memref<81x128xf32, #tpu.memory_space<vmem>>, vector<1x128xf32>
    %171 = vector.shape_cast %170 : vector<1x128xf32> to vector<128xf32>
    %172 = vector.shape_cast %171 : vector<128xf32> to vector<1x1x128xf32>
    %173 = vector.broadcast %172 : vector<1x1x128xf32> to vector<1x16x128xf32>
    %174 = arith.mulf %163, %173 : vector<1x16x128xf32>
    %175 = arith.addf %162, %174 : vector<1x16x128xf32>
    %c104_i32_66 = arith.constant 104 : i32
    %176 = tpu.dynamic_rotate %91 by %c104_i32_66 dim 2 : vector<1x16x128xf32>, i32 -> vector<1x16x128xf32>
    %c6_67 = arith.constant 6 : index
    %c0_68 = arith.constant 0 : index
    %177 = vector.load %arg6[%c6_67, %c0_68] : memref<49x128xf32, #tpu.memory_space<vmem>>, vector<1x128xf32>
    %178 = vector.shape_cast %177 : vector<1x128xf32> to vector<128xf32>
    %179 = vector.shape_cast %178 : vector<128xf32> to vector<1x1x128xf32>
    %180 = vector.broadcast %179 : vector<1x1x128xf32> to vector<1x16x128xf32>
    %181 = arith.mulf %176, %180 : vector<1x16x128xf32>
    %182 = arith.addf %169, %181 : vector<1x16x128xf32>
    %c16 = arith.constant 16 : index
    %c0_69 = arith.constant 0 : index
    %183 = vector.load %arg7[%c16, %c0_69] : memref<81x128xf32, #tpu.memory_space<vmem>>, vector<1x128xf32>
    %184 = vector.shape_cast %183 : vector<1x128xf32> to vector<128xf32>
    %185 = vector.shape_cast %184 : vector<128xf32> to vector<1x1x128xf32>
    %186 = vector.broadcast %185 : vector<1x1x128xf32> to vector<1x16x128xf32>
    %187 = arith.mulf %176, %186 : vector<1x16x128xf32>
    %188 = arith.addf %175, %187 : vector<1x16x128xf32>
    %c96_i32_70 = arith.constant 96 : i32
    %189 = tpu.dynamic_rotate %91 by %c96_i32_70 dim 2 : vector<1x16x128xf32>, i32 -> vector<1x16x128xf32>
    %c17 = arith.constant 17 : index
    %c0_71 = arith.constant 0 : index
    %190 = vector.load %arg7[%c17, %c0_71] : memref<81x128xf32, #tpu.memory_space<vmem>>, vector<1x128xf32>
    %191 = vector.shape_cast %190 : vector<1x128xf32> to vector<128xf32>
    %192 = vector.shape_cast %191 : vector<128xf32> to vector<1x1x128xf32>
    %193 = vector.broadcast %192 : vector<1x1x128xf32> to vector<1x16x128xf32>
    %194 = arith.mulf %189, %193 : vector<1x16x128xf32>
    %195 = arith.addf %188, %194 : vector<1x16x128xf32>
    %c0_72 = arith.constant 0 : index
    %c2_73 = arith.constant 2 : index
    %c0_74 = arith.constant 0 : index
    %196 = vector.load %arg11[%c0_72, %c2_73, %c0_74] : memref<1x24x128xf32, #tpu.memory_space<vmem>>, vector<1x16x128xf32>
    %c32_i32_75 = arith.constant 32 : i32
    %197 = tpu.dynamic_rotate %196 by %c32_i32_75 dim 2 : vector<1x16x128xf32>, i32 -> vector<1x16x128xf32>
    %c18 = arith.constant 18 : index
    %c0_76 = arith.constant 0 : index
    %198 = vector.load %arg7[%c18, %c0_76] : memref<81x128xf32, #tpu.memory_space<vmem>>, vector<1x128xf32>
    %199 = vector.shape_cast %198 : vector<1x128xf32> to vector<128xf32>
    %200 = vector.shape_cast %199 : vector<128xf32> to vector<1x1x128xf32>
    %201 = vector.broadcast %200 : vector<1x1x128xf32> to vector<1x16x128xf32>
    %202 = arith.mulf %197, %201 : vector<1x16x128xf32>
    %203 = arith.addf %195, %202 : vector<1x16x128xf32>
    %c24_i32_77 = arith.constant 24 : i32
    %204 = tpu.dynamic_rotate %196 by %c24_i32_77 dim 2 : vector<1x16x128xf32>, i32 -> vector<1x16x128xf32>
    %c7_78 = arith.constant 7 : index
    %c0_79 = arith.constant 0 : index
    %205 = vector.load %arg6[%c7_78, %c0_79] : memref<49x128xf32, #tpu.memory_space<vmem>>, vector<1x128xf32>
    %206 = vector.shape_cast %205 : vector<1x128xf32> to vector<128xf32>
    %207 = vector.shape_cast %206 : vector<128xf32> to vector<1x1x128xf32>
    %208 = vector.broadcast %207 : vector<1x1x128xf32> to vector<1x16x128xf32>
    %209 = arith.mulf %204, %208 : vector<1x16x128xf32>
    %210 = arith.addf %182, %209 : vector<1x16x128xf32>
    %c19 = arith.constant 19 : index
    %c0_80 = arith.constant 0 : index
    %211 = vector.load %arg7[%c19, %c0_80] : memref<81x128xf32, #tpu.memory_space<vmem>>, vector<1x128xf32>
    %212 = vector.shape_cast %211 : vector<1x128xf32> to vector<128xf32>
    %213 = vector.shape_cast %212 : vector<128xf32> to vector<1x1x128xf32>
    %214 = vector.broadcast %213 : vector<1x1x128xf32> to vector<1x16x128xf32>
    %215 = arith.mulf %204, %214 : vector<1x16x128xf32>
    %216 = arith.addf %203, %215 : vector<1x16x128xf32>
    %c16_i32_81 = arith.constant 16 : i32
    %217 = tpu.dynamic_rotate %196 by %c16_i32_81 dim 2 : vector<1x16x128xf32>, i32 -> vector<1x16x128xf32>
    %c0_82 = arith.constant 0 : index
    %c0_83 = arith.constant 0 : index
    %218 = vector.load %arg5[%c0_82, %c0_83] : memref<25x128xf32, #tpu.memory_space<vmem>>, vector<1x128xf32>
    %219 = vector.shape_cast %218 : vector<1x128xf32> to vector<128xf32>
    %220 = vector.shape_cast %219 : vector<128xf32> to vector<1x1x128xf32>
    %221 = vector.broadcast %220 : vector<1x1x128xf32> to vector<1x16x128xf32>
    %222 = arith.mulf %217, %221 : vector<1x16x128xf32>
    %223 = arith.addf %25, %222 : vector<1x16x128xf32>
    %c8_84 = arith.constant 8 : index
    %c0_85 = arith.constant 0 : index
    %224 = vector.load %arg6[%c8_84, %c0_85] : memref<49x128xf32, #tpu.memory_space<vmem>>, vector<1x128xf32>
    %225 = vector.shape_cast %224 : vector<1x128xf32> to vector<128xf32>
    %226 = vector.shape_cast %225 : vector<128xf32> to vector<1x1x128xf32>
    %227 = vector.broadcast %226 : vector<1x1x128xf32> to vector<1x16x128xf32>
    %228 = arith.mulf %217, %227 : vector<1x16x128xf32>
    %229 = arith.addf %210, %228 : vector<1x16x128xf32>
    %c20_86 = arith.constant 20 : index
    %c0_87 = arith.constant 0 : index
    %230 = vector.load %arg7[%c20_86, %c0_87] : memref<81x128xf32, #tpu.memory_space<vmem>>, vector<1x128xf32>
    %231 = vector.shape_cast %230 : vector<1x128xf32> to vector<128xf32>
    %232 = vector.shape_cast %231 : vector<128xf32> to vector<1x1x128xf32>
    %233 = vector.broadcast %232 : vector<1x1x128xf32> to vector<1x16x128xf32>
    %234 = arith.mulf %217, %233 : vector<1x16x128xf32>
    %235 = arith.addf %216, %234 : vector<1x16x128xf32>
    %c8_i32_88 = arith.constant 8 : i32
    %236 = tpu.dynamic_rotate %196 by %c8_i32_88 dim 2 : vector<1x16x128xf32>, i32 -> vector<1x16x128xf32>
    %c1_89 = arith.constant 1 : index
    %c0_90 = arith.constant 0 : index
    %237 = vector.load %arg5[%c1_89, %c0_90] : memref<25x128xf32, #tpu.memory_space<vmem>>, vector<1x128xf32>
    %238 = vector.shape_cast %237 : vector<1x128xf32> to vector<128xf32>
    %239 = vector.shape_cast %238 : vector<128xf32> to vector<1x1x128xf32>
    %240 = vector.broadcast %239 : vector<1x1x128xf32> to vector<1x16x128xf32>
    %241 = arith.mulf %236, %240 : vector<1x16x128xf32>
    %242 = arith.addf %223, %241 : vector<1x16x128xf32>
    %c9_91 = arith.constant 9 : index
    %c0_92 = arith.constant 0 : index
    %243 = vector.load %arg6[%c9_91, %c0_92] : memref<49x128xf32, #tpu.memory_space<vmem>>, vector<1x128xf32>
    %244 = vector.shape_cast %243 : vector<1x128xf32> to vector<128xf32>
    %245 = vector.shape_cast %244 : vector<128xf32> to vector<1x1x128xf32>
    %246 = vector.broadcast %245 : vector<1x1x128xf32> to vector<1x16x128xf32>
    %247 = arith.mulf %236, %246 : vector<1x16x128xf32>
    %248 = arith.addf %229, %247 : vector<1x16x128xf32>
    %c21 = arith.constant 21 : index
    %c0_93 = arith.constant 0 : index
    %249 = vector.load %arg7[%c21, %c0_93] : memref<81x128xf32, #tpu.memory_space<vmem>>, vector<1x128xf32>
    %250 = vector.shape_cast %249 : vector<1x128xf32> to vector<128xf32>
    %251 = vector.shape_cast %250 : vector<128xf32> to vector<1x1x128xf32>
    %252 = vector.broadcast %251 : vector<1x1x128xf32> to vector<1x16x128xf32>
    %253 = arith.mulf %236, %252 : vector<1x16x128xf32>
    %254 = arith.addf %235, %253 : vector<1x16x128xf32>
    %c2_94 = arith.constant 2 : index
    %c0_95 = arith.constant 0 : index
    %255 = vector.load %arg5[%c2_94, %c0_95] : memref<25x128xf32, #tpu.memory_space<vmem>>, vector<1x128xf32>
    %256 = vector.shape_cast %255 : vector<1x128xf32> to vector<128xf32>
    %257 = vector.shape_cast %256 : vector<128xf32> to vector<1x1x128xf32>
    %258 = vector.broadcast %257 : vector<1x1x128xf32> to vector<1x16x128xf32>
    %259 = arith.mulf %196, %258 : vector<1x16x128xf32>
    %260 = arith.addf %242, %259 : vector<1x16x128xf32>
    %c10_96 = arith.constant 10 : index
    %c0_97 = arith.constant 0 : index
    %261 = vector.load %arg6[%c10_96, %c0_97] : memref<49x128xf32, #tpu.memory_space<vmem>>, vector<1x128xf32>
    %262 = vector.shape_cast %261 : vector<1x128xf32> to vector<128xf32>
    %263 = vector.shape_cast %262 : vector<128xf32> to vector<1x1x128xf32>
    %264 = vector.broadcast %263 : vector<1x1x128xf32> to vector<1x16x128xf32>
    %265 = arith.mulf %196, %264 : vector<1x16x128xf32>
    %266 = arith.addf %248, %265 : vector<1x16x128xf32>
    %c22 = arith.constant 22 : index
    %c0_98 = arith.constant 0 : index
    %267 = vector.load %arg7[%c22, %c0_98] : memref<81x128xf32, #tpu.memory_space<vmem>>, vector<1x128xf32>
    %268 = vector.shape_cast %267 : vector<1x128xf32> to vector<128xf32>
    %269 = vector.shape_cast %268 : vector<128xf32> to vector<1x1x128xf32>
    %270 = vector.broadcast %269 : vector<1x1x128xf32> to vector<1x16x128xf32>
    %271 = arith.mulf %196, %270 : vector<1x16x128xf32>
    %272 = arith.addf %254, %271 : vector<1x16x128xf32>
    %c120_i32_99 = arith.constant 120 : i32
    %273 = tpu.dynamic_rotate %196 by %c120_i32_99 dim 2 : vector<1x16x128xf32>, i32 -> vector<1x16x128xf32>
    %c3_100 = arith.constant 3 : index
    %c0_101 = arith.constant 0 : index
    %274 = vector.load %arg5[%c3_100, %c0_101] : memref<25x128xf32, #tpu.memory_space<vmem>>, vector<1x128xf32>
    %275 = vector.shape_cast %274 : vector<1x128xf32> to vector<128xf32>
    %276 = vector.shape_cast %275 : vector<128xf32> to vector<1x1x128xf32>
    %277 = vector.broadcast %276 : vector<1x1x128xf32> to vector<1x16x128xf32>
    %278 = arith.mulf %273, %277 : vector<1x16x128xf32>
    %279 = arith.addf %260, %278 : vector<1x16x128xf32>
    %c11_102 = arith.constant 11 : index
    %c0_103 = arith.constant 0 : index
    %280 = vector.load %arg6[%c11_102, %c0_103] : memref<49x128xf32, #tpu.memory_space<vmem>>, vector<1x128xf32>
    %281 = vector.shape_cast %280 : vector<1x128xf32> to vector<128xf32>
    %282 = vector.shape_cast %281 : vector<128xf32> to vector<1x1x128xf32>
    %283 = vector.broadcast %282 : vector<1x1x128xf32> to vector<1x16x128xf32>
    %284 = arith.mulf %273, %283 : vector<1x16x128xf32>
    %285 = arith.addf %266, %284 : vector<1x16x128xf32>
    %c23 = arith.constant 23 : index
    %c0_104 = arith.constant 0 : index
    %286 = vector.load %arg7[%c23, %c0_104] : memref<81x128xf32, #tpu.memory_space<vmem>>, vector<1x128xf32>
    %287 = vector.shape_cast %286 : vector<1x128xf32> to vector<128xf32>
    %288 = vector.shape_cast %287 : vector<128xf32> to vector<1x1x128xf32>
    %289 = vector.broadcast %288 : vector<1x1x128xf32> to vector<1x16x128xf32>
    %290 = arith.mulf %273, %289 : vector<1x16x128xf32>
    %291 = arith.addf %272, %290 : vector<1x16x128xf32>
    %c112_i32_105 = arith.constant 112 : i32
    %292 = tpu.dynamic_rotate %196 by %c112_i32_105 dim 2 : vector<1x16x128xf32>, i32 -> vector<1x16x128xf32>
    %c4_106 = arith.constant 4 : index
    %c0_107 = arith.constant 0 : index
    %293 = vector.load %arg5[%c4_106, %c0_107] : memref<25x128xf32, #tpu.memory_space<vmem>>, vector<1x128xf32>
    %294 = vector.shape_cast %293 : vector<1x128xf32> to vector<128xf32>
    %295 = vector.shape_cast %294 : vector<128xf32> to vector<1x1x128xf32>
    %296 = vector.broadcast %295 : vector<1x1x128xf32> to vector<1x16x128xf32>
    %297 = arith.mulf %292, %296 : vector<1x16x128xf32>
    %298 = arith.addf %279, %297 : vector<1x16x128xf32>
    %c12_108 = arith.constant 12 : index
    %c0_109 = arith.constant 0 : index
    %299 = vector.load %arg6[%c12_108, %c0_109] : memref<49x128xf32, #tpu.memory_space<vmem>>, vector<1x128xf32>
    %300 = vector.shape_cast %299 : vector<1x128xf32> to vector<128xf32>
    %301 = vector.shape_cast %300 : vector<128xf32> to vector<1x1x128xf32>
    %302 = vector.broadcast %301 : vector<1x1x128xf32> to vector<1x16x128xf32>
    %303 = arith.mulf %292, %302 : vector<1x16x128xf32>
    %304 = arith.addf %285, %303 : vector<1x16x128xf32>
    %c24 = arith.constant 24 : index
    %c0_110 = arith.constant 0 : index
    %305 = vector.load %arg7[%c24, %c0_110] : memref<81x128xf32, #tpu.memory_space<vmem>>, vector<1x128xf32>
    %306 = vector.shape_cast %305 : vector<1x128xf32> to vector<128xf32>
    %307 = vector.shape_cast %306 : vector<128xf32> to vector<1x1x128xf32>
    %308 = vector.broadcast %307 : vector<1x1x128xf32> to vector<1x16x128xf32>
    %309 = arith.mulf %292, %308 : vector<1x16x128xf32>
    %310 = arith.addf %291, %309 : vector<1x16x128xf32>
    %c104_i32_111 = arith.constant 104 : i32
    %311 = tpu.dynamic_rotate %196 by %c104_i32_111 dim 2 : vector<1x16x128xf32>, i32 -> vector<1x16x128xf32>
    %c13_112 = arith.constant 13 : index
    %c0_113 = arith.constant 0 : index
    %312 = vector.load %arg6[%c13_112, %c0_113] : memref<49x128xf32, #tpu.memory_space<vmem>>, vector<1x128xf32>
    %313 = vector.shape_cast %312 : vector<1x128xf32> to vector<128xf32>
    %314 = vector.shape_cast %313 : vector<128xf32> to vector<1x1x128xf32>
    %315 = vector.broadcast %314 : vector<1x1x128xf32> to vector<1x16x128xf32>
    %316 = arith.mulf %311, %315 : vector<1x16x128xf32>
    %317 = arith.addf %304, %316 : vector<1x16x128xf32>
    %c25 = arith.constant 25 : index
    %c0_114 = arith.constant 0 : index
    %318 = vector.load %arg7[%c25, %c0_114] : memref<81x128xf32, #tpu.memory_space<vmem>>, vector<1x128xf32>
    %319 = vector.shape_cast %318 : vector<1x128xf32> to vector<128xf32>
    %320 = vector.shape_cast %319 : vector<128xf32> to vector<1x1x128xf32>
    %321 = vector.broadcast %320 : vector<1x1x128xf32> to vector<1x16x128xf32>
    %322 = arith.mulf %311, %321 : vector<1x16x128xf32>
    %323 = arith.addf %310, %322 : vector<1x16x128xf32>
    %c96_i32_115 = arith.constant 96 : i32
    %324 = tpu.dynamic_rotate %196 by %c96_i32_115 dim 2 : vector<1x16x128xf32>, i32 -> vector<1x16x128xf32>
    %c26 = arith.constant 26 : index
    %c0_116 = arith.constant 0 : index
    %325 = vector.load %arg7[%c26, %c0_116] : memref<81x128xf32, #tpu.memory_space<vmem>>, vector<1x128xf32>
    %326 = vector.shape_cast %325 : vector<1x128xf32> to vector<128xf32>
    %327 = vector.shape_cast %326 : vector<128xf32> to vector<1x1x128xf32>
    %328 = vector.broadcast %327 : vector<1x1x128xf32> to vector<1x16x128xf32>
    %329 = arith.mulf %324, %328 : vector<1x16x128xf32>
    %330 = arith.addf %323, %329 : vector<1x16x128xf32>
    %c0_117 = arith.constant 0 : index
    %c3_118 = arith.constant 3 : index
    %c0_119 = arith.constant 0 : index
    %331 = vector.load %arg11[%c0_117, %c3_118, %c0_119] : memref<1x24x128xf32, #tpu.memory_space<vmem>>, vector<1x16x128xf32>
    %c32_i32_120 = arith.constant 32 : i32
    %332 = tpu.dynamic_rotate %331 by %c32_i32_120 dim 2 : vector<1x16x128xf32>, i32 -> vector<1x16x128xf32>
    %c27 = arith.constant 27 : index
    %c0_121 = arith.constant 0 : index
    %333 = vector.load %arg7[%c27, %c0_121] : memref<81x128xf32, #tpu.memory_space<vmem>>, vector<1x128xf32>
    %334 = vector.shape_cast %333 : vector<1x128xf32> to vector<128xf32>
    %335 = vector.shape_cast %334 : vector<128xf32> to vector<1x1x128xf32>
    %336 = vector.broadcast %335 : vector<1x1x128xf32> to vector<1x16x128xf32>
    %337 = arith.mulf %332, %336 : vector<1x16x128xf32>
    %338 = arith.addf %330, %337 : vector<1x16x128xf32>
    %c24_i32_122 = arith.constant 24 : i32
    %339 = tpu.dynamic_rotate %331 by %c24_i32_122 dim 2 : vector<1x16x128xf32>, i32 -> vector<1x16x128xf32>
    %c14_123 = arith.constant 14 : index
    %c0_124 = arith.constant 0 : index
    %340 = vector.load %arg6[%c14_123, %c0_124] : memref<49x128xf32, #tpu.memory_space<vmem>>, vector<1x128xf32>
    %341 = vector.shape_cast %340 : vector<1x128xf32> to vector<128xf32>
    %342 = vector.shape_cast %341 : vector<128xf32> to vector<1x1x128xf32>
    %343 = vector.broadcast %342 : vector<1x1x128xf32> to vector<1x16x128xf32>
    %344 = arith.mulf %339, %343 : vector<1x16x128xf32>
    %345 = arith.addf %317, %344 : vector<1x16x128xf32>
    %c28 = arith.constant 28 : index
    %c0_125 = arith.constant 0 : index
    %346 = vector.load %arg7[%c28, %c0_125] : memref<81x128xf32, #tpu.memory_space<vmem>>, vector<1x128xf32>
    %347 = vector.shape_cast %346 : vector<1x128xf32> to vector<128xf32>
    %348 = vector.shape_cast %347 : vector<128xf32> to vector<1x1x128xf32>
    %349 = vector.broadcast %348 : vector<1x1x128xf32> to vector<1x16x128xf32>
    %350 = arith.mulf %339, %349 : vector<1x16x128xf32>
    %351 = arith.addf %338, %350 : vector<1x16x128xf32>
    %c16_i32_126 = arith.constant 16 : i32
    %352 = tpu.dynamic_rotate %331 by %c16_i32_126 dim 2 : vector<1x16x128xf32>, i32 -> vector<1x16x128xf32>
    %c5_127 = arith.constant 5 : index
    %c0_128 = arith.constant 0 : index
    %353 = vector.load %arg5[%c5_127, %c0_128] : memref<25x128xf32, #tpu.memory_space<vmem>>, vector<1x128xf32>
    %354 = vector.shape_cast %353 : vector<1x128xf32> to vector<128xf32>
    %355 = vector.shape_cast %354 : vector<128xf32> to vector<1x1x128xf32>
    %356 = vector.broadcast %355 : vector<1x1x128xf32> to vector<1x16x128xf32>
    %357 = arith.mulf %352, %356 : vector<1x16x128xf32>
    %358 = arith.addf %298, %357 : vector<1x16x128xf32>
    %c15_129 = arith.constant 15 : index
    %c0_130 = arith.constant 0 : index
    %359 = vector.load %arg6[%c15_129, %c0_130] : memref<49x128xf32, #tpu.memory_space<vmem>>, vector<1x128xf32>
    %360 = vector.shape_cast %359 : vector<1x128xf32> to vector<128xf32>
    %361 = vector.shape_cast %360 : vector<128xf32> to vector<1x1x128xf32>
    %362 = vector.broadcast %361 : vector<1x1x128xf32> to vector<1x16x128xf32>
    %363 = arith.mulf %352, %362 : vector<1x16x128xf32>
    %364 = arith.addf %345, %363 : vector<1x16x128xf32>
    %c29 = arith.constant 29 : index
    %c0_131 = arith.constant 0 : index
    %365 = vector.load %arg7[%c29, %c0_131] : memref<81x128xf32, #tpu.memory_space<vmem>>, vector<1x128xf32>
    %366 = vector.shape_cast %365 : vector<1x128xf32> to vector<128xf32>
    %367 = vector.shape_cast %366 : vector<128xf32> to vector<1x1x128xf32>
    %368 = vector.broadcast %367 : vector<1x1x128xf32> to vector<1x16x128xf32>
    %369 = arith.mulf %352, %368 : vector<1x16x128xf32>
    %370 = arith.addf %351, %369 : vector<1x16x128xf32>
    %c8_i32_132 = arith.constant 8 : i32
    %371 = tpu.dynamic_rotate %331 by %c8_i32_132 dim 2 : vector<1x16x128xf32>, i32 -> vector<1x16x128xf32>
    %c0_133 = arith.constant 0 : index
    %c0_134 = arith.constant 0 : index
    %372 = vector.load %arg4[%c0_133, %c0_134] : memref<9x128xf32, #tpu.memory_space<vmem>>, vector<1x128xf32>
    %373 = vector.shape_cast %372 : vector<1x128xf32> to vector<128xf32>
    %374 = vector.shape_cast %373 : vector<128xf32> to vector<1x1x128xf32>
    %375 = vector.broadcast %374 : vector<1x1x128xf32> to vector<1x16x128xf32>
    %376 = arith.mulf %371, %375 : vector<1x16x128xf32>
    %377 = arith.addf %24, %376 : vector<1x16x128xf32>
    %c6_135 = arith.constant 6 : index
    %c0_136 = arith.constant 0 : index
    %378 = vector.load %arg5[%c6_135, %c0_136] : memref<25x128xf32, #tpu.memory_space<vmem>>, vector<1x128xf32>
    %379 = vector.shape_cast %378 : vector<1x128xf32> to vector<128xf32>
    %380 = vector.shape_cast %379 : vector<128xf32> to vector<1x1x128xf32>
    %381 = vector.broadcast %380 : vector<1x1x128xf32> to vector<1x16x128xf32>
    %382 = arith.mulf %371, %381 : vector<1x16x128xf32>
    %383 = arith.addf %358, %382 : vector<1x16x128xf32>
    %c16_137 = arith.constant 16 : index
    %c0_138 = arith.constant 0 : index
    %384 = vector.load %arg6[%c16_137, %c0_138] : memref<49x128xf32, #tpu.memory_space<vmem>>, vector<1x128xf32>
    %385 = vector.shape_cast %384 : vector<1x128xf32> to vector<128xf32>
    %386 = vector.shape_cast %385 : vector<128xf32> to vector<1x1x128xf32>
    %387 = vector.broadcast %386 : vector<1x1x128xf32> to vector<1x16x128xf32>
    %388 = arith.mulf %371, %387 : vector<1x16x128xf32>
    %389 = arith.addf %364, %388 : vector<1x16x128xf32>
    %c30 = arith.constant 30 : index
    %c0_139 = arith.constant 0 : index
    %390 = vector.load %arg7[%c30, %c0_139] : memref<81x128xf32, #tpu.memory_space<vmem>>, vector<1x128xf32>
    %391 = vector.shape_cast %390 : vector<1x128xf32> to vector<128xf32>
    %392 = vector.shape_cast %391 : vector<128xf32> to vector<1x1x128xf32>
    %393 = vector.broadcast %392 : vector<1x1x128xf32> to vector<1x16x128xf32>
    %394 = arith.mulf %371, %393 : vector<1x16x128xf32>
    %395 = arith.addf %370, %394 : vector<1x16x128xf32>
    %c1_140 = arith.constant 1 : index
    %c0_141 = arith.constant 0 : index
    %396 = vector.load %arg4[%c1_140, %c0_141] : memref<9x128xf32, #tpu.memory_space<vmem>>, vector<1x128xf32>
    %397 = vector.shape_cast %396 : vector<1x128xf32> to vector<128xf32>
    %398 = vector.shape_cast %397 : vector<128xf32> to vector<1x1x128xf32>
    %399 = vector.broadcast %398 : vector<1x1x128xf32> to vector<1x16x128xf32>
    %400 = arith.mulf %331, %399 : vector<1x16x128xf32>
    %401 = arith.addf %377, %400 : vector<1x16x128xf32>
    %c7_142 = arith.constant 7 : index
    %c0_143 = arith.constant 0 : index
    %402 = vector.load %arg5[%c7_142, %c0_143] : memref<25x128xf32, #tpu.memory_space<vmem>>, vector<1x128xf32>
    %403 = vector.shape_cast %402 : vector<1x128xf32> to vector<128xf32>
    %404 = vector.shape_cast %403 : vector<128xf32> to vector<1x1x128xf32>
    %405 = vector.broadcast %404 : vector<1x1x128xf32> to vector<1x16x128xf32>
    %406 = arith.mulf %331, %405 : vector<1x16x128xf32>
    %407 = arith.addf %383, %406 : vector<1x16x128xf32>
    %c17_144 = arith.constant 17 : index
    %c0_145 = arith.constant 0 : index
    %408 = vector.load %arg6[%c17_144, %c0_145] : memref<49x128xf32, #tpu.memory_space<vmem>>, vector<1x128xf32>
    %409 = vector.shape_cast %408 : vector<1x128xf32> to vector<128xf32>
    %410 = vector.shape_cast %409 : vector<128xf32> to vector<1x1x128xf32>
    %411 = vector.broadcast %410 : vector<1x1x128xf32> to vector<1x16x128xf32>
    %412 = arith.mulf %331, %411 : vector<1x16x128xf32>
    %413 = arith.addf %389, %412 : vector<1x16x128xf32>
    %c31 = arith.constant 31 : index
    %c0_146 = arith.constant 0 : index
    %414 = vector.load %arg7[%c31, %c0_146] : memref<81x128xf32, #tpu.memory_space<vmem>>, vector<1x128xf32>
    %415 = vector.shape_cast %414 : vector<1x128xf32> to vector<128xf32>
    %416 = vector.shape_cast %415 : vector<128xf32> to vector<1x1x128xf32>
    %417 = vector.broadcast %416 : vector<1x1x128xf32> to vector<1x16x128xf32>
    %418 = arith.mulf %331, %417 : vector<1x16x128xf32>
    %419 = arith.addf %395, %418 : vector<1x16x128xf32>
    %c120_i32_147 = arith.constant 120 : i32
    %420 = tpu.dynamic_rotate %331 by %c120_i32_147 dim 2 : vector<1x16x128xf32>, i32 -> vector<1x16x128xf32>
    %c2_148 = arith.constant 2 : index
    %c0_149 = arith.constant 0 : index
    %421 = vector.load %arg4[%c2_148, %c0_149] : memref<9x128xf32, #tpu.memory_space<vmem>>, vector<1x128xf32>
    %422 = vector.shape_cast %421 : vector<1x128xf32> to vector<128xf32>
    %423 = vector.shape_cast %422 : vector<128xf32> to vector<1x1x128xf32>
    %424 = vector.broadcast %423 : vector<1x1x128xf32> to vector<1x16x128xf32>
    %425 = arith.mulf %420, %424 : vector<1x16x128xf32>
    %426 = arith.addf %401, %425 : vector<1x16x128xf32>
    %c8_150 = arith.constant 8 : index
    %c0_151 = arith.constant 0 : index
    %427 = vector.load %arg5[%c8_150, %c0_151] : memref<25x128xf32, #tpu.memory_space<vmem>>, vector<1x128xf32>
    %428 = vector.shape_cast %427 : vector<1x128xf32> to vector<128xf32>
    %429 = vector.shape_cast %428 : vector<128xf32> to vector<1x1x128xf32>
    %430 = vector.broadcast %429 : vector<1x1x128xf32> to vector<1x16x128xf32>
    %431 = arith.mulf %420, %430 : vector<1x16x128xf32>
    %432 = arith.addf %407, %431 : vector<1x16x128xf32>
    %c18_152 = arith.constant 18 : index
    %c0_153 = arith.constant 0 : index
    %433 = vector.load %arg6[%c18_152, %c0_153] : memref<49x128xf32, #tpu.memory_space<vmem>>, vector<1x128xf32>
    %434 = vector.shape_cast %433 : vector<1x128xf32> to vector<128xf32>
    %435 = vector.shape_cast %434 : vector<128xf32> to vector<1x1x128xf32>
    %436 = vector.broadcast %435 : vector<1x1x128xf32> to vector<1x16x128xf32>
    %437 = arith.mulf %420, %436 : vector<1x16x128xf32>
    %438 = arith.addf %413, %437 : vector<1x16x128xf32>
    %c32 = arith.constant 32 : index
    %c0_154 = arith.constant 0 : index
    %439 = vector.load %arg7[%c32, %c0_154] : memref<81x128xf32, #tpu.memory_space<vmem>>, vector<1x128xf32>
    %440 = vector.shape_cast %439 : vector<1x128xf32> to vector<128xf32>
    %441 = vector.shape_cast %440 : vector<128xf32> to vector<1x1x128xf32>
    %442 = vector.broadcast %441 : vector<1x1x128xf32> to vector<1x16x128xf32>
    %443 = arith.mulf %420, %442 : vector<1x16x128xf32>
    %444 = arith.addf %419, %443 : vector<1x16x128xf32>
    %c112_i32_155 = arith.constant 112 : i32
    %445 = tpu.dynamic_rotate %331 by %c112_i32_155 dim 2 : vector<1x16x128xf32>, i32 -> vector<1x16x128xf32>
    %c9_156 = arith.constant 9 : index
    %c0_157 = arith.constant 0 : index
    %446 = vector.load %arg5[%c9_156, %c0_157] : memref<25x128xf32, #tpu.memory_space<vmem>>, vector<1x128xf32>
    %447 = vector.shape_cast %446 : vector<1x128xf32> to vector<128xf32>
    %448 = vector.shape_cast %447 : vector<128xf32> to vector<1x1x128xf32>
    %449 = vector.broadcast %448 : vector<1x1x128xf32> to vector<1x16x128xf32>
    %450 = arith.mulf %445, %449 : vector<1x16x128xf32>
    %451 = arith.addf %432, %450 : vector<1x16x128xf32>
    %c19_158 = arith.constant 19 : index
    %c0_159 = arith.constant 0 : index
    %452 = vector.load %arg6[%c19_158, %c0_159] : memref<49x128xf32, #tpu.memory_space<vmem>>, vector<1x128xf32>
    %453 = vector.shape_cast %452 : vector<1x128xf32> to vector<128xf32>
    %454 = vector.shape_cast %453 : vector<128xf32> to vector<1x1x128xf32>
    %455 = vector.broadcast %454 : vector<1x1x128xf32> to vector<1x16x128xf32>
    %456 = arith.mulf %445, %455 : vector<1x16x128xf32>
    %457 = arith.addf %438, %456 : vector<1x16x128xf32>
    %c33 = arith.constant 33 : index
    %c0_160 = arith.constant 0 : index
    %458 = vector.load %arg7[%c33, %c0_160] : memref<81x128xf32, #tpu.memory_space<vmem>>, vector<1x128xf32>
    %459 = vector.shape_cast %458 : vector<1x128xf32> to vector<128xf32>
    %460 = vector.shape_cast %459 : vector<128xf32> to vector<1x1x128xf32>
    %461 = vector.broadcast %460 : vector<1x1x128xf32> to vector<1x16x128xf32>
    %462 = arith.mulf %445, %461 : vector<1x16x128xf32>
    %463 = arith.addf %444, %462 : vector<1x16x128xf32>
    %c104_i32_161 = arith.constant 104 : i32
    %464 = tpu.dynamic_rotate %331 by %c104_i32_161 dim 2 : vector<1x16x128xf32>, i32 -> vector<1x16x128xf32>
    %c20_162 = arith.constant 20 : index
    %c0_163 = arith.constant 0 : index
    %465 = vector.load %arg6[%c20_162, %c0_163] : memref<49x128xf32, #tpu.memory_space<vmem>>, vector<1x128xf32>
    %466 = vector.shape_cast %465 : vector<1x128xf32> to vector<128xf32>
    %467 = vector.shape_cast %466 : vector<128xf32> to vector<1x1x128xf32>
    %468 = vector.broadcast %467 : vector<1x1x128xf32> to vector<1x16x128xf32>
    %469 = arith.mulf %464, %468 : vector<1x16x128xf32>
    %470 = arith.addf %457, %469 : vector<1x16x128xf32>
    %c34 = arith.constant 34 : index
    %c0_164 = arith.constant 0 : index
    %471 = vector.load %arg7[%c34, %c0_164] : memref<81x128xf32, #tpu.memory_space<vmem>>, vector<1x128xf32>
    %472 = vector.shape_cast %471 : vector<1x128xf32> to vector<128xf32>
    %473 = vector.shape_cast %472 : vector<128xf32> to vector<1x1x128xf32>
    %474 = vector.broadcast %473 : vector<1x1x128xf32> to vector<1x16x128xf32>
    %475 = arith.mulf %464, %474 : vector<1x16x128xf32>
    %476 = arith.addf %463, %475 : vector<1x16x128xf32>
    %c96_i32_165 = arith.constant 96 : i32
    %477 = tpu.dynamic_rotate %331 by %c96_i32_165 dim 2 : vector<1x16x128xf32>, i32 -> vector<1x16x128xf32>
    %c35 = arith.constant 35 : index
    %c0_166 = arith.constant 0 : index
    %478 = vector.load %arg7[%c35, %c0_166] : memref<81x128xf32, #tpu.memory_space<vmem>>, vector<1x128xf32>
    %479 = vector.shape_cast %478 : vector<1x128xf32> to vector<128xf32>
    %480 = vector.shape_cast %479 : vector<128xf32> to vector<1x1x128xf32>
    %481 = vector.broadcast %480 : vector<1x1x128xf32> to vector<1x16x128xf32>
    %482 = arith.mulf %477, %481 : vector<1x16x128xf32>
    %483 = arith.addf %476, %482 : vector<1x16x128xf32>
    %c0_167 = arith.constant 0 : index
    %c4_168 = arith.constant 4 : index
    %c0_169 = arith.constant 0 : index
    %484 = vector.load %arg11[%c0_167, %c4_168, %c0_169] : memref<1x24x128xf32, #tpu.memory_space<vmem>>, vector<1x16x128xf32>
    %c32_i32_170 = arith.constant 32 : i32
    %485 = tpu.dynamic_rotate %484 by %c32_i32_170 dim 2 : vector<1x16x128xf32>, i32 -> vector<1x16x128xf32>
    %c36 = arith.constant 36 : index
    %c0_171 = arith.constant 0 : index
    %486 = vector.load %arg7[%c36, %c0_171] : memref<81x128xf32, #tpu.memory_space<vmem>>, vector<1x128xf32>
    %487 = vector.shape_cast %486 : vector<1x128xf32> to vector<128xf32>
    %488 = vector.shape_cast %487 : vector<128xf32> to vector<1x1x128xf32>
    %489 = vector.broadcast %488 : vector<1x1x128xf32> to vector<1x16x128xf32>
    %490 = arith.mulf %485, %489 : vector<1x16x128xf32>
    %491 = arith.addf %483, %490 : vector<1x16x128xf32>
    %c24_i32_172 = arith.constant 24 : i32
    %492 = tpu.dynamic_rotate %484 by %c24_i32_172 dim 2 : vector<1x16x128xf32>, i32 -> vector<1x16x128xf32>
    %c21_173 = arith.constant 21 : index
    %c0_174 = arith.constant 0 : index
    %493 = vector.load %arg6[%c21_173, %c0_174] : memref<49x128xf32, #tpu.memory_space<vmem>>, vector<1x128xf32>
    %494 = vector.shape_cast %493 : vector<1x128xf32> to vector<128xf32>
    %495 = vector.shape_cast %494 : vector<128xf32> to vector<1x1x128xf32>
    %496 = vector.broadcast %495 : vector<1x1x128xf32> to vector<1x16x128xf32>
    %497 = arith.mulf %492, %496 : vector<1x16x128xf32>
    %498 = arith.addf %470, %497 : vector<1x16x128xf32>
    %c37 = arith.constant 37 : index
    %c0_175 = arith.constant 0 : index
    %499 = vector.load %arg7[%c37, %c0_175] : memref<81x128xf32, #tpu.memory_space<vmem>>, vector<1x128xf32>
    %500 = vector.shape_cast %499 : vector<1x128xf32> to vector<128xf32>
    %501 = vector.shape_cast %500 : vector<128xf32> to vector<1x1x128xf32>
    %502 = vector.broadcast %501 : vector<1x1x128xf32> to vector<1x16x128xf32>
    %503 = arith.mulf %492, %502 : vector<1x16x128xf32>
    %504 = arith.addf %491, %503 : vector<1x16x128xf32>
    %c16_i32_176 = arith.constant 16 : i32
    %505 = tpu.dynamic_rotate %484 by %c16_i32_176 dim 2 : vector<1x16x128xf32>, i32 -> vector<1x16x128xf32>
    %c10_177 = arith.constant 10 : index
    %c0_178 = arith.constant 0 : index
    %506 = vector.load %arg5[%c10_177, %c0_178] : memref<25x128xf32, #tpu.memory_space<vmem>>, vector<1x128xf32>
    %507 = vector.shape_cast %506 : vector<1x128xf32> to vector<128xf32>
    %508 = vector.shape_cast %507 : vector<128xf32> to vector<1x1x128xf32>
    %509 = vector.broadcast %508 : vector<1x1x128xf32> to vector<1x16x128xf32>
    %510 = arith.mulf %505, %509 : vector<1x16x128xf32>
    %511 = arith.addf %451, %510 : vector<1x16x128xf32>
    %c22_179 = arith.constant 22 : index
    %c0_180 = arith.constant 0 : index
    %512 = vector.load %arg6[%c22_179, %c0_180] : memref<49x128xf32, #tpu.memory_space<vmem>>, vector<1x128xf32>
    %513 = vector.shape_cast %512 : vector<1x128xf32> to vector<128xf32>
    %514 = vector.shape_cast %513 : vector<128xf32> to vector<1x1x128xf32>
    %515 = vector.broadcast %514 : vector<1x1x128xf32> to vector<1x16x128xf32>
    %516 = arith.mulf %505, %515 : vector<1x16x128xf32>
    %517 = arith.addf %498, %516 : vector<1x16x128xf32>
    %c38 = arith.constant 38 : index
    %c0_181 = arith.constant 0 : index
    %518 = vector.load %arg7[%c38, %c0_181] : memref<81x128xf32, #tpu.memory_space<vmem>>, vector<1x128xf32>
    %519 = vector.shape_cast %518 : vector<1x128xf32> to vector<128xf32>
    %520 = vector.shape_cast %519 : vector<128xf32> to vector<1x1x128xf32>
    %521 = vector.broadcast %520 : vector<1x1x128xf32> to vector<1x16x128xf32>
    %522 = arith.mulf %505, %521 : vector<1x16x128xf32>
    %523 = arith.addf %504, %522 : vector<1x16x128xf32>
    %c8_i32_182 = arith.constant 8 : i32
    %524 = tpu.dynamic_rotate %484 by %c8_i32_182 dim 2 : vector<1x16x128xf32>, i32 -> vector<1x16x128xf32>
    %c3_183 = arith.constant 3 : index
    %c0_184 = arith.constant 0 : index
    %525 = vector.load %arg4[%c3_183, %c0_184] : memref<9x128xf32, #tpu.memory_space<vmem>>, vector<1x128xf32>
    %526 = vector.shape_cast %525 : vector<1x128xf32> to vector<128xf32>
    %527 = vector.shape_cast %526 : vector<128xf32> to vector<1x1x128xf32>
    %528 = vector.broadcast %527 : vector<1x1x128xf32> to vector<1x16x128xf32>
    %529 = arith.mulf %524, %528 : vector<1x16x128xf32>
    %530 = arith.addf %426, %529 : vector<1x16x128xf32>
    %c11_185 = arith.constant 11 : index
    %c0_186 = arith.constant 0 : index
    %531 = vector.load %arg5[%c11_185, %c0_186] : memref<25x128xf32, #tpu.memory_space<vmem>>, vector<1x128xf32>
    %532 = vector.shape_cast %531 : vector<1x128xf32> to vector<128xf32>
    %533 = vector.shape_cast %532 : vector<128xf32> to vector<1x1x128xf32>
    %534 = vector.broadcast %533 : vector<1x1x128xf32> to vector<1x16x128xf32>
    %535 = arith.mulf %524, %534 : vector<1x16x128xf32>
    %536 = arith.addf %511, %535 : vector<1x16x128xf32>
    %c23_187 = arith.constant 23 : index
    %c0_188 = arith.constant 0 : index
    %537 = vector.load %arg6[%c23_187, %c0_188] : memref<49x128xf32, #tpu.memory_space<vmem>>, vector<1x128xf32>
    %538 = vector.shape_cast %537 : vector<1x128xf32> to vector<128xf32>
    %539 = vector.shape_cast %538 : vector<128xf32> to vector<1x1x128xf32>
    %540 = vector.broadcast %539 : vector<1x1x128xf32> to vector<1x16x128xf32>
    %541 = arith.mulf %524, %540 : vector<1x16x128xf32>
    %542 = arith.addf %517, %541 : vector<1x16x128xf32>
    %c39 = arith.constant 39 : index
    %c0_189 = arith.constant 0 : index
    %543 = vector.load %arg7[%c39, %c0_189] : memref<81x128xf32, #tpu.memory_space<vmem>>, vector<1x128xf32>
    %544 = vector.shape_cast %543 : vector<1x128xf32> to vector<128xf32>
    %545 = vector.shape_cast %544 : vector<128xf32> to vector<1x1x128xf32>
    %546 = vector.broadcast %545 : vector<1x1x128xf32> to vector<1x16x128xf32>
    %547 = arith.mulf %524, %546 : vector<1x16x128xf32>
    %548 = arith.addf %523, %547 : vector<1x16x128xf32>
    %c4_190 = arith.constant 4 : index
    %c0_191 = arith.constant 0 : index
    %549 = vector.load %arg4[%c4_190, %c0_191] : memref<9x128xf32, #tpu.memory_space<vmem>>, vector<1x128xf32>
    %550 = vector.shape_cast %549 : vector<1x128xf32> to vector<128xf32>
    %551 = vector.shape_cast %550 : vector<128xf32> to vector<1x1x128xf32>
    %552 = vector.broadcast %551 : vector<1x1x128xf32> to vector<1x16x128xf32>
    %553 = arith.mulf %484, %552 : vector<1x16x128xf32>
    %554 = arith.addf %530, %553 : vector<1x16x128xf32>
    %c12_192 = arith.constant 12 : index
    %c0_193 = arith.constant 0 : index
    %555 = vector.load %arg5[%c12_192, %c0_193] : memref<25x128xf32, #tpu.memory_space<vmem>>, vector<1x128xf32>
    %556 = vector.shape_cast %555 : vector<1x128xf32> to vector<128xf32>
    %557 = vector.shape_cast %556 : vector<128xf32> to vector<1x1x128xf32>
    %558 = vector.broadcast %557 : vector<1x1x128xf32> to vector<1x16x128xf32>
    %559 = arith.mulf %484, %558 : vector<1x16x128xf32>
    %560 = arith.addf %536, %559 : vector<1x16x128xf32>
    %c24_194 = arith.constant 24 : index
    %c0_195 = arith.constant 0 : index
    %561 = vector.load %arg6[%c24_194, %c0_195] : memref<49x128xf32, #tpu.memory_space<vmem>>, vector<1x128xf32>
    %562 = vector.shape_cast %561 : vector<1x128xf32> to vector<128xf32>
    %563 = vector.shape_cast %562 : vector<128xf32> to vector<1x1x128xf32>
    %564 = vector.broadcast %563 : vector<1x1x128xf32> to vector<1x16x128xf32>
    %565 = arith.mulf %484, %564 : vector<1x16x128xf32>
    %566 = arith.addf %542, %565 : vector<1x16x128xf32>
    %c40 = arith.constant 40 : index
    %c0_196 = arith.constant 0 : index
    %567 = vector.load %arg7[%c40, %c0_196] : memref<81x128xf32, #tpu.memory_space<vmem>>, vector<1x128xf32>
    %568 = vector.shape_cast %567 : vector<1x128xf32> to vector<128xf32>
    %569 = vector.shape_cast %568 : vector<128xf32> to vector<1x1x128xf32>
    %570 = vector.broadcast %569 : vector<1x1x128xf32> to vector<1x16x128xf32>
    %571 = arith.mulf %484, %570 : vector<1x16x128xf32>
    %572 = arith.addf %548, %571 : vector<1x16x128xf32>
    %c120_i32_197 = arith.constant 120 : i32
    %573 = tpu.dynamic_rotate %484 by %c120_i32_197 dim 2 : vector<1x16x128xf32>, i32 -> vector<1x16x128xf32>
    %c5_198 = arith.constant 5 : index
    %c0_199 = arith.constant 0 : index
    %574 = vector.load %arg4[%c5_198, %c0_199] : memref<9x128xf32, #tpu.memory_space<vmem>>, vector<1x128xf32>
    %575 = vector.shape_cast %574 : vector<1x128xf32> to vector<128xf32>
    %576 = vector.shape_cast %575 : vector<128xf32> to vector<1x1x128xf32>
    %577 = vector.broadcast %576 : vector<1x1x128xf32> to vector<1x16x128xf32>
    %578 = arith.mulf %573, %577 : vector<1x16x128xf32>
    %579 = arith.addf %554, %578 : vector<1x16x128xf32>
    %c13_200 = arith.constant 13 : index
    %c0_201 = arith.constant 0 : index
    %580 = vector.load %arg5[%c13_200, %c0_201] : memref<25x128xf32, #tpu.memory_space<vmem>>, vector<1x128xf32>
    %581 = vector.shape_cast %580 : vector<1x128xf32> to vector<128xf32>
    %582 = vector.shape_cast %581 : vector<128xf32> to vector<1x1x128xf32>
    %583 = vector.broadcast %582 : vector<1x1x128xf32> to vector<1x16x128xf32>
    %584 = arith.mulf %573, %583 : vector<1x16x128xf32>
    %585 = arith.addf %560, %584 : vector<1x16x128xf32>
    %c25_202 = arith.constant 25 : index
    %c0_203 = arith.constant 0 : index
    %586 = vector.load %arg6[%c25_202, %c0_203] : memref<49x128xf32, #tpu.memory_space<vmem>>, vector<1x128xf32>
    %587 = vector.shape_cast %586 : vector<1x128xf32> to vector<128xf32>
    %588 = vector.shape_cast %587 : vector<128xf32> to vector<1x1x128xf32>
    %589 = vector.broadcast %588 : vector<1x1x128xf32> to vector<1x16x128xf32>
    %590 = arith.mulf %573, %589 : vector<1x16x128xf32>
    %591 = arith.addf %566, %590 : vector<1x16x128xf32>
    %c41 = arith.constant 41 : index
    %c0_204 = arith.constant 0 : index
    %592 = vector.load %arg7[%c41, %c0_204] : memref<81x128xf32, #tpu.memory_space<vmem>>, vector<1x128xf32>
    %593 = vector.shape_cast %592 : vector<1x128xf32> to vector<128xf32>
    %594 = vector.shape_cast %593 : vector<128xf32> to vector<1x1x128xf32>
    %595 = vector.broadcast %594 : vector<1x1x128xf32> to vector<1x16x128xf32>
    %596 = arith.mulf %573, %595 : vector<1x16x128xf32>
    %597 = arith.addf %572, %596 : vector<1x16x128xf32>
    %c112_i32_205 = arith.constant 112 : i32
    %598 = tpu.dynamic_rotate %484 by %c112_i32_205 dim 2 : vector<1x16x128xf32>, i32 -> vector<1x16x128xf32>
    %c14_206 = arith.constant 14 : index
    %c0_207 = arith.constant 0 : index
    %599 = vector.load %arg5[%c14_206, %c0_207] : memref<25x128xf32, #tpu.memory_space<vmem>>, vector<1x128xf32>
    %600 = vector.shape_cast %599 : vector<1x128xf32> to vector<128xf32>
    %601 = vector.shape_cast %600 : vector<128xf32> to vector<1x1x128xf32>
    %602 = vector.broadcast %601 : vector<1x1x128xf32> to vector<1x16x128xf32>
    %603 = arith.mulf %598, %602 : vector<1x16x128xf32>
    %604 = arith.addf %585, %603 : vector<1x16x128xf32>
    %c26_208 = arith.constant 26 : index
    %c0_209 = arith.constant 0 : index
    %605 = vector.load %arg6[%c26_208, %c0_209] : memref<49x128xf32, #tpu.memory_space<vmem>>, vector<1x128xf32>
    %606 = vector.shape_cast %605 : vector<1x128xf32> to vector<128xf32>
    %607 = vector.shape_cast %606 : vector<128xf32> to vector<1x1x128xf32>
    %608 = vector.broadcast %607 : vector<1x1x128xf32> to vector<1x16x128xf32>
    %609 = arith.mulf %598, %608 : vector<1x16x128xf32>
    %610 = arith.addf %591, %609 : vector<1x16x128xf32>
    %c42 = arith.constant 42 : index
    %c0_210 = arith.constant 0 : index
    %611 = vector.load %arg7[%c42, %c0_210] : memref<81x128xf32, #tpu.memory_space<vmem>>, vector<1x128xf32>
    %612 = vector.shape_cast %611 : vector<1x128xf32> to vector<128xf32>
    %613 = vector.shape_cast %612 : vector<128xf32> to vector<1x1x128xf32>
    %614 = vector.broadcast %613 : vector<1x1x128xf32> to vector<1x16x128xf32>
    %615 = arith.mulf %598, %614 : vector<1x16x128xf32>
    %616 = arith.addf %597, %615 : vector<1x16x128xf32>
    %c104_i32_211 = arith.constant 104 : i32
    %617 = tpu.dynamic_rotate %484 by %c104_i32_211 dim 2 : vector<1x16x128xf32>, i32 -> vector<1x16x128xf32>
    %c27_212 = arith.constant 27 : index
    %c0_213 = arith.constant 0 : index
    %618 = vector.load %arg6[%c27_212, %c0_213] : memref<49x128xf32, #tpu.memory_space<vmem>>, vector<1x128xf32>
    %619 = vector.shape_cast %618 : vector<1x128xf32> to vector<128xf32>
    %620 = vector.shape_cast %619 : vector<128xf32> to vector<1x1x128xf32>
    %621 = vector.broadcast %620 : vector<1x1x128xf32> to vector<1x16x128xf32>
    %622 = arith.mulf %617, %621 : vector<1x16x128xf32>
    %623 = arith.addf %610, %622 : vector<1x16x128xf32>
    %c43 = arith.constant 43 : index
    %c0_214 = arith.constant 0 : index
    %624 = vector.load %arg7[%c43, %c0_214] : memref<81x128xf32, #tpu.memory_space<vmem>>, vector<1x128xf32>
    %625 = vector.shape_cast %624 : vector<1x128xf32> to vector<128xf32>
    %626 = vector.shape_cast %625 : vector<128xf32> to vector<1x1x128xf32>
    %627 = vector.broadcast %626 : vector<1x1x128xf32> to vector<1x16x128xf32>
    %628 = arith.mulf %617, %627 : vector<1x16x128xf32>
    %629 = arith.addf %616, %628 : vector<1x16x128xf32>
    %c96_i32_215 = arith.constant 96 : i32
    %630 = tpu.dynamic_rotate %484 by %c96_i32_215 dim 2 : vector<1x16x128xf32>, i32 -> vector<1x16x128xf32>
    %c44 = arith.constant 44 : index
    %c0_216 = arith.constant 0 : index
    %631 = vector.load %arg7[%c44, %c0_216] : memref<81x128xf32, #tpu.memory_space<vmem>>, vector<1x128xf32>
    %632 = vector.shape_cast %631 : vector<1x128xf32> to vector<128xf32>
    %633 = vector.shape_cast %632 : vector<128xf32> to vector<1x1x128xf32>
    %634 = vector.broadcast %633 : vector<1x1x128xf32> to vector<1x16x128xf32>
    %635 = arith.mulf %630, %634 : vector<1x16x128xf32>
    %636 = arith.addf %629, %635 : vector<1x16x128xf32>
    %c0_217 = arith.constant 0 : index
    %c5_218 = arith.constant 5 : index
    %c0_219 = arith.constant 0 : index
    %637 = vector.load %arg11[%c0_217, %c5_218, %c0_219] : memref<1x24x128xf32, #tpu.memory_space<vmem>>, vector<1x16x128xf32>
    %c32_i32_220 = arith.constant 32 : i32
    %638 = tpu.dynamic_rotate %637 by %c32_i32_220 dim 2 : vector<1x16x128xf32>, i32 -> vector<1x16x128xf32>
    %c45 = arith.constant 45 : index
    %c0_221 = arith.constant 0 : index
    %639 = vector.load %arg7[%c45, %c0_221] : memref<81x128xf32, #tpu.memory_space<vmem>>, vector<1x128xf32>
    %640 = vector.shape_cast %639 : vector<1x128xf32> to vector<128xf32>
    %641 = vector.shape_cast %640 : vector<128xf32> to vector<1x1x128xf32>
    %642 = vector.broadcast %641 : vector<1x1x128xf32> to vector<1x16x128xf32>
    %643 = arith.mulf %638, %642 : vector<1x16x128xf32>
    %644 = arith.addf %636, %643 : vector<1x16x128xf32>
    %c24_i32_222 = arith.constant 24 : i32
    %645 = tpu.dynamic_rotate %637 by %c24_i32_222 dim 2 : vector<1x16x128xf32>, i32 -> vector<1x16x128xf32>
    %c28_223 = arith.constant 28 : index
    %c0_224 = arith.constant 0 : index
    %646 = vector.load %arg6[%c28_223, %c0_224] : memref<49x128xf32, #tpu.memory_space<vmem>>, vector<1x128xf32>
    %647 = vector.shape_cast %646 : vector<1x128xf32> to vector<128xf32>
    %648 = vector.shape_cast %647 : vector<128xf32> to vector<1x1x128xf32>
    %649 = vector.broadcast %648 : vector<1x1x128xf32> to vector<1x16x128xf32>
    %650 = arith.mulf %645, %649 : vector<1x16x128xf32>
    %651 = arith.addf %623, %650 : vector<1x16x128xf32>
    %c46 = arith.constant 46 : index
    %c0_225 = arith.constant 0 : index
    %652 = vector.load %arg7[%c46, %c0_225] : memref<81x128xf32, #tpu.memory_space<vmem>>, vector<1x128xf32>
    %653 = vector.shape_cast %652 : vector<1x128xf32> to vector<128xf32>
    %654 = vector.shape_cast %653 : vector<128xf32> to vector<1x1x128xf32>
    %655 = vector.broadcast %654 : vector<1x1x128xf32> to vector<1x16x128xf32>
    %656 = arith.mulf %645, %655 : vector<1x16x128xf32>
    %657 = arith.addf %644, %656 : vector<1x16x128xf32>
    %c16_i32_226 = arith.constant 16 : i32
    %658 = tpu.dynamic_rotate %637 by %c16_i32_226 dim 2 : vector<1x16x128xf32>, i32 -> vector<1x16x128xf32>
    %c15_227 = arith.constant 15 : index
    %c0_228 = arith.constant 0 : index
    %659 = vector.load %arg5[%c15_227, %c0_228] : memref<25x128xf32, #tpu.memory_space<vmem>>, vector<1x128xf32>
    %660 = vector.shape_cast %659 : vector<1x128xf32> to vector<128xf32>
    %661 = vector.shape_cast %660 : vector<128xf32> to vector<1x1x128xf32>
    %662 = vector.broadcast %661 : vector<1x1x128xf32> to vector<1x16x128xf32>
    %663 = arith.mulf %658, %662 : vector<1x16x128xf32>
    %664 = arith.addf %604, %663 : vector<1x16x128xf32>
    %c29_229 = arith.constant 29 : index
    %c0_230 = arith.constant 0 : index
    %665 = vector.load %arg6[%c29_229, %c0_230] : memref<49x128xf32, #tpu.memory_space<vmem>>, vector<1x128xf32>
    %666 = vector.shape_cast %665 : vector<1x128xf32> to vector<128xf32>
    %667 = vector.shape_cast %666 : vector<128xf32> to vector<1x1x128xf32>
    %668 = vector.broadcast %667 : vector<1x1x128xf32> to vector<1x16x128xf32>
    %669 = arith.mulf %658, %668 : vector<1x16x128xf32>
    %670 = arith.addf %651, %669 : vector<1x16x128xf32>
    %c47 = arith.constant 47 : index
    %c0_231 = arith.constant 0 : index
    %671 = vector.load %arg7[%c47, %c0_231] : memref<81x128xf32, #tpu.memory_space<vmem>>, vector<1x128xf32>
    %672 = vector.shape_cast %671 : vector<1x128xf32> to vector<128xf32>
    %673 = vector.shape_cast %672 : vector<128xf32> to vector<1x1x128xf32>
    %674 = vector.broadcast %673 : vector<1x1x128xf32> to vector<1x16x128xf32>
    %675 = arith.mulf %658, %674 : vector<1x16x128xf32>
    %676 = arith.addf %657, %675 : vector<1x16x128xf32>
    %c8_i32_232 = arith.constant 8 : i32
    %677 = tpu.dynamic_rotate %637 by %c8_i32_232 dim 2 : vector<1x16x128xf32>, i32 -> vector<1x16x128xf32>
    %c6_233 = arith.constant 6 : index
    %c0_234 = arith.constant 0 : index
    %678 = vector.load %arg4[%c6_233, %c0_234] : memref<9x128xf32, #tpu.memory_space<vmem>>, vector<1x128xf32>
    %679 = vector.shape_cast %678 : vector<1x128xf32> to vector<128xf32>
    %680 = vector.shape_cast %679 : vector<128xf32> to vector<1x1x128xf32>
    %681 = vector.broadcast %680 : vector<1x1x128xf32> to vector<1x16x128xf32>
    %682 = arith.mulf %677, %681 : vector<1x16x128xf32>
    %683 = arith.addf %579, %682 : vector<1x16x128xf32>
    %c16_235 = arith.constant 16 : index
    %c0_236 = arith.constant 0 : index
    %684 = vector.load %arg5[%c16_235, %c0_236] : memref<25x128xf32, #tpu.memory_space<vmem>>, vector<1x128xf32>
    %685 = vector.shape_cast %684 : vector<1x128xf32> to vector<128xf32>
    %686 = vector.shape_cast %685 : vector<128xf32> to vector<1x1x128xf32>
    %687 = vector.broadcast %686 : vector<1x1x128xf32> to vector<1x16x128xf32>
    %688 = arith.mulf %677, %687 : vector<1x16x128xf32>
    %689 = arith.addf %664, %688 : vector<1x16x128xf32>
    %c30_237 = arith.constant 30 : index
    %c0_238 = arith.constant 0 : index
    %690 = vector.load %arg6[%c30_237, %c0_238] : memref<49x128xf32, #tpu.memory_space<vmem>>, vector<1x128xf32>
    %691 = vector.shape_cast %690 : vector<1x128xf32> to vector<128xf32>
    %692 = vector.shape_cast %691 : vector<128xf32> to vector<1x1x128xf32>
    %693 = vector.broadcast %692 : vector<1x1x128xf32> to vector<1x16x128xf32>
    %694 = arith.mulf %677, %693 : vector<1x16x128xf32>
    %695 = arith.addf %670, %694 : vector<1x16x128xf32>
    %c48 = arith.constant 48 : index
    %c0_239 = arith.constant 0 : index
    %696 = vector.load %arg7[%c48, %c0_239] : memref<81x128xf32, #tpu.memory_space<vmem>>, vector<1x128xf32>
    %697 = vector.shape_cast %696 : vector<1x128xf32> to vector<128xf32>
    %698 = vector.shape_cast %697 : vector<128xf32> to vector<1x1x128xf32>
    %699 = vector.broadcast %698 : vector<1x1x128xf32> to vector<1x16x128xf32>
    %700 = arith.mulf %677, %699 : vector<1x16x128xf32>
    %701 = arith.addf %676, %700 : vector<1x16x128xf32>
    %c7_240 = arith.constant 7 : index
    %c0_241 = arith.constant 0 : index
    %702 = vector.load %arg4[%c7_240, %c0_241] : memref<9x128xf32, #tpu.memory_space<vmem>>, vector<1x128xf32>
    %703 = vector.shape_cast %702 : vector<1x128xf32> to vector<128xf32>
    %704 = vector.shape_cast %703 : vector<128xf32> to vector<1x1x128xf32>
    %705 = vector.broadcast %704 : vector<1x1x128xf32> to vector<1x16x128xf32>
    %706 = arith.mulf %637, %705 : vector<1x16x128xf32>
    %707 = arith.addf %683, %706 : vector<1x16x128xf32>
    %c17_242 = arith.constant 17 : index
    %c0_243 = arith.constant 0 : index
    %708 = vector.load %arg5[%c17_242, %c0_243] : memref<25x128xf32, #tpu.memory_space<vmem>>, vector<1x128xf32>
    %709 = vector.shape_cast %708 : vector<1x128xf32> to vector<128xf32>
    %710 = vector.shape_cast %709 : vector<128xf32> to vector<1x1x128xf32>
    %711 = vector.broadcast %710 : vector<1x1x128xf32> to vector<1x16x128xf32>
    %712 = arith.mulf %637, %711 : vector<1x16x128xf32>
    %713 = arith.addf %689, %712 : vector<1x16x128xf32>
    %c31_244 = arith.constant 31 : index
    %c0_245 = arith.constant 0 : index
    %714 = vector.load %arg6[%c31_244, %c0_245] : memref<49x128xf32, #tpu.memory_space<vmem>>, vector<1x128xf32>
    %715 = vector.shape_cast %714 : vector<1x128xf32> to vector<128xf32>
    %716 = vector.shape_cast %715 : vector<128xf32> to vector<1x1x128xf32>
    %717 = vector.broadcast %716 : vector<1x1x128xf32> to vector<1x16x128xf32>
    %718 = arith.mulf %637, %717 : vector<1x16x128xf32>
    %719 = arith.addf %695, %718 : vector<1x16x128xf32>
    %c49 = arith.constant 49 : index
    %c0_246 = arith.constant 0 : index
    %720 = vector.load %arg7[%c49, %c0_246] : memref<81x128xf32, #tpu.memory_space<vmem>>, vector<1x128xf32>
    %721 = vector.shape_cast %720 : vector<1x128xf32> to vector<128xf32>
    %722 = vector.shape_cast %721 : vector<128xf32> to vector<1x1x128xf32>
    %723 = vector.broadcast %722 : vector<1x1x128xf32> to vector<1x16x128xf32>
    %724 = arith.mulf %637, %723 : vector<1x16x128xf32>
    %725 = arith.addf %701, %724 : vector<1x16x128xf32>
    %c120_i32_247 = arith.constant 120 : i32
    %726 = tpu.dynamic_rotate %637 by %c120_i32_247 dim 2 : vector<1x16x128xf32>, i32 -> vector<1x16x128xf32>
    %c8_248 = arith.constant 8 : index
    %c0_249 = arith.constant 0 : index
    %727 = vector.load %arg4[%c8_248, %c0_249] : memref<9x128xf32, #tpu.memory_space<vmem>>, vector<1x128xf32>
    %728 = vector.shape_cast %727 : vector<1x128xf32> to vector<128xf32>
    %729 = vector.shape_cast %728 : vector<128xf32> to vector<1x1x128xf32>
    %730 = vector.broadcast %729 : vector<1x1x128xf32> to vector<1x16x128xf32>
    %731 = arith.mulf %726, %730 : vector<1x16x128xf32>
    %732 = arith.addf %707, %731 : vector<1x16x128xf32>
    %c18_250 = arith.constant 18 : index
    %c0_251 = arith.constant 0 : index
    %733 = vector.load %arg5[%c18_250, %c0_251] : memref<25x128xf32, #tpu.memory_space<vmem>>, vector<1x128xf32>
    %734 = vector.shape_cast %733 : vector<1x128xf32> to vector<128xf32>
    %735 = vector.shape_cast %734 : vector<128xf32> to vector<1x1x128xf32>
    %736 = vector.broadcast %735 : vector<1x1x128xf32> to vector<1x16x128xf32>
    %737 = arith.mulf %726, %736 : vector<1x16x128xf32>
    %738 = arith.addf %713, %737 : vector<1x16x128xf32>
    %c32_252 = arith.constant 32 : index
    %c0_253 = arith.constant 0 : index
    %739 = vector.load %arg6[%c32_252, %c0_253] : memref<49x128xf32, #tpu.memory_space<vmem>>, vector<1x128xf32>
    %740 = vector.shape_cast %739 : vector<1x128xf32> to vector<128xf32>
    %741 = vector.shape_cast %740 : vector<128xf32> to vector<1x1x128xf32>
    %742 = vector.broadcast %741 : vector<1x1x128xf32> to vector<1x16x128xf32>
    %743 = arith.mulf %726, %742 : vector<1x16x128xf32>
    %744 = arith.addf %719, %743 : vector<1x16x128xf32>
    %c50 = arith.constant 50 : index
    %c0_254 = arith.constant 0 : index
    %745 = vector.load %arg7[%c50, %c0_254] : memref<81x128xf32, #tpu.memory_space<vmem>>, vector<1x128xf32>
    %746 = vector.shape_cast %745 : vector<1x128xf32> to vector<128xf32>
    %747 = vector.shape_cast %746 : vector<128xf32> to vector<1x1x128xf32>
    %748 = vector.broadcast %747 : vector<1x1x128xf32> to vector<1x16x128xf32>
    %749 = arith.mulf %726, %748 : vector<1x16x128xf32>
    %750 = arith.addf %725, %749 : vector<1x16x128xf32>
    %c112_i32_255 = arith.constant 112 : i32
    %751 = tpu.dynamic_rotate %637 by %c112_i32_255 dim 2 : vector<1x16x128xf32>, i32 -> vector<1x16x128xf32>
    %c19_256 = arith.constant 19 : index
    %c0_257 = arith.constant 0 : index
    %752 = vector.load %arg5[%c19_256, %c0_257] : memref<25x128xf32, #tpu.memory_space<vmem>>, vector<1x128xf32>
    %753 = vector.shape_cast %752 : vector<1x128xf32> to vector<128xf32>
    %754 = vector.shape_cast %753 : vector<128xf32> to vector<1x1x128xf32>
    %755 = vector.broadcast %754 : vector<1x1x128xf32> to vector<1x16x128xf32>
    %756 = arith.mulf %751, %755 : vector<1x16x128xf32>
    %757 = arith.addf %738, %756 : vector<1x16x128xf32>
    %c33_258 = arith.constant 33 : index
    %c0_259 = arith.constant 0 : index
    %758 = vector.load %arg6[%c33_258, %c0_259] : memref<49x128xf32, #tpu.memory_space<vmem>>, vector<1x128xf32>
    %759 = vector.shape_cast %758 : vector<1x128xf32> to vector<128xf32>
    %760 = vector.shape_cast %759 : vector<128xf32> to vector<1x1x128xf32>
    %761 = vector.broadcast %760 : vector<1x1x128xf32> to vector<1x16x128xf32>
    %762 = arith.mulf %751, %761 : vector<1x16x128xf32>
    %763 = arith.addf %744, %762 : vector<1x16x128xf32>
    %c51 = arith.constant 51 : index
    %c0_260 = arith.constant 0 : index
    %764 = vector.load %arg7[%c51, %c0_260] : memref<81x128xf32, #tpu.memory_space<vmem>>, vector<1x128xf32>
    %765 = vector.shape_cast %764 : vector<1x128xf32> to vector<128xf32>
    %766 = vector.shape_cast %765 : vector<128xf32> to vector<1x1x128xf32>
    %767 = vector.broadcast %766 : vector<1x1x128xf32> to vector<1x16x128xf32>
    %768 = arith.mulf %751, %767 : vector<1x16x128xf32>
    %769 = arith.addf %750, %768 : vector<1x16x128xf32>
    %c104_i32_261 = arith.constant 104 : i32
    %770 = tpu.dynamic_rotate %637 by %c104_i32_261 dim 2 : vector<1x16x128xf32>, i32 -> vector<1x16x128xf32>
    %c34_262 = arith.constant 34 : index
    %c0_263 = arith.constant 0 : index
    %771 = vector.load %arg6[%c34_262, %c0_263] : memref<49x128xf32, #tpu.memory_space<vmem>>, vector<1x128xf32>
    %772 = vector.shape_cast %771 : vector<1x128xf32> to vector<128xf32>
    %773 = vector.shape_cast %772 : vector<128xf32> to vector<1x1x128xf32>
    %774 = vector.broadcast %773 : vector<1x1x128xf32> to vector<1x16x128xf32>
    %775 = arith.mulf %770, %774 : vector<1x16x128xf32>
    %776 = arith.addf %763, %775 : vector<1x16x128xf32>
    %c52 = arith.constant 52 : index
    %c0_264 = arith.constant 0 : index
    %777 = vector.load %arg7[%c52, %c0_264] : memref<81x128xf32, #tpu.memory_space<vmem>>, vector<1x128xf32>
    %778 = vector.shape_cast %777 : vector<1x128xf32> to vector<128xf32>
    %779 = vector.shape_cast %778 : vector<128xf32> to vector<1x1x128xf32>
    %780 = vector.broadcast %779 : vector<1x1x128xf32> to vector<1x16x128xf32>
    %781 = arith.mulf %770, %780 : vector<1x16x128xf32>
    %782 = arith.addf %769, %781 : vector<1x16x128xf32>
    %c96_i32_265 = arith.constant 96 : i32
    %783 = tpu.dynamic_rotate %637 by %c96_i32_265 dim 2 : vector<1x16x128xf32>, i32 -> vector<1x16x128xf32>
    %c53 = arith.constant 53 : index
    %c0_266 = arith.constant 0 : index
    %784 = vector.load %arg7[%c53, %c0_266] : memref<81x128xf32, #tpu.memory_space<vmem>>, vector<1x128xf32>
    %785 = vector.shape_cast %784 : vector<1x128xf32> to vector<128xf32>
    %786 = vector.shape_cast %785 : vector<128xf32> to vector<1x1x128xf32>
    %787 = vector.broadcast %786 : vector<1x1x128xf32> to vector<1x16x128xf32>
    %788 = arith.mulf %783, %787 : vector<1x16x128xf32>
    %789 = arith.addf %782, %788 : vector<1x16x128xf32>
    %c0_267 = arith.constant 0 : index
    %c6_268 = arith.constant 6 : index
    %c0_269 = arith.constant 0 : index
    %790 = vector.load %arg11[%c0_267, %c6_268, %c0_269] : memref<1x24x128xf32, #tpu.memory_space<vmem>>, vector<1x16x128xf32>
    %c32_i32_270 = arith.constant 32 : i32
    %791 = tpu.dynamic_rotate %790 by %c32_i32_270 dim 2 : vector<1x16x128xf32>, i32 -> vector<1x16x128xf32>
    %c54 = arith.constant 54 : index
    %c0_271 = arith.constant 0 : index
    %792 = vector.load %arg7[%c54, %c0_271] : memref<81x128xf32, #tpu.memory_space<vmem>>, vector<1x128xf32>
    %793 = vector.shape_cast %792 : vector<1x128xf32> to vector<128xf32>
    %794 = vector.shape_cast %793 : vector<128xf32> to vector<1x1x128xf32>
    %795 = vector.broadcast %794 : vector<1x1x128xf32> to vector<1x16x128xf32>
    %796 = arith.mulf %791, %795 : vector<1x16x128xf32>
    %797 = arith.addf %789, %796 : vector<1x16x128xf32>
    %c24_i32_272 = arith.constant 24 : i32
    %798 = tpu.dynamic_rotate %790 by %c24_i32_272 dim 2 : vector<1x16x128xf32>, i32 -> vector<1x16x128xf32>
    %c35_273 = arith.constant 35 : index
    %c0_274 = arith.constant 0 : index
    %799 = vector.load %arg6[%c35_273, %c0_274] : memref<49x128xf32, #tpu.memory_space<vmem>>, vector<1x128xf32>
    %800 = vector.shape_cast %799 : vector<1x128xf32> to vector<128xf32>
    %801 = vector.shape_cast %800 : vector<128xf32> to vector<1x1x128xf32>
    %802 = vector.broadcast %801 : vector<1x1x128xf32> to vector<1x16x128xf32>
    %803 = arith.mulf %798, %802 : vector<1x16x128xf32>
    %804 = arith.addf %776, %803 : vector<1x16x128xf32>
    %c55 = arith.constant 55 : index
    %c0_275 = arith.constant 0 : index
    %805 = vector.load %arg7[%c55, %c0_275] : memref<81x128xf32, #tpu.memory_space<vmem>>, vector<1x128xf32>
    %806 = vector.shape_cast %805 : vector<1x128xf32> to vector<128xf32>
    %807 = vector.shape_cast %806 : vector<128xf32> to vector<1x1x128xf32>
    %808 = vector.broadcast %807 : vector<1x1x128xf32> to vector<1x16x128xf32>
    %809 = arith.mulf %798, %808 : vector<1x16x128xf32>
    %810 = arith.addf %797, %809 : vector<1x16x128xf32>
    %c16_i32_276 = arith.constant 16 : i32
    %811 = tpu.dynamic_rotate %790 by %c16_i32_276 dim 2 : vector<1x16x128xf32>, i32 -> vector<1x16x128xf32>
    %c20_277 = arith.constant 20 : index
    %c0_278 = arith.constant 0 : index
    %812 = vector.load %arg5[%c20_277, %c0_278] : memref<25x128xf32, #tpu.memory_space<vmem>>, vector<1x128xf32>
    %813 = vector.shape_cast %812 : vector<1x128xf32> to vector<128xf32>
    %814 = vector.shape_cast %813 : vector<128xf32> to vector<1x1x128xf32>
    %815 = vector.broadcast %814 : vector<1x1x128xf32> to vector<1x16x128xf32>
    %816 = arith.mulf %811, %815 : vector<1x16x128xf32>
    %817 = arith.addf %757, %816 : vector<1x16x128xf32>
    %c36_279 = arith.constant 36 : index
    %c0_280 = arith.constant 0 : index
    %818 = vector.load %arg6[%c36_279, %c0_280] : memref<49x128xf32, #tpu.memory_space<vmem>>, vector<1x128xf32>
    %819 = vector.shape_cast %818 : vector<1x128xf32> to vector<128xf32>
    %820 = vector.shape_cast %819 : vector<128xf32> to vector<1x1x128xf32>
    %821 = vector.broadcast %820 : vector<1x1x128xf32> to vector<1x16x128xf32>
    %822 = arith.mulf %811, %821 : vector<1x16x128xf32>
    %823 = arith.addf %804, %822 : vector<1x16x128xf32>
    %c56 = arith.constant 56 : index
    %c0_281 = arith.constant 0 : index
    %824 = vector.load %arg7[%c56, %c0_281] : memref<81x128xf32, #tpu.memory_space<vmem>>, vector<1x128xf32>
    %825 = vector.shape_cast %824 : vector<1x128xf32> to vector<128xf32>
    %826 = vector.shape_cast %825 : vector<128xf32> to vector<1x1x128xf32>
    %827 = vector.broadcast %826 : vector<1x1x128xf32> to vector<1x16x128xf32>
    %828 = arith.mulf %811, %827 : vector<1x16x128xf32>
    %829 = arith.addf %810, %828 : vector<1x16x128xf32>
    %c8_i32_282 = arith.constant 8 : i32
    %830 = tpu.dynamic_rotate %790 by %c8_i32_282 dim 2 : vector<1x16x128xf32>, i32 -> vector<1x16x128xf32>
    %c21_283 = arith.constant 21 : index
    %c0_284 = arith.constant 0 : index
    %831 = vector.load %arg5[%c21_283, %c0_284] : memref<25x128xf32, #tpu.memory_space<vmem>>, vector<1x128xf32>
    %832 = vector.shape_cast %831 : vector<1x128xf32> to vector<128xf32>
    %833 = vector.shape_cast %832 : vector<128xf32> to vector<1x1x128xf32>
    %834 = vector.broadcast %833 : vector<1x1x128xf32> to vector<1x16x128xf32>
    %835 = arith.mulf %830, %834 : vector<1x16x128xf32>
    %836 = arith.addf %817, %835 : vector<1x16x128xf32>
    %c37_285 = arith.constant 37 : index
    %c0_286 = arith.constant 0 : index
    %837 = vector.load %arg6[%c37_285, %c0_286] : memref<49x128xf32, #tpu.memory_space<vmem>>, vector<1x128xf32>
    %838 = vector.shape_cast %837 : vector<1x128xf32> to vector<128xf32>
    %839 = vector.shape_cast %838 : vector<128xf32> to vector<1x1x128xf32>
    %840 = vector.broadcast %839 : vector<1x1x128xf32> to vector<1x16x128xf32>
    %841 = arith.mulf %830, %840 : vector<1x16x128xf32>
    %842 = arith.addf %823, %841 : vector<1x16x128xf32>
    %c57 = arith.constant 57 : index
    %c0_287 = arith.constant 0 : index
    %843 = vector.load %arg7[%c57, %c0_287] : memref<81x128xf32, #tpu.memory_space<vmem>>, vector<1x128xf32>
    %844 = vector.shape_cast %843 : vector<1x128xf32> to vector<128xf32>
    %845 = vector.shape_cast %844 : vector<128xf32> to vector<1x1x128xf32>
    %846 = vector.broadcast %845 : vector<1x1x128xf32> to vector<1x16x128xf32>
    %847 = arith.mulf %830, %846 : vector<1x16x128xf32>
    %848 = arith.addf %829, %847 : vector<1x16x128xf32>
    %c22_288 = arith.constant 22 : index
    %c0_289 = arith.constant 0 : index
    %849 = vector.load %arg5[%c22_288, %c0_289] : memref<25x128xf32, #tpu.memory_space<vmem>>, vector<1x128xf32>
    %850 = vector.shape_cast %849 : vector<1x128xf32> to vector<128xf32>
    %851 = vector.shape_cast %850 : vector<128xf32> to vector<1x1x128xf32>
    %852 = vector.broadcast %851 : vector<1x1x128xf32> to vector<1x16x128xf32>
    %853 = arith.mulf %790, %852 : vector<1x16x128xf32>
    %854 = arith.addf %836, %853 : vector<1x16x128xf32>
    %c38_290 = arith.constant 38 : index
    %c0_291 = arith.constant 0 : index
    %855 = vector.load %arg6[%c38_290, %c0_291] : memref<49x128xf32, #tpu.memory_space<vmem>>, vector<1x128xf32>
    %856 = vector.shape_cast %855 : vector<1x128xf32> to vector<128xf32>
    %857 = vector.shape_cast %856 : vector<128xf32> to vector<1x1x128xf32>
    %858 = vector.broadcast %857 : vector<1x1x128xf32> to vector<1x16x128xf32>
    %859 = arith.mulf %790, %858 : vector<1x16x128xf32>
    %860 = arith.addf %842, %859 : vector<1x16x128xf32>
    %c58 = arith.constant 58 : index
    %c0_292 = arith.constant 0 : index
    %861 = vector.load %arg7[%c58, %c0_292] : memref<81x128xf32, #tpu.memory_space<vmem>>, vector<1x128xf32>
    %862 = vector.shape_cast %861 : vector<1x128xf32> to vector<128xf32>
    %863 = vector.shape_cast %862 : vector<128xf32> to vector<1x1x128xf32>
    %864 = vector.broadcast %863 : vector<1x1x128xf32> to vector<1x16x128xf32>
    %865 = arith.mulf %790, %864 : vector<1x16x128xf32>
    %866 = arith.addf %848, %865 : vector<1x16x128xf32>
    %c120_i32_293 = arith.constant 120 : i32
    %867 = tpu.dynamic_rotate %790 by %c120_i32_293 dim 2 : vector<1x16x128xf32>, i32 -> vector<1x16x128xf32>
    %c23_294 = arith.constant 23 : index
    %c0_295 = arith.constant 0 : index
    %868 = vector.load %arg5[%c23_294, %c0_295] : memref<25x128xf32, #tpu.memory_space<vmem>>, vector<1x128xf32>
    %869 = vector.shape_cast %868 : vector<1x128xf32> to vector<128xf32>
    %870 = vector.shape_cast %869 : vector<128xf32> to vector<1x1x128xf32>
    %871 = vector.broadcast %870 : vector<1x1x128xf32> to vector<1x16x128xf32>
    %872 = arith.mulf %867, %871 : vector<1x16x128xf32>
    %873 = arith.addf %854, %872 : vector<1x16x128xf32>
    %c39_296 = arith.constant 39 : index
    %c0_297 = arith.constant 0 : index
    %874 = vector.load %arg6[%c39_296, %c0_297] : memref<49x128xf32, #tpu.memory_space<vmem>>, vector<1x128xf32>
    %875 = vector.shape_cast %874 : vector<1x128xf32> to vector<128xf32>
    %876 = vector.shape_cast %875 : vector<128xf32> to vector<1x1x128xf32>
    %877 = vector.broadcast %876 : vector<1x1x128xf32> to vector<1x16x128xf32>
    %878 = arith.mulf %867, %877 : vector<1x16x128xf32>
    %879 = arith.addf %860, %878 : vector<1x16x128xf32>
    %c59 = arith.constant 59 : index
    %c0_298 = arith.constant 0 : index
    %880 = vector.load %arg7[%c59, %c0_298] : memref<81x128xf32, #tpu.memory_space<vmem>>, vector<1x128xf32>
    %881 = vector.shape_cast %880 : vector<1x128xf32> to vector<128xf32>
    %882 = vector.shape_cast %881 : vector<128xf32> to vector<1x1x128xf32>
    %883 = vector.broadcast %882 : vector<1x1x128xf32> to vector<1x16x128xf32>
    %884 = arith.mulf %867, %883 : vector<1x16x128xf32>
    %885 = arith.addf %866, %884 : vector<1x16x128xf32>
    %c112_i32_299 = arith.constant 112 : i32
    %886 = tpu.dynamic_rotate %790 by %c112_i32_299 dim 2 : vector<1x16x128xf32>, i32 -> vector<1x16x128xf32>
    %c24_300 = arith.constant 24 : index
    %c0_301 = arith.constant 0 : index
    %887 = vector.load %arg5[%c24_300, %c0_301] : memref<25x128xf32, #tpu.memory_space<vmem>>, vector<1x128xf32>
    %888 = vector.shape_cast %887 : vector<1x128xf32> to vector<128xf32>
    %889 = vector.shape_cast %888 : vector<128xf32> to vector<1x1x128xf32>
    %890 = vector.broadcast %889 : vector<1x1x128xf32> to vector<1x16x128xf32>
    %891 = arith.mulf %886, %890 : vector<1x16x128xf32>
    %892 = arith.addf %873, %891 : vector<1x16x128xf32>
    %c40_302 = arith.constant 40 : index
    %c0_303 = arith.constant 0 : index
    %893 = vector.load %arg6[%c40_302, %c0_303] : memref<49x128xf32, #tpu.memory_space<vmem>>, vector<1x128xf32>
    %894 = vector.shape_cast %893 : vector<1x128xf32> to vector<128xf32>
    %895 = vector.shape_cast %894 : vector<128xf32> to vector<1x1x128xf32>
    %896 = vector.broadcast %895 : vector<1x1x128xf32> to vector<1x16x128xf32>
    %897 = arith.mulf %886, %896 : vector<1x16x128xf32>
    %898 = arith.addf %879, %897 : vector<1x16x128xf32>
    %c60 = arith.constant 60 : index
    %c0_304 = arith.constant 0 : index
    %899 = vector.load %arg7[%c60, %c0_304] : memref<81x128xf32, #tpu.memory_space<vmem>>, vector<1x128xf32>
    %900 = vector.shape_cast %899 : vector<1x128xf32> to vector<128xf32>
    %901 = vector.shape_cast %900 : vector<128xf32> to vector<1x1x128xf32>
    %902 = vector.broadcast %901 : vector<1x1x128xf32> to vector<1x16x128xf32>
    %903 = arith.mulf %886, %902 : vector<1x16x128xf32>
    %904 = arith.addf %885, %903 : vector<1x16x128xf32>
    %c104_i32_305 = arith.constant 104 : i32
    %905 = tpu.dynamic_rotate %790 by %c104_i32_305 dim 2 : vector<1x16x128xf32>, i32 -> vector<1x16x128xf32>
    %c41_306 = arith.constant 41 : index
    %c0_307 = arith.constant 0 : index
    %906 = vector.load %arg6[%c41_306, %c0_307] : memref<49x128xf32, #tpu.memory_space<vmem>>, vector<1x128xf32>
    %907 = vector.shape_cast %906 : vector<1x128xf32> to vector<128xf32>
    %908 = vector.shape_cast %907 : vector<128xf32> to vector<1x1x128xf32>
    %909 = vector.broadcast %908 : vector<1x1x128xf32> to vector<1x16x128xf32>
    %910 = arith.mulf %905, %909 : vector<1x16x128xf32>
    %911 = arith.addf %898, %910 : vector<1x16x128xf32>
    %c61 = arith.constant 61 : index
    %c0_308 = arith.constant 0 : index
    %912 = vector.load %arg7[%c61, %c0_308] : memref<81x128xf32, #tpu.memory_space<vmem>>, vector<1x128xf32>
    %913 = vector.shape_cast %912 : vector<1x128xf32> to vector<128xf32>
    %914 = vector.shape_cast %913 : vector<128xf32> to vector<1x1x128xf32>
    %915 = vector.broadcast %914 : vector<1x1x128xf32> to vector<1x16x128xf32>
    %916 = arith.mulf %905, %915 : vector<1x16x128xf32>
    %917 = arith.addf %904, %916 : vector<1x16x128xf32>
    %c96_i32_309 = arith.constant 96 : i32
    %918 = tpu.dynamic_rotate %790 by %c96_i32_309 dim 2 : vector<1x16x128xf32>, i32 -> vector<1x16x128xf32>
    %c62 = arith.constant 62 : index
    %c0_310 = arith.constant 0 : index
    %919 = vector.load %arg7[%c62, %c0_310] : memref<81x128xf32, #tpu.memory_space<vmem>>, vector<1x128xf32>
    %920 = vector.shape_cast %919 : vector<1x128xf32> to vector<128xf32>
    %921 = vector.shape_cast %920 : vector<128xf32> to vector<1x1x128xf32>
    %922 = vector.broadcast %921 : vector<1x1x128xf32> to vector<1x16x128xf32>
    %923 = arith.mulf %918, %922 : vector<1x16x128xf32>
    %924 = arith.addf %917, %923 : vector<1x16x128xf32>
    %c0_311 = arith.constant 0 : index
    %c7_312 = arith.constant 7 : index
    %c0_313 = arith.constant 0 : index
    %925 = vector.load %arg11[%c0_311, %c7_312, %c0_313] : memref<1x24x128xf32, #tpu.memory_space<vmem>>, vector<1x16x128xf32>
    %c32_i32_314 = arith.constant 32 : i32
    %926 = tpu.dynamic_rotate %925 by %c32_i32_314 dim 2 : vector<1x16x128xf32>, i32 -> vector<1x16x128xf32>
    %c63 = arith.constant 63 : index
    %c0_315 = arith.constant 0 : index
    %927 = vector.load %arg7[%c63, %c0_315] : memref<81x128xf32, #tpu.memory_space<vmem>>, vector<1x128xf32>
    %928 = vector.shape_cast %927 : vector<1x128xf32> to vector<128xf32>
    %929 = vector.shape_cast %928 : vector<128xf32> to vector<1x1x128xf32>
    %930 = vector.broadcast %929 : vector<1x1x128xf32> to vector<1x16x128xf32>
    %931 = arith.mulf %926, %930 : vector<1x16x128xf32>
    %932 = arith.addf %924, %931 : vector<1x16x128xf32>
    %c24_i32_316 = arith.constant 24 : i32
    %933 = tpu.dynamic_rotate %925 by %c24_i32_316 dim 2 : vector<1x16x128xf32>, i32 -> vector<1x16x128xf32>
    %c42_317 = arith.constant 42 : index
    %c0_318 = arith.constant 0 : index
    %934 = vector.load %arg6[%c42_317, %c0_318] : memref<49x128xf32, #tpu.memory_space<vmem>>, vector<1x128xf32>
    %935 = vector.shape_cast %934 : vector<1x128xf32> to vector<128xf32>
    %936 = vector.shape_cast %935 : vector<128xf32> to vector<1x1x128xf32>
    %937 = vector.broadcast %936 : vector<1x1x128xf32> to vector<1x16x128xf32>
    %938 = arith.mulf %933, %937 : vector<1x16x128xf32>
    %939 = arith.addf %911, %938 : vector<1x16x128xf32>
    %c64 = arith.constant 64 : index
    %c0_319 = arith.constant 0 : index
    %940 = vector.load %arg7[%c64, %c0_319] : memref<81x128xf32, #tpu.memory_space<vmem>>, vector<1x128xf32>
    %941 = vector.shape_cast %940 : vector<1x128xf32> to vector<128xf32>
    %942 = vector.shape_cast %941 : vector<128xf32> to vector<1x1x128xf32>
    %943 = vector.broadcast %942 : vector<1x1x128xf32> to vector<1x16x128xf32>
    %944 = arith.mulf %933, %943 : vector<1x16x128xf32>
    %945 = arith.addf %932, %944 : vector<1x16x128xf32>
    %c16_i32_320 = arith.constant 16 : i32
    %946 = tpu.dynamic_rotate %925 by %c16_i32_320 dim 2 : vector<1x16x128xf32>, i32 -> vector<1x16x128xf32>
    %c43_321 = arith.constant 43 : index
    %c0_322 = arith.constant 0 : index
    %947 = vector.load %arg6[%c43_321, %c0_322] : memref<49x128xf32, #tpu.memory_space<vmem>>, vector<1x128xf32>
    %948 = vector.shape_cast %947 : vector<1x128xf32> to vector<128xf32>
    %949 = vector.shape_cast %948 : vector<128xf32> to vector<1x1x128xf32>
    %950 = vector.broadcast %949 : vector<1x1x128xf32> to vector<1x16x128xf32>
    %951 = arith.mulf %946, %950 : vector<1x16x128xf32>
    %952 = arith.addf %939, %951 : vector<1x16x128xf32>
    %c65 = arith.constant 65 : index
    %c0_323 = arith.constant 0 : index
    %953 = vector.load %arg7[%c65, %c0_323] : memref<81x128xf32, #tpu.memory_space<vmem>>, vector<1x128xf32>
    %954 = vector.shape_cast %953 : vector<1x128xf32> to vector<128xf32>
    %955 = vector.shape_cast %954 : vector<128xf32> to vector<1x1x128xf32>
    %956 = vector.broadcast %955 : vector<1x1x128xf32> to vector<1x16x128xf32>
    %957 = arith.mulf %946, %956 : vector<1x16x128xf32>
    %958 = arith.addf %945, %957 : vector<1x16x128xf32>
    %c8_i32_324 = arith.constant 8 : i32
    %959 = tpu.dynamic_rotate %925 by %c8_i32_324 dim 2 : vector<1x16x128xf32>, i32 -> vector<1x16x128xf32>
    %c44_325 = arith.constant 44 : index
    %c0_326 = arith.constant 0 : index
    %960 = vector.load %arg6[%c44_325, %c0_326] : memref<49x128xf32, #tpu.memory_space<vmem>>, vector<1x128xf32>
    %961 = vector.shape_cast %960 : vector<1x128xf32> to vector<128xf32>
    %962 = vector.shape_cast %961 : vector<128xf32> to vector<1x1x128xf32>
    %963 = vector.broadcast %962 : vector<1x1x128xf32> to vector<1x16x128xf32>
    %964 = arith.mulf %959, %963 : vector<1x16x128xf32>
    %965 = arith.addf %952, %964 : vector<1x16x128xf32>
    %c66 = arith.constant 66 : index
    %c0_327 = arith.constant 0 : index
    %966 = vector.load %arg7[%c66, %c0_327] : memref<81x128xf32, #tpu.memory_space<vmem>>, vector<1x128xf32>
    %967 = vector.shape_cast %966 : vector<1x128xf32> to vector<128xf32>
    %968 = vector.shape_cast %967 : vector<128xf32> to vector<1x1x128xf32>
    %969 = vector.broadcast %968 : vector<1x1x128xf32> to vector<1x16x128xf32>
    %970 = arith.mulf %959, %969 : vector<1x16x128xf32>
    %971 = arith.addf %958, %970 : vector<1x16x128xf32>
    %c45_328 = arith.constant 45 : index
    %c0_329 = arith.constant 0 : index
    %972 = vector.load %arg6[%c45_328, %c0_329] : memref<49x128xf32, #tpu.memory_space<vmem>>, vector<1x128xf32>
    %973 = vector.shape_cast %972 : vector<1x128xf32> to vector<128xf32>
    %974 = vector.shape_cast %973 : vector<128xf32> to vector<1x1x128xf32>
    %975 = vector.broadcast %974 : vector<1x1x128xf32> to vector<1x16x128xf32>
    %976 = arith.mulf %925, %975 : vector<1x16x128xf32>
    %977 = arith.addf %965, %976 : vector<1x16x128xf32>
    %c67 = arith.constant 67 : index
    %c0_330 = arith.constant 0 : index
    %978 = vector.load %arg7[%c67, %c0_330] : memref<81x128xf32, #tpu.memory_space<vmem>>, vector<1x128xf32>
    %979 = vector.shape_cast %978 : vector<1x128xf32> to vector<128xf32>
    %980 = vector.shape_cast %979 : vector<128xf32> to vector<1x1x128xf32>
    %981 = vector.broadcast %980 : vector<1x1x128xf32> to vector<1x16x128xf32>
    %982 = arith.mulf %925, %981 : vector<1x16x128xf32>
    %983 = arith.addf %971, %982 : vector<1x16x128xf32>
    %c120_i32_331 = arith.constant 120 : i32
    %984 = tpu.dynamic_rotate %925 by %c120_i32_331 dim 2 : vector<1x16x128xf32>, i32 -> vector<1x16x128xf32>
    %c46_332 = arith.constant 46 : index
    %c0_333 = arith.constant 0 : index
    %985 = vector.load %arg6[%c46_332, %c0_333] : memref<49x128xf32, #tpu.memory_space<vmem>>, vector<1x128xf32>
    %986 = vector.shape_cast %985 : vector<1x128xf32> to vector<128xf32>
    %987 = vector.shape_cast %986 : vector<128xf32> to vector<1x1x128xf32>
    %988 = vector.broadcast %987 : vector<1x1x128xf32> to vector<1x16x128xf32>
    %989 = arith.mulf %984, %988 : vector<1x16x128xf32>
    %990 = arith.addf %977, %989 : vector<1x16x128xf32>
    %c68 = arith.constant 68 : index
    %c0_334 = arith.constant 0 : index
    %991 = vector.load %arg7[%c68, %c0_334] : memref<81x128xf32, #tpu.memory_space<vmem>>, vector<1x128xf32>
    %992 = vector.shape_cast %991 : vector<1x128xf32> to vector<128xf32>
    %993 = vector.shape_cast %992 : vector<128xf32> to vector<1x1x128xf32>
    %994 = vector.broadcast %993 : vector<1x1x128xf32> to vector<1x16x128xf32>
    %995 = arith.mulf %984, %994 : vector<1x16x128xf32>
    %996 = arith.addf %983, %995 : vector<1x16x128xf32>
    %c112_i32_335 = arith.constant 112 : i32
    %997 = tpu.dynamic_rotate %925 by %c112_i32_335 dim 2 : vector<1x16x128xf32>, i32 -> vector<1x16x128xf32>
    %c47_336 = arith.constant 47 : index
    %c0_337 = arith.constant 0 : index
    %998 = vector.load %arg6[%c47_336, %c0_337] : memref<49x128xf32, #tpu.memory_space<vmem>>, vector<1x128xf32>
    %999 = vector.shape_cast %998 : vector<1x128xf32> to vector<128xf32>
    %1000 = vector.shape_cast %999 : vector<128xf32> to vector<1x1x128xf32>
    %1001 = vector.broadcast %1000 : vector<1x1x128xf32> to vector<1x16x128xf32>
    %1002 = arith.mulf %997, %1001 : vector<1x16x128xf32>
    %1003 = arith.addf %990, %1002 : vector<1x16x128xf32>
    %c69 = arith.constant 69 : index
    %c0_338 = arith.constant 0 : index
    %1004 = vector.load %arg7[%c69, %c0_338] : memref<81x128xf32, #tpu.memory_space<vmem>>, vector<1x128xf32>
    %1005 = vector.shape_cast %1004 : vector<1x128xf32> to vector<128xf32>
    %1006 = vector.shape_cast %1005 : vector<128xf32> to vector<1x1x128xf32>
    %1007 = vector.broadcast %1006 : vector<1x1x128xf32> to vector<1x16x128xf32>
    %1008 = arith.mulf %997, %1007 : vector<1x16x128xf32>
    %1009 = arith.addf %996, %1008 : vector<1x16x128xf32>
    %c104_i32_339 = arith.constant 104 : i32
    %1010 = tpu.dynamic_rotate %925 by %c104_i32_339 dim 2 : vector<1x16x128xf32>, i32 -> vector<1x16x128xf32>
    %c48_340 = arith.constant 48 : index
    %c0_341 = arith.constant 0 : index
    %1011 = vector.load %arg6[%c48_340, %c0_341] : memref<49x128xf32, #tpu.memory_space<vmem>>, vector<1x128xf32>
    %1012 = vector.shape_cast %1011 : vector<1x128xf32> to vector<128xf32>
    %1013 = vector.shape_cast %1012 : vector<128xf32> to vector<1x1x128xf32>
    %1014 = vector.broadcast %1013 : vector<1x1x128xf32> to vector<1x16x128xf32>
    %1015 = arith.mulf %1010, %1014 : vector<1x16x128xf32>
    %1016 = arith.addf %1003, %1015 : vector<1x16x128xf32>
    %c70 = arith.constant 70 : index
    %c0_342 = arith.constant 0 : index
    %1017 = vector.load %arg7[%c70, %c0_342] : memref<81x128xf32, #tpu.memory_space<vmem>>, vector<1x128xf32>
    %1018 = vector.shape_cast %1017 : vector<1x128xf32> to vector<128xf32>
    %1019 = vector.shape_cast %1018 : vector<128xf32> to vector<1x1x128xf32>
    %1020 = vector.broadcast %1019 : vector<1x1x128xf32> to vector<1x16x128xf32>
    %1021 = arith.mulf %1010, %1020 : vector<1x16x128xf32>
    %1022 = arith.addf %1009, %1021 : vector<1x16x128xf32>
    %c96_i32_343 = arith.constant 96 : i32
    %1023 = tpu.dynamic_rotate %925 by %c96_i32_343 dim 2 : vector<1x16x128xf32>, i32 -> vector<1x16x128xf32>
    %c71 = arith.constant 71 : index
    %c0_344 = arith.constant 0 : index
    %1024 = vector.load %arg7[%c71, %c0_344] : memref<81x128xf32, #tpu.memory_space<vmem>>, vector<1x128xf32>
    %1025 = vector.shape_cast %1024 : vector<1x128xf32> to vector<128xf32>
    %1026 = vector.shape_cast %1025 : vector<128xf32> to vector<1x1x128xf32>
    %1027 = vector.broadcast %1026 : vector<1x1x128xf32> to vector<1x16x128xf32>
    %1028 = arith.mulf %1023, %1027 : vector<1x16x128xf32>
    %1029 = arith.addf %1022, %1028 : vector<1x16x128xf32>
    %c0_345 = arith.constant 0 : index
    %c8_346 = arith.constant 8 : index
    %c0_347 = arith.constant 0 : index
    %1030 = vector.load %arg11[%c0_345, %c8_346, %c0_347] : memref<1x24x128xf32, #tpu.memory_space<vmem>>, vector<1x16x128xf32>
    %c32_i32_348 = arith.constant 32 : i32
    %1031 = tpu.dynamic_rotate %1030 by %c32_i32_348 dim 2 : vector<1x16x128xf32>, i32 -> vector<1x16x128xf32>
    %c72 = arith.constant 72 : index
    %c0_349 = arith.constant 0 : index
    %1032 = vector.load %arg7[%c72, %c0_349] : memref<81x128xf32, #tpu.memory_space<vmem>>, vector<1x128xf32>
    %1033 = vector.shape_cast %1032 : vector<1x128xf32> to vector<128xf32>
    %1034 = vector.shape_cast %1033 : vector<128xf32> to vector<1x1x128xf32>
    %1035 = vector.broadcast %1034 : vector<1x1x128xf32> to vector<1x16x128xf32>
    %1036 = arith.mulf %1031, %1035 : vector<1x16x128xf32>
    %1037 = arith.addf %1029, %1036 : vector<1x16x128xf32>
    %c24_i32_350 = arith.constant 24 : i32
    %1038 = tpu.dynamic_rotate %1030 by %c24_i32_350 dim 2 : vector<1x16x128xf32>, i32 -> vector<1x16x128xf32>
    %c73 = arith.constant 73 : index
    %c0_351 = arith.constant 0 : index
    %1039 = vector.load %arg7[%c73, %c0_351] : memref<81x128xf32, #tpu.memory_space<vmem>>, vector<1x128xf32>
    %1040 = vector.shape_cast %1039 : vector<1x128xf32> to vector<128xf32>
    %1041 = vector.shape_cast %1040 : vector<128xf32> to vector<1x1x128xf32>
    %1042 = vector.broadcast %1041 : vector<1x1x128xf32> to vector<1x16x128xf32>
    %1043 = arith.mulf %1038, %1042 : vector<1x16x128xf32>
    %1044 = arith.addf %1037, %1043 : vector<1x16x128xf32>
    %c16_i32_352 = arith.constant 16 : i32
    %1045 = tpu.dynamic_rotate %1030 by %c16_i32_352 dim 2 : vector<1x16x128xf32>, i32 -> vector<1x16x128xf32>
    %c74 = arith.constant 74 : index
    %c0_353 = arith.constant 0 : index
    %1046 = vector.load %arg7[%c74, %c0_353] : memref<81x128xf32, #tpu.memory_space<vmem>>, vector<1x128xf32>
    %1047 = vector.shape_cast %1046 : vector<1x128xf32> to vector<128xf32>
    %1048 = vector.shape_cast %1047 : vector<128xf32> to vector<1x1x128xf32>
    %1049 = vector.broadcast %1048 : vector<1x1x128xf32> to vector<1x16x128xf32>
    %1050 = arith.mulf %1045, %1049 : vector<1x16x128xf32>
    %1051 = arith.addf %1044, %1050 : vector<1x16x128xf32>
    %c8_i32_354 = arith.constant 8 : i32
    %1052 = tpu.dynamic_rotate %1030 by %c8_i32_354 dim 2 : vector<1x16x128xf32>, i32 -> vector<1x16x128xf32>
    %c75 = arith.constant 75 : index
    %c0_355 = arith.constant 0 : index
    %1053 = vector.load %arg7[%c75, %c0_355] : memref<81x128xf32, #tpu.memory_space<vmem>>, vector<1x128xf32>
    %1054 = vector.shape_cast %1053 : vector<1x128xf32> to vector<128xf32>
    %1055 = vector.shape_cast %1054 : vector<128xf32> to vector<1x1x128xf32>
    %1056 = vector.broadcast %1055 : vector<1x1x128xf32> to vector<1x16x128xf32>
    %1057 = arith.mulf %1052, %1056 : vector<1x16x128xf32>
    %1058 = arith.addf %1051, %1057 : vector<1x16x128xf32>
    %c76 = arith.constant 76 : index
    %c0_356 = arith.constant 0 : index
    %1059 = vector.load %arg7[%c76, %c0_356] : memref<81x128xf32, #tpu.memory_space<vmem>>, vector<1x128xf32>
    %1060 = vector.shape_cast %1059 : vector<1x128xf32> to vector<128xf32>
    %1061 = vector.shape_cast %1060 : vector<128xf32> to vector<1x1x128xf32>
    %1062 = vector.broadcast %1061 : vector<1x1x128xf32> to vector<1x16x128xf32>
    %1063 = arith.mulf %1030, %1062 : vector<1x16x128xf32>
    %1064 = arith.addf %1058, %1063 : vector<1x16x128xf32>
    %c120_i32_357 = arith.constant 120 : i32
    %1065 = tpu.dynamic_rotate %1030 by %c120_i32_357 dim 2 : vector<1x16x128xf32>, i32 -> vector<1x16x128xf32>
    %c77 = arith.constant 77 : index
    %c0_358 = arith.constant 0 : index
    %1066 = vector.load %arg7[%c77, %c0_358] : memref<81x128xf32, #tpu.memory_space<vmem>>, vector<1x128xf32>
    %1067 = vector.shape_cast %1066 : vector<1x128xf32> to vector<128xf32>
    %1068 = vector.shape_cast %1067 : vector<128xf32> to vector<1x1x128xf32>
    %1069 = vector.broadcast %1068 : vector<1x1x128xf32> to vector<1x16x128xf32>
    %1070 = arith.mulf %1065, %1069 : vector<1x16x128xf32>
    %1071 = arith.addf %1064, %1070 : vector<1x16x128xf32>
    %c112_i32_359 = arith.constant 112 : i32
    %1072 = tpu.dynamic_rotate %1030 by %c112_i32_359 dim 2 : vector<1x16x128xf32>, i32 -> vector<1x16x128xf32>
    %c78 = arith.constant 78 : index
    %c0_360 = arith.constant 0 : index
    %1073 = vector.load %arg7[%c78, %c0_360] : memref<81x128xf32, #tpu.memory_space<vmem>>, vector<1x128xf32>
    %1074 = vector.shape_cast %1073 : vector<1x128xf32> to vector<128xf32>
    %1075 = vector.shape_cast %1074 : vector<128xf32> to vector<1x1x128xf32>
    %1076 = vector.broadcast %1075 : vector<1x1x128xf32> to vector<1x16x128xf32>
    %1077 = arith.mulf %1072, %1076 : vector<1x16x128xf32>
    %1078 = arith.addf %1071, %1077 : vector<1x16x128xf32>
    %c104_i32_361 = arith.constant 104 : i32
    %1079 = tpu.dynamic_rotate %1030 by %c104_i32_361 dim 2 : vector<1x16x128xf32>, i32 -> vector<1x16x128xf32>
    %c79 = arith.constant 79 : index
    %c0_362 = arith.constant 0 : index
    %1080 = vector.load %arg7[%c79, %c0_362] : memref<81x128xf32, #tpu.memory_space<vmem>>, vector<1x128xf32>
    %1081 = vector.shape_cast %1080 : vector<1x128xf32> to vector<128xf32>
    %1082 = vector.shape_cast %1081 : vector<128xf32> to vector<1x1x128xf32>
    %1083 = vector.broadcast %1082 : vector<1x1x128xf32> to vector<1x16x128xf32>
    %1084 = arith.mulf %1079, %1083 : vector<1x16x128xf32>
    %1085 = arith.addf %1078, %1084 : vector<1x16x128xf32>
    %c96_i32_363 = arith.constant 96 : i32
    %1086 = tpu.dynamic_rotate %1030 by %c96_i32_363 dim 2 : vector<1x16x128xf32>, i32 -> vector<1x16x128xf32>
    %c80 = arith.constant 80 : index
    %c0_364 = arith.constant 0 : index
    %1087 = vector.load %arg7[%c80, %c0_364] : memref<81x128xf32, #tpu.memory_space<vmem>>, vector<1x128xf32>
    %1088 = vector.shape_cast %1087 : vector<1x128xf32> to vector<128xf32>
    %1089 = vector.shape_cast %1088 : vector<128xf32> to vector<1x1x128xf32>
    %1090 = vector.broadcast %1089 : vector<1x1x128xf32> to vector<1x16x128xf32>
    %1091 = arith.mulf %1086, %1090 : vector<1x16x128xf32>
    %1092 = arith.addf %1085, %1091 : vector<1x16x128xf32>
    %1093 = arith.truncf %23 : vector<16x128xf32> to vector<16x128xbf16>
    %1094 = vector.extract_strided_slice %6 {offsets = [1, 0], sizes = [1, 128], strides = [1, 1]} : vector<6x128xf32> to vector<1x128xf32>
    %1095 = vector.shape_cast %1094 : vector<1x128xf32> to vector<128xf32>
    %1096 = vector.shape_cast %1095 : vector<128xf32> to vector<1x1x128xf32>
    %1097 = vector.broadcast %1096 : vector<1x1x128xf32> to vector<1x16x128xf32>
    %1098 = arith.mulf %732, %1097 : vector<1x16x128xf32>
    %1099 = vector.extract_strided_slice %7 {offsets = [1, 0], sizes = [1, 128], strides = [1, 1]} : vector<6x128xf32> to vector<1x128xf32>
    %1100 = vector.shape_cast %1099 : vector<1x128xf32> to vector<128xf32>
    %1101 = vector.shape_cast %1100 : vector<128xf32> to vector<1x1x128xf32>
    %1102 = vector.broadcast %1101 : vector<1x1x128xf32> to vector<1x16x128xf32>
    %1103 = arith.addf %1098, %1102 : vector<1x16x128xf32>
    %cst_365 = arith.constant 0.000000e+00 : f32
    %1104 = vector.broadcast %cst_365 : f32 to vector<1x16x128xf32>
    %1105 = arith.maximumf %1103, %1104 : vector<1x16x128xf32>
    %1106 = vector.shape_cast %1105 : vector<1x16x128xf32> to vector<16x128xf32>
    %1107 = arith.truncf %1106 : vector<16x128xf32> to vector<16x128xbf16>
    %1108 = vector.extract_strided_slice %6 {offsets = [2, 0], sizes = [1, 128], strides = [1, 1]} : vector<6x128xf32> to vector<1x128xf32>
    %1109 = vector.shape_cast %1108 : vector<1x128xf32> to vector<128xf32>
    %1110 = vector.shape_cast %1109 : vector<128xf32> to vector<1x1x128xf32>
    %1111 = vector.broadcast %1110 : vector<1x1x128xf32> to vector<1x16x128xf32>
    %1112 = arith.mulf %892, %1111 : vector<1x16x128xf32>
    %1113 = vector.extract_strided_slice %7 {offsets = [2, 0], sizes = [1, 128], strides = [1, 1]} : vector<6x128xf32> to vector<1x128xf32>
    %1114 = vector.shape_cast %1113 : vector<1x128xf32> to vector<128xf32>
    %1115 = vector.shape_cast %1114 : vector<128xf32> to vector<1x1x128xf32>
    %1116 = vector.broadcast %1115 : vector<1x1x128xf32> to vector<1x16x128xf32>
    %1117 = arith.addf %1112, %1116 : vector<1x16x128xf32>
    %cst_366 = arith.constant 0.000000e+00 : f32
    %1118 = vector.broadcast %cst_366 : f32 to vector<1x16x128xf32>
    %1119 = arith.maximumf %1117, %1118 : vector<1x16x128xf32>
    %1120 = vector.shape_cast %1119 : vector<1x16x128xf32> to vector<16x128xf32>
    %1121 = arith.truncf %1120 : vector<16x128xf32> to vector<16x128xbf16>
    %1122 = vector.extract_strided_slice %6 {offsets = [3, 0], sizes = [1, 128], strides = [1, 1]} : vector<6x128xf32> to vector<1x128xf32>
    %1123 = vector.shape_cast %1122 : vector<1x128xf32> to vector<128xf32>
    %1124 = vector.shape_cast %1123 : vector<128xf32> to vector<1x1x128xf32>
    %1125 = vector.broadcast %1124 : vector<1x1x128xf32> to vector<1x16x128xf32>
    %1126 = arith.mulf %1016, %1125 : vector<1x16x128xf32>
    %1127 = vector.extract_strided_slice %7 {offsets = [3, 0], sizes = [1, 128], strides = [1, 1]} : vector<6x128xf32> to vector<1x128xf32>
    %1128 = vector.shape_cast %1127 : vector<1x128xf32> to vector<128xf32>
    %1129 = vector.shape_cast %1128 : vector<128xf32> to vector<1x1x128xf32>
    %1130 = vector.broadcast %1129 : vector<1x1x128xf32> to vector<1x16x128xf32>
    %1131 = arith.addf %1126, %1130 : vector<1x16x128xf32>
    %cst_367 = arith.constant 0.000000e+00 : f32
    %1132 = vector.broadcast %cst_367 : f32 to vector<1x16x128xf32>
    %1133 = arith.maximumf %1131, %1132 : vector<1x16x128xf32>
    %1134 = vector.shape_cast %1133 : vector<1x16x128xf32> to vector<16x128xf32>
    %1135 = arith.truncf %1134 : vector<16x128xf32> to vector<16x128xbf16>
    %1136 = vector.extract_strided_slice %6 {offsets = [4, 0], sizes = [1, 128], strides = [1, 1]} : vector<6x128xf32> to vector<1x128xf32>
    %1137 = vector.shape_cast %1136 : vector<1x128xf32> to vector<128xf32>
    %1138 = vector.shape_cast %1137 : vector<128xf32> to vector<1x1x128xf32>
    %1139 = vector.broadcast %1138 : vector<1x1x128xf32> to vector<1x16x128xf32>
    %1140 = arith.mulf %1092, %1139 : vector<1x16x128xf32>
    %1141 = vector.extract_strided_slice %7 {offsets = [4, 0], sizes = [1, 128], strides = [1, 1]} : vector<6x128xf32> to vector<1x128xf32>
    %1142 = vector.shape_cast %1141 : vector<1x128xf32> to vector<128xf32>
    %1143 = vector.shape_cast %1142 : vector<128xf32> to vector<1x1x128xf32>
    %1144 = vector.broadcast %1143 : vector<1x1x128xf32> to vector<1x16x128xf32>
    %1145 = arith.addf %1140, %1144 : vector<1x16x128xf32>
    %cst_368 = arith.constant 0.000000e+00 : f32
    %1146 = vector.broadcast %cst_368 : f32 to vector<1x16x128xf32>
    %1147 = arith.maximumf %1145, %1146 : vector<1x16x128xf32>
    %1148 = vector.shape_cast %1147 : vector<1x16x128xf32> to vector<16x128xf32>
    %1149 = arith.truncf %1148 : vector<16x128xf32> to vector<16x128xbf16>
    %1150 = tpu.concatenate %1093, %1107, %1121, %1135, %1149 in 1 : vector<16x128xbf16>, vector<16x128xbf16>, vector<16x128xbf16>, vector<16x128xbf16>, vector<16x128xbf16> -> vector<16x640xbf16>
    %c0_369 = arith.constant 0 : index
    %c0_370 = arith.constant 0 : index
    %1151 = vector.load %arg3[%c0_369, %c0_370] : memref<640x128xbf16, #tpu.memory_space<vmem>>, vector<640x128xbf16>
    %cst_371 = arith.constant dense<0.000000e+00> : vector<16x128xf32>
    %1152 = tpu.matmul %1150, %1151, %cst_371 {dimension_numbers = #tpu.dot_dimension_numbers<[1], [0], [0], [1], [0, 0, 1, 1], [], []>} : vector<16x640xbf16>, vector<640x128xbf16>, vector<16x128xf32> -> vector<16x128xf32>
    %1153 = vector.extract_strided_slice %6 {offsets = [5, 0], sizes = [1, 128], strides = [1, 1]} : vector<6x128xf32> to vector<1x128xf32>
    %1154 = vector.shape_cast %1153 : vector<1x128xf32> to vector<128xf32>
    %1155 = vector.shape_cast %1154 : vector<128xf32> to vector<1x128xf32>
    %1156 = vector.broadcast %1155 : vector<1x128xf32> to vector<16x128xf32>
    %1157 = arith.mulf %1152, %1156 : vector<16x128xf32>
    %1158 = vector.extract_strided_slice %7 {offsets = [5, 0], sizes = [1, 128], strides = [1, 1]} : vector<6x128xf32> to vector<1x128xf32>
    %1159 = vector.shape_cast %1158 : vector<1x128xf32> to vector<128xf32>
    %1160 = vector.shape_cast %1159 : vector<128xf32> to vector<1x128xf32>
    %1161 = vector.broadcast %1160 : vector<1x128xf32> to vector<16x128xf32>
    %1162 = arith.addf %1157, %1161 : vector<16x128xf32>
    %cst_372 = arith.constant 0.000000e+00 : f32
    %1163 = vector.broadcast %cst_372 : f32 to vector<16x128xf32>
    %1164 = arith.maximumf %1162, %1163 : vector<16x128xf32>
    %1165 = vector.shape_cast %1164 : vector<16x128xf32> to vector<1x16x128xf32>
    %c0_373 = arith.constant 0 : index
    %c0_374 = arith.constant 0 : index
    %c0_375 = arith.constant 0 : index
    %1166 = vector.load %arg10[%c0_373, %c0_374, %c0_375] : memref<1x16x128xf32, #tpu.memory_space<vmem>>, vector<1x16x128xf32>
    tpu.vector_store %arg10[%c0_373, %c0_374, %c0_375], %1165 {strides = array<i32>} : memref<1x16x128xf32, #tpu.memory_space<vmem>>, vector<1x16x128xf32>,
    return
  }
  func.func @transform_0(%arg0: i32) -> (i32, i32, i32) {
    %c0_i32 = arith.constant 0 : i32
    %c0_i32_0 = arith.constant 0 : i32
    %c0_i32_1 = arith.constant 0 : i32
    return %arg0, %c0_i32, %c0_i32_0 : i32, i32, i32
  }
  func.func @transform_1(%arg0: i32) -> (i32, i32) {
    %c0_i32 = arith.constant 0 : i32
    %c0_i32_0 = arith.constant 0 : i32
    %c0_i32_1 = arith.constant 0 : i32
    return %c0_i32, %c0_i32_0 : i32, i32
  }
  func.func @transform_2(%arg0: i32) -> (i32, i32) {
    %c0_i32 = arith.constant 0 : i32
    %c0_i32_0 = arith.constant 0 : i32
    %c0_i32_1 = arith.constant 0 : i32
    return %c0_i32, %c0_i32_0 : i32, i32
  }
  func.func @transform_3(%arg0: i32) -> (i32, i32) {
    %c0_i32 = arith.constant 0 : i32
    %c0_i32_0 = arith.constant 0 : i32
    %c0_i32_1 = arith.constant 0 : i32
    return %c0_i32, %c0_i32_0 : i32, i32
  }
  func.func @transform_4(%arg0: i32) -> (i32, i32) {
    %c0_i32 = arith.constant 0 : i32
    %c0_i32_0 = arith.constant 0 : i32
    %c0_i32_1 = arith.constant 0 : i32
    return %c0_i32, %c0_i32_0 : i32, i32
  }
  func.func @transform_5(%arg0: i32) -> (i32, i32) {
    %c0_i32 = arith.constant 0 : i32
    %c0_i32_0 = arith.constant 0 : i32
    %c0_i32_1 = arith.constant 0 : i32
    return %c0_i32, %c0_i32_0 : i32, i32
  }
  func.func @transform_6(%arg0: i32) -> (i32, i32) {
    %c0_i32 = arith.constant 0 : i32
    %c0_i32_0 = arith.constant 0 : i32
    %c0_i32_1 = arith.constant 0 : i32
    return %c0_i32, %c0_i32_0 : i32, i32
  }
  func.func @transform_7(%arg0: i32) -> (i32, i32) {
    %c0_i32 = arith.constant 0 : i32
    %c0_i32_0 = arith.constant 0 : i32
    %c0_i32_1 = arith.constant 0 : i32
    return %c0_i32, %c0_i32_0 : i32, i32
  }
  func.func @transform_8(%arg0: i32) -> (i32, i32) {
    %c0_i32 = arith.constant 0 : i32
    %c0_i32_0 = arith.constant 0 : i32
    %c0_i32_1 = arith.constant 0 : i32
    return %c0_i32, %c0_i32_0 : i32, i32
  }
  func.func @transform_9(%arg0: i32) -> (i32, i32, i32) {
    %c0_i32 = arith.constant 0 : i32
    %c0_i32_0 = arith.constant 0 : i32
    %c0_i32_1 = arith.constant 0 : i32
    return %arg0, %c0_i32, %c0_i32_0 : i32, i32, i32
  }
}

</mosaic_0001>

<llo_original>
// kernel: mul.74
$region0: #{mul.74}
  #allocation0 [shape = 's32[1]{0}', space=sflag, size = 0x4, scoped, tag = 'scoped memory for mul.74']
  %s0 = inlined_call_operand.vmem [shape: f32[81,128], index: 0, kind: input, shape index: {}]
  %s1 = inlined_call_operand.vmem [shape: f32[81,128], index: 1, kind: input, shape index: {}]
  %s2 = inlined_call_operand.vmem [shape: f32[81,128], index: 2, kind: output, shape index: {}]
  %v3 = vld [vmem:[%s0] sm:$0xff]
  %v4 = vld [vmem:[%s1] sm:$0xff]
  %5 = xla_tuple %v3, %v4
  %6 = xla_tuple %5
  %v7 = vmul.f32 %v3, %v4
  %8 = xla_tuple %v7
  %9 = vst [vmem:[%s2] sm:$0xff] %v7
  %s10 = scalar_lea.vmem %s0, 8
  %v11 = vld [vmem:[%s10] sm:$0xff]
  %s12 = scalar_lea.vmem %s1, 8
  %v13 = vld [vmem:[%s12] sm:$0xff]
  %14 = xla_tuple %v11, %v13
  %15 = xla_tuple %14
  %v16 = vmul.f32 %v11, %v13
  %17 = xla_tuple %v16
  %s18 = scalar_lea.vmem %s2, 8
  %19 = vst [vmem:[%s18] sm:$0xff] %v16
  %s20 = scalar_lea.vmem %s0, 16
  %v21 = vld [vmem:[%s20] sm:$0xff]
  %s22 = scalar_lea.vmem %s1, 16
  %v23 = vld [vmem:[%s22] sm:$0xff]
  %24 = xla_tuple %v21, %v23
  %25 = xla_tuple %24
  %v26 = vmul.f32 %v21, %v23
  %27 = xla_tuple %v26
  %s28 = scalar_lea.vmem %s2, 16
  %29 = vst [vmem:[%s28] sm:$0xff] %v26
  %s30 = scalar_lea.vmem %s0, 24
  %v31 = vld [vmem:[%s30] sm:$0xff]
  %s32 = scalar_lea.vmem %s1, 24
  %v33 = vld [vmem:[%s32] sm:$0xff]
  %34 = xla_tuple %v31, %v33
  %35 = xla_tuple %34
  %v36 = vmul.f32 %v31, %v33
  %37 = xla_tuple %v36
  %s38 = scalar_lea.vmem %s2, 24
  %39 = vst [vmem:[%s38] sm:$0xff] %v36
  %s40 = scalar_lea.vmem %s0, 32
  %v41 = vld [vmem:[%s40] sm:$0xff]
  %s42 = scalar_lea.vmem %s1, 32
  %v43 = vld [vmem:[%s42] sm:$0xff]
  %44 = xla_tuple %v41, %v43
  %45 = xla_tuple %44
  %v46 = vmul.f32 %v41, %v43
  %47 = xla_tuple %v46
  %s48 = scalar_lea.vmem %s2, 32
  %49 = vst [vmem:[%s48] sm:$0xff] %v46
  %s50 = scalar_lea.vmem %s0, 40
  %v51 = vld [vmem:[%s50] sm:$0xff]
  %s52 = scalar_lea.vmem %s1, 40
  %v53 = vld [vmem:[%s52] sm:$0xff]
  %54 = xla_tuple %v51, %v53
  %55 = xla_tuple %54
  %v56 = vmul.f32 %v51, %v53
  %57 = xla_tuple %v56
  %s58 = scalar_lea.vmem %s2, 40
  %59 = vst [vmem:[%s58] sm:$0xff] %v56
  %s60 = scalar_lea.vmem %s0, 48
  %v61 = vld [vmem:[%s60] sm:$0xff]
  %s62 = scalar_lea.vmem %s1, 48
  %v63 = vld [vmem:[%s62] sm:$0xff]
  %64 = xla_tuple %v61, %v63
  %65 = xla_tuple %64
  %v66 = vmul.f32 %v61, %v63
  %67 = xla_tuple %v66
  %s68 = scalar_lea.vmem %s2, 48
  %69 = vst [vmem:[%s68] sm:$0xff] %v66
  %s70 = scalar_lea.vmem %s0, 56
  %v71 = vld [vmem:[%s70] sm:$0xff]
  %s72 = scalar_lea.vmem %s1, 56
  %v73 = vld [vmem:[%s72] sm:$0xff]
  %74 = xla_tuple %v71, %v73
  %75 = xla_tuple %74
  %v76 = vmul.f32 %v71, %v73
  %77 = xla_tuple %v76
  %s78 = scalar_lea.vmem %s2, 56
  %79 = vst [vmem:[%s78] sm:$0xff] %v76
  %s80 = scalar_lea.vmem %s0, 64
  %v81 = vld [vmem:[%s80] sm:$0xff]
  %s82 = scalar_lea.vmem %s1, 64
  %v83 = vld [vmem:[%s82] sm:$0xff]
  %84 = xla_tuple %v81, %v83
  %85 = xla_tuple %84
  %v86 = vmul.f32 %v81, %v83
  %87 = xla_tuple %v86
  %s88 = scalar_lea.vmem %s2, 64
  %89 = vst [vmem:[%s88] sm:$0xff] %v86
  %s90 = scalar_lea.vmem %s0, 72
  %v91 = vld [vmem:[%s90] sm:$0xff]
  %s92 = scalar_lea.vmem %s1, 72
  %v93 = vld [vmem:[%s92] sm:$0xff]
  %94 = xla_tuple %v91, %v93
  %95 = xla_tuple %94
  %v96 = vmul.f32 %v91, %v93
  %97 = xla_tuple %v96
  %s98 = scalar_lea.vmem %s2, 72
  %99 = vst [vmem:[%s98] sm:$0xff] %v96
  %s100 = scalar_lea.vmem %s0, 80
  %v101 = vld [vmem:[%s100] sm:$0xff]
  %s102 = scalar_lea.vmem %s1, 80
  %v103 = vld [vmem:[%s102] sm:$0xff]
  %104 = xla_tuple %v101, %v103
  %105 = xla_tuple %104
  %v106 = vmul.f32 %v101, %v103
  %107 = xla_tuple %v106
  %s108 = scalar_lea.vmem %s2, 80
  %109 = vst [vmem:[%s108] sm:$0xff] %v106

// kernel: mul.73
$region0: #{mul.73}
  #allocation0 [shape = 's32[1]{0}', space=sflag, size = 0x4, scoped, tag = 'scoped memory for mul.73']
  %s0 = inlined_call_operand.vmem [shape: f32[49,128], index: 0, kind: input, shape index: {}]
  %s1 = inlined_call_operand.vmem [shape: f32[49,128], index: 1, kind: input, shape index: {}]
  %s2 = inlined_call_operand.vmem [shape: f32[49,128], index: 2, kind: output, shape index: {}]
  %v3 = vld [vmem:[%s0] sm:$0xff]
  %v4 = vld [vmem:[%s1] sm:$0xff]
  %5 = xla_tuple %v3, %v4
  %6 = xla_tuple %5
  %v7 = vmul.f32 %v3, %v4
  %8 = xla_tuple %v7
  %9 = vst [vmem:[%s2] sm:$0xff] %v7
  %s10 = scalar_lea.vmem %s0, 8
  %v11 = vld [vmem:[%s10] sm:$0xff]
  %s12 = scalar_lea.vmem %s1, 8
  %v13 = vld [vmem:[%s12] sm:$0xff]
  %14 = xla_tuple %v11, %v13
  %15 = xla_tuple %14
  %v16 = vmul.f32 %v11, %v13
  %17 = xla_tuple %v16
  %s18 = scalar_lea.vmem %s2, 8
  %19 = vst [vmem:[%s18] sm:$0xff] %v16
  %s20 = scalar_lea.vmem %s0, 16
  %v21 = vld [vmem:[%s20] sm:$0xff]
  %s22 = scalar_lea.vmem %s1, 16
  %v23 = vld [vmem:[%s22] sm:$0xff]
  %24 = xla_tuple %v21, %v23
  %25 = xla_tuple %24
  %v26 = vmul.f32 %v21, %v23
  %27 = xla_tuple %v26
  %s28 = scalar_lea.vmem %s2, 16
  %29 = vst [vmem:[%s28] sm:$0xff] %v26
  %s30 = scalar_lea.vmem %s0, 24
  %v31 = vld [vmem:[%s30] sm:$0xff]
  %s32 = scalar_lea.vmem %s1, 24
  %v33 = vld [vmem:[%s32] sm:$0xff]
  %34 = xla_tuple %v31, %v33
  %35 = xla_tuple %34
  %v36 = vmul.f32 %v31, %v33
  %37 = xla_tuple %v36
  %s38 = scalar_lea.vmem %s2, 24
  %39 = vst [vmem:[%s38] sm:$0xff] %v36
  %s40 = scalar_lea.vmem %s0, 32
  %v41 = vld [vmem:[%s40] sm:$0xff]
  %s42 = scalar_lea.vmem %s1, 32
  %v43 = vld [vmem:[%s42] sm:$0xff]
  %44 = xla_tuple %v41, %v43
  %45 = xla_tuple %44
  %v46 = vmul.f32 %v41, %v43
  %47 = xla_tuple %v46
  %s48 = scalar_lea.vmem %s2, 32
  %49 = vst [vmem:[%s48] sm:$0xff] %v46
  %s50 = scalar_lea.vmem %s0, 40
  %v51 = vld [vmem:[%s50] sm:$0xff]
  %s52 = scalar_lea.vmem %s1, 40
  %v53 = vld [vmem:[%s52] sm:$0xff]
  %54 = xla_tuple %v51, %v53
  %55 = xla_tuple %54
  %v56 = vmul.f32 %v51, %v53
  %57 = xla_tuple %v56
  %s58 = scalar_lea.vmem %s2, 40
  %59 = vst [vmem:[%s58] sm:$0xff] %v56
  %s60 = scalar_lea.vmem %s0, 48
  %v61 = vld [vmem:[%s60] sm:$0xff]
  %s62 = scalar_lea.vmem %s1, 48
  %v63 = vld [vmem:[%s62] sm:$0xff]
  %64 = xla_tuple %v61, %v63
  %65 = xla_tuple %64
  %v66 = vmul.f32 %v61, %v63
  %67 = xla_tuple %v66
  %s68 = scalar_lea.vmem %s2, 48
  %69 = vst [vmem:[%s68] sm:$0xff] %v66

// kernel: mul.72
$region0: #{mul.72}
  #allocation0 [shape = 's32[1]{0}', space=sflag, size = 0x4, scoped, tag = 'scoped memory for mul.72']
  %s0 = inlined_call_operand.vmem [shape: f32[25,128], index: 0, kind: input, shape index: {}]
  %s1 = inlined_call_operand.vmem [shape: f32[25,128], index: 1, kind: input, shape index: {}]
  %s2 = inlined_call_operand.vmem [shape: f32[25,128], index: 2, kind: output, shape index: {}]
  %v3 = vld [vmem:[%s0] sm:$0xff]
  %v4 = vld [vmem:[%s1] sm:$0xff]
  %5 = xla_tuple %v3, %v4
  %6 = xla_tuple %5
  %v7 = vmul.f32 %v3, %v4
  %8 = xla_tuple %v7
  %9 = vst [vmem:[%s2] sm:$0xff] %v7
  %s10 = scalar_lea.vmem %s0, 8
  %v11 = vld [vmem:[%s10] sm:$0xff]
  %s12 = scalar_lea.vmem %s1, 8
  %v13 = vld [vmem:[%s12] sm:$0xff]
  %14 = xla_tuple %v11, %v13
  %15 = xla_tuple %14
  %v16 = vmul.f32 %v11, %v13
  %17 = xla_tuple %v16
  %s18 = scalar_lea.vmem %s2, 8
  %19 = vst [vmem:[%s18] sm:$0xff] %v16
  %s20 = scalar_lea.vmem %s0, 16
  %v21 = vld [vmem:[%s20] sm:$0xff]
  %s22 = scalar_lea.vmem %s1, 16
  %v23 = vld [vmem:[%s22] sm:$0xff]
  %24 = xla_tuple %v21, %v23
  %25 = xla_tuple %24
  %v26 = vmul.f32 %v21, %v23
  %27 = xla_tuple %v26
  %s28 = scalar_lea.vmem %s2, 16
  %29 = vst [vmem:[%s28] sm:$0xff] %v26
  %s30 = scalar_lea.vmem %s0, 24
  %v31 = vld [vmem:[%s30] sm:$0xff]
  %s32 = scalar_lea.vmem %s1, 24
  %v33 = vld [vmem:[%s32] sm:$0xff]
  %34 = xla_tuple %v31, %v33
  %35 = xla_tuple %34
  %v36 = vmul.f32 %v31, %v33
  %37 = xla_tuple %v36
  %s38 = scalar_lea.vmem %s2, 24
  %39 = vst [vmem:[%s38] sm:$0xff] %v36

// kernel: mul.71
$region0: #{mul.71}
  #allocation0 [shape = 's32[1]{0}', space=sflag, size = 0x4, scoped, tag = 'scoped memory for mul.71']
  %s0 = inlined_call_operand.vmem [shape: f32[9,128], index: 0, kind: input, shape index: {}]
  %s1 = inlined_call_operand.vmem [shape: f32[9,128], index: 1, kind: input, shape index: {}]
  %s2 = inlined_call_operand.vmem [shape: f32[9,128], index: 2, kind: output, shape index: {}]
  %v3 = vld [vmem:[%s0] sm:$0xff]
  %v4 = vld [vmem:[%s1] sm:$0xff]
  %5 = xla_tuple %v3, %v4
  %6 = xla_tuple %5
  %v7 = vmul.f32 %v3, %v4
  %8 = xla_tuple %v7
  %9 = vst [vmem:[%s2] sm:$0xff] %v7
  %s10 = scalar_lea.vmem %s0, 8
  %v11 = vld [vmem:[%s10] sm:$0xff]
  %s12 = scalar_lea.vmem %s1, 8
  %v13 = vld [vmem:[%s12] sm:$0xff]
  %14 = xla_tuple %v11, %v13
  %15 = xla_tuple %14
  %v16 = vmul.f32 %v11, %v13
  %17 = xla_tuple %v16
  %s18 = scalar_lea.vmem %s2, 8
  %19 = vst [vmem:[%s18] sm:$0xff] %v16

// kernel: tile.54
$region0: #{tile.54}
  %s0 = inlined_call_operand.vmem [shape: f32[6,16,8], index: 0, kind: input, shape index: {}]
  %s1 = inlined_call_operand.vmem [shape: f32[6,128], index: 1, kind: output, shape index: {}]
  %s2 = smov 3
  %v3 = vld [vmem:[%s0] ss:$16 sm:%s2]
  %s4 = smov 12
  %v5 = vld [vmem:[%s0] ss:$16 sm:%s4]
  %vm6 = vcmask 1043458
  %v7 = vsel %vm6, %v5, %v3
  %s8 = smov 48
  %v9 = vld [vmem:[%s0] ss:$16 sm:%s8]
  %vm10 = vcmask 1045508
  %v11 = vsel %vm10, %v9, %v7
  %vm12 = vcmask 64512
  %13 = vst.msk [vmem:[%s1] sm:$0x3f] %vm12, %v11
  %s14 = scalar_lea.vmem %s0, 15
  %s15 = smov 3
  %v16 = vld [vmem:[%s14] ss:$16 sm:%s15]
  %s17 = scalar_lea.vmem %s0, 15
  %s18 = smov 12
  %v19 = vld [vmem:[%s17] ss:$16 sm:%s18]
  %vm20 = vcmask 1043458
  %v21 = vsel %vm20, %v19, %v16
  %s22 = scalar_lea.vmem %s0, 15
  %s23 = smov 48
  %v24 = vld [vmem:[%s22] ss:$16 sm:%s23]
  %vm25 = vcmask 1045508
  %v26 = vsel %vm25, %v24, %v21
  %27 = vrot.lane.b32.xlu0 %v26, 120
  %v28 = vpop.permute.xlu0 %27
  %vm29 = vcmask 1048512
  %30 = vst.msk [vmem:[%s1] sm:$0x3f] %vm29, %v28
  %s31 = scalar_lea.vmem %s0, 14
  %s32 = smov 3
  %v33 = vld [vmem:[%s31] ss:$16 sm:%s32]
  %s34 = scalar_lea.vmem %s0, 14
  %s35 = smov 12
  %v36 = vld [vmem:[%s34] ss:$16 sm:%s35]
  %vm37 = vcmask 1043458
  %v38 = vsel %vm37, %v36, %v33
  %s39 = scalar_lea.vmem %s0, 14
  %s40 = smov 48
  %v41 = vld [vmem:[%s39] ss:$16 sm:%s40]
  %vm42 = vcmask 1045508
  %v43 = vsel %vm42, %v41, %v38
  %44 = vrot.lane.b32.xlu0 %v43, 112
  %v45 = vpop.permute.xlu0 %44
  %vm46 = vcmask 982912
  %47 = vst.msk [vmem:[%s1] sm:$0x3f] %vm46, %v45
  %s48 = scalar_lea.vmem %s0, 13
  %s49 = smov 3
  %v50 = vld [vmem:[%s48] ss:$16 sm:%s49]
  %s51 = scalar_lea.vmem %s0, 13
  %s52 = smov 12
  %v53 = vld [vmem:[%s51] ss:$16 sm:%s52]
  %vm54 = vcmask 1043458
  %v55 = vsel %vm54, %v53, %v50
  %s56 = scalar_lea.vmem %s0, 13
  %s57 = smov 48
  %v58 = vld [vmem:[%s56] ss:$16 sm:%s57]
  %vm59 = vcmask 1045508
  %v60 = vsel %vm59, %v58, %v55
  %61 = vrot.lane.b32.xlu0 %v60, 104
  %v62 = vpop.permute.xlu0 %61
  %vm63 = vcmask 917312
  %64 = vst.msk [vmem:[%s1] sm:$0x3f] %vm63, %v62
  %s65 = scalar_lea.vmem %s0, 12
  %s66 = smov 3
  %v67 = vld [vmem:[%s65] ss:$16 sm:%s66]
  %s68 = scalar_lea.vmem %s0, 12
  %s69 = smov 12
  %v70 = vld [vmem:[%s68] ss:$16 sm:%s69]
  %vm71 = vcmask 1043458
  %v72 = vsel %vm71, %v70, %v67
  %s73 = scalar_lea.vmem %s0, 12
  %s74 = smov 48
  %v75 = vld [vmem:[%s73] ss:$16 sm:%s74]
  %vm76 = vcmask 1045508
  %v77 = vsel %vm76, %v75, %v72
  %78 = vrot.lane.b32.xlu0 %v77, 96
  %v79 = vpop.permute.xlu0 %78
  %vm80 = vcmask 851712
  %81 = vst.msk [vmem:[%s1] sm:$0x3f] %vm80, %v79
  %s82 = scalar_lea.vmem %s0, 11
  %s83 = smov 3
  %v84 = vld [vmem:[%s82] ss:$16 sm:%s83]
  %s85 = scalar_lea.vmem %s0, 11
  %s86 = smov 12
  %v87 = vld [vmem:[%s85] ss:$16 sm:%s86]
  %vm88 = vcmask 1043458
  %v89 = vsel %vm88, %v87, %v84
  %s90 = scalar_lea.vmem %s0, 11
  %s91 = smov 48
  %v92 = vld [vmem:[%s90] ss:$16 sm:%s91]
  %vm93 = vcmask 1045508
  %v94 = vsel %vm93, %v92, %v89
  %95 = vrot.lane.b32.xlu0 %v94, 88
  %v96 = vpop.permute.xlu0 %95
  %vm97 = vcmask 786112
  %98 = vst.msk [vmem:[%s1] sm:$0x3f] %vm97, %v96
  %s99 = scalar_lea.vmem %s0, 10
  %s100 = smov 3
  %v101 = vld [vmem:[%s99] ss:$16 sm:%s100]
  %s102 = scalar_lea.vmem %s0, 10
  %s103 = smov 12
  %v104 = vld [vmem:[%s102] ss:$16 sm:%s103]
  %vm105 = vcmask 1043458
  %v106 = vsel %vm105, %v104, %v101
  %s107 = scalar_lea.vmem %s0, 10
  %s108 = smov 48
  %v109 = vld [vmem:[%s107] ss:$16 sm:%s108]
  %vm110 = vcmask 1045508
  %v111 = vsel %vm110, %v109, %v106
  %112 = vrot.lane.b32.xlu0 %v111, 80
  %v113 = vpop.permute.xlu0 %112
  %vm114 = vcmask 720512
  %115 = vst.msk [vmem:[%s1] sm:$0x3f] %vm114, %v113
  %s116 = scalar_lea.vmem %s0, 9
  %s117 = smov 3
  %v118 = vld [vmem:[%s116] ss:$16 sm:%s117]
  %s119 = scalar_lea.vmem %s0, 9
  %s120 = smov 12
  %v121 = vld [vmem:[%s119] ss:$16 sm:%s120]
  %vm122 = vcmask 1043458
  %v123 = vsel %vm122, %v121, %v118
  %s124 = scalar_lea.vmem %s0, 9
  %s125 = smov 48
  %v126 = vld [vmem:[%s124] ss:$16 sm:%s125]
  %vm127 = vcmask 1045508
  %v128 = vsel %vm127, %v126, %v123
  %129 = vrot.lane.b32.xlu0 %v128, 72
  %v130 = vpop.permute.xlu0 %129
  %vm131 = vcmask 654912
  %132 = vst.msk [vmem:[%s1] sm:$0x3f] %vm131, %v130
  %s133 = scalar_lea.vmem %s0, 8
  %s134 = smov 3
  %v135 = vld [vmem:[%s133] ss:$16 sm:%s134]
  %s136 = scalar_lea.vmem %s0, 8
  %s137 = smov 12
  %v138 = vld [vmem:[%s136] ss:$16 sm:%s137]
  %vm139 = vcmask 1043458
  %v140 = vsel %vm139, %v138, %v135
  %s141 = scalar_lea.vmem %s0, 8
  %s142 = smov 48
  %v143 = vld [vmem:[%s141] ss:$16 sm:%s142]
  %vm144 = vcmask 1045508
  %v145 = vsel %vm144, %v143, %v140
  %146 = vrot.lane.b32.xlu0 %v145, 64
  %v147 = vpop.permute.xlu0 %146
  %vm148 = vcmask 589312
  %149 = vst.msk [vmem:[%s1] sm:$0x3f] %vm148, %v147
  %s150 = scalar_lea.vmem %s0, 7
  %s151 = smov 3
  %v152 = vld [vmem:[%s150] ss:$16 sm:%s151]
  %s153 = scalar_lea.vmem %s0, 7
  %s154 = smov 12
  %v155 = vld [vmem:[%s153] ss:$16 sm:%s154]
  %vm156 = vcmask 1043458
  %v157 = vsel %vm156, %v155, %v152
  %s158 = scalar_lea.vmem %s0, 7
  %s159 = smov 48
  %v160 = vld [vmem:[%s158] ss:$16 sm:%s159]
  %vm161 = vcmask 1045508
  %v162 = vsel %vm161, %v160, %v157
  %163 = vrot.lane.b32.xlu0 %v162, 56
  %v164 = vpop.permute.xlu0 %163
  %vm165 = vcmask 523712
  %166 = vst.msk [vmem:[%s1] sm:$0x3f] %vm165, %v164
  %s167 = scalar_lea.vmem %s0, 6
  %s168 = smov 3
  %v169 = vld [vmem:[%s167] ss:$16 sm:%s168]
  %s170 = scalar_lea.vmem %s0, 6
  %s171 = smov 12
  %v172 = vld [vmem:[%s170] ss:$16 sm:%s171]
  %vm173 = vcmask 1043458
  %v174 = vsel %vm173, %v172, %v169
  %s175 = scalar_lea.vmem %s0, 6
  %s176 = smov 48
  %v177 = vld [vmem:[%s175] ss:$16 sm:%s176]
  %vm178 = vcmask 1045508
  %v179 = vsel %vm178, %v177, %v174
  %180 = vrot.lane.b32.xlu0 %v179, 48
  %v181 = vpop.permute.xlu0 %180
  %vm182 = vcmask 458112
  %183 = vst.msk [vmem:[%s1] sm:$0x3f] %vm182, %v181
  %s184 = scalar_lea.vmem %s0, 5
  %s185 = smov 3
  %v186 = vld [vmem:[%s184] ss:$16 sm:%s185]
  %s187 = scalar_lea.vmem %s0, 5
  %s188 = smov 12
  %v189 = vld [vmem:[%s187] ss:$16 sm:%s188]
  %vm190 = vcmask 1043458
  %v191 = vsel %vm190, %v189, %v186
  %s192 = scalar_lea.vmem %s0, 5
  %s193 = smov 48
  %v194 = vld [vmem:[%s192] ss:$16 sm:%s193]
  %vm195 = vcmask 1045508
  %v196 = vsel %vm195, %v194, %v191
  %197 = vrot.lane.b32.xlu0 %v196, 40
  %v198 = vpop.permute.xlu0 %197
  %vm199 = vcmask 392512
  %200 = vst.msk [vmem:[%s1] sm:$0x3f] %vm199, %v198
  %s201 = scalar_lea.vmem %s0, 4
  %s202 = smov 3
  %v203 = vld [vmem:[%s201] ss:$16 sm:%s202]
  %s204 = scalar_lea.vmem %s0, 4
  %s205 = smov 12
  %v206 = vld [vmem:[%s204] ss:$16 sm:%s205]
  %vm207 = vcmask 1043458
  %v208 = vsel %vm207, %v206, %v203
  %s209 = scalar_lea.vmem %s0, 4
  %s210 = smov 48
  %v211 = vld [vmem:[%s209] ss:$16 sm:%s210]
  %vm212 = vcmask 1045508
  %v213 = vsel %vm212, %v211, %v208
  %214 = vrot.lane.b32.xlu0 %v213, 32
  %v215 = vpop.permute.xlu0 %214
  %vm216 = vcmask 326912
  %217 = vst.msk [vmem:[%s1] sm:$0x3f] %vm216, %v215
  %s218 = scalar_lea.vmem %s0, 3
  %s219 = smov 3
  %v220 = vld [vmem:[%s218] ss:$16 sm:%s219]
  %s221 = scalar_lea.vmem %s0, 3
  %s222 = smov 12
  %v223 = vld [vmem:[%s221] ss:$16 sm:%s222]
  %vm224 = vcmask 1043458
  %v225 = vsel %vm224, %v223, %v220
  %s226 = scalar_lea.vmem %s0, 3
  %s227 = smov 48
  %v228 = vld [vmem:[%s226] ss:$16 sm:%s227]
  %vm229 = vcmask 1045508
  %v230 = vsel %vm229, %v228, %v225
  %231 = vrot.lane.b32.xlu0 %v230, 24
  %v232 = vpop.permute.xlu0 %231
  %vm233 = vcmask 261312
  %234 = vst.msk [vmem:[%s1] sm:$0x3f] %vm233, %v232
  %s235 = scalar_lea.vmem %s0, 2
  %s236 = smov 3
  %v237 = vld [vmem:[%s235] ss:$16 sm:%s236]
  %s238 = scalar_lea.vmem %s0, 2
  %s239 = smov 12
  %v240 = vld [vmem:[%s238] ss:$16 sm:%s239]
  %vm241 = vcmask 1043458
  %v242 = vsel %vm241, %v240, %v237
  %s243 = scalar_lea.vmem %s0, 2
  %s244 = smov 48
  %v245 = vld [vmem:[%s243] ss:$16 sm:%s244]
  %vm246 = vcmask 1045508
  %v247 = vsel %vm246, %v245, %v242
  %248 = vrot.lane.b32.xlu0 %v247, 16
  %v249 = vpop.permute.xlu0 %248
  %vm250 = vcmask 195712
  %251 = vst.msk [vmem:[%s1] sm:$0x3f] %vm250, %v249
  %s252 = scalar_lea.vmem %s0, 1
  %s253 = smov 3
  %v254 = vld [vmem:[%s252] ss:$16 sm:%s253]
  %s255 = scalar_lea.vmem %s0, 1
  %s256 = smov 12
  %v257 = vld [vmem:[%s255] ss:$16 sm:%s256]
  %vm258 = vcmask 1043458
  %v259 = vsel %vm258, %v257, %v254
  %s260 = scalar_lea.vmem %s0, 1
  %s261 = smov 48
  %v262 = vld [vmem:[%s260] ss:$16 sm:%s261]
  %vm263 = vcmask 1045508
  %v264 = vsel %vm263, %v262, %v259
  %265 = vrot.lane.b32.xlu0 %v264, 8
  %v266 = vpop.permute.xlu0 %265
  %vm267 = vcmask 130112
  %268 = vst.msk [vmem:[%s1] sm:$0x3f] %vm267, %v266

// kernel: multi_scale_conv.1
$region0: #{multi_scale_conv.1}
  #allocation0 [shape = 'u32[]', space=smem, size = 0x4, offset = 0x4, fixed_abs, tag = 'smem constant byte address 0x4 - core index']
  #allocation1 [shape = 'u32[144,128]{1,0:T(1,128)}', space=vmem, size = 0x12000, scoped, tag = 'internal scratch']
  #allocation2 [shape = 'f32[1,24,128]{2,1,0:T(8,128)}', space=vmem, size = 0x3000, scoped, tag = 'scratch operand']
  %s0 = inlined_call_operand.vmem [shape: bf16[2,16,128], index: 0, kind: input, shape index: {}]
  %s1 = inlined_call_operand.vmem [shape: bf16[128,128], index: 1, kind: input, shape index: {}]
  %s2 = inlined_call_operand.vmem [shape: bf16[640,128], index: 2, kind: input, shape index: {}]
  %s3 = inlined_call_operand.vmem [shape: f32[9,128], index: 3, kind: input, shape index: {}]
  %s4 = inlined_call_operand.vmem [shape: f32[25,128], index: 4, kind: input, shape index: {}]
  %s5 = inlined_call_operand.vmem [shape: f32[49,128], index: 5, kind: input, shape index: {}]
  %s6 = inlined_call_operand.vmem [shape: f32[81,128], index: 6, kind: input, shape index: {}]
  %s7 = inlined_call_operand.vmem [shape: f32[6,128], index: 7, kind: input, shape index: {}]
  %s8 = inlined_call_operand.vmem [shape: f32[6,128], index: 8, kind: input, shape index: {}]
  %s9 = inlined_call_operand.vmem [shape: f32[2,16,128], index: 9, kind: output, shape index: {}]
  %s10 = sld [smem:[#allocation0]]
  $region69: #{multi_scale_conv.1} parent=0
    _
  %s12 = ssub.s32 1, %s10
  %s13 = scalar_select 0, %s12, %s10
  loop: start=0, step=1, limit=4
  $region2: #{multi_scale_conv.1} parent=0 // loop_pre_header
    _
  $region3: #{multi_scale_conv.1} parent=0 // loop_header
    %s15 = sphi 0, %s19
    %p16 = scmp.ge.s32.totalorder %s15, 4
    %s25 = sphi 0, %s27
    %s28 = sphi 0, %s25
    %s29 = sphi 0, %s28
    %s45 = sphi 0, %s29
    %s49 = sphi 0, %s49
    %s51 = sphi 0, %s49
    %s52 = sphi 0, %s51
    %s66 = sphi 0, %s52
    %s70 = sphi 0, %s70
    %s72 = sphi 0, %s70
    %s73 = sphi 0, %s72
    %s87 = sphi 0, %s73
    %s91 = sphi 0, %s91
    %s93 = sphi 0, %s91
    %s94 = sphi 0, %s93
    %s108 = sphi 0, %s94
    %s112 = sphi 0, %s112
    %s114 = sphi 0, %s112
    %s115 = sphi 0, %s114
    %s129 = sphi 0, %s115
    %s133 = sphi 0, %s133
    %s135 = sphi 0, %s133
    %s136 = sphi 0, %s135
    %s150 = sphi 0, %s136
    %s154 = sphi 0, %s154
    %s156 = sphi 0, %s154
    %s157 = sphi 0, %s156
    %s171 = sphi 0, %s157
    %s175 = sphi 0, %s175
    %s177 = sphi 0, %s175
    %s178 = sphi 0, %s177
    %s192 = sphi 0, %s178
    %s196 = sphi 0, %s196
    %s198 = sphi 0, %s196
    %s199 = sphi 0, %s198
    %s213 = sphi 0, %s199
    %s219 = sphi 0, %s221
    %s222 = sphi 0, %s219
    %s223 = sphi 0, %s222
    %s239 = sphi 0, %s223
  $region4: #{multi_scale_conv.1} parent=0 // loop_header_branch
    %18 = sbr.rel (%p16) target = $region8
  $region5: #{multi_scale_conv.1} parent=0 // loop_body
    %s20 = ssub.s32 %s15, 1
    %s21 = ssub.s32 %s15, 2
    %s22 = sadd.s32 %s15, 1
    %s23 = ssub.s32 %s15, %s22
    %p24 = scmp.eq.s32.totalorder %s23, 0
    %s26 = sadd.s32 %s25, 1
    %s27 = scalar_select %p24, %s25, %s26
    %p30 = pneg %p24
    %p31 = scmp.eq.s32.totalorder %s15, 1
    %p32 = por %p30, %p31
    %p33 = scmp.ne.s32.totalorder %s25, %s28
    %p34 = scmp.eq.s32.totalorder %s15, 0
    %p35 = por %p33, %p34
    %p36 = scmp.ne.s32.totalorder %s25, %s28
    %p37 = scmp.eq.s32.totalorder %s20, 1
    %p38 = por %p36, %p37
    %p39 = scmp.ne.s32.totalorder %s28, %s29
    %p40 = scmp.eq.s32.totalorder %s20, 0
    %p41 = por %p39, %p40
    %p42 = scmp.ne.s32.totalorder %s28, %s29
    %p43 = scmp.eq.s32.totalorder %s21, 1
    %p44 = por %p42, %p43
    %p46 = scmp.ne.s32.totalorder %s29, %s45
    %p47 = scmp.eq.s32.totalorder %s21, 0
    %p48 = por %p46, %p47
    %s50 = sadd.s32 %s49, 1
    %p53 = scmp.eq.s32.totalorder %s15, 1
    %p54 = scmp.ne.s32.totalorder %s49, %s51
    %p55 = scmp.eq.s32.totalorder %s15, 0
    %p56 = por %p54, %p55
    %p57 = scmp.ne.s32.totalorder %s49, %s51
    %p58 = scmp.eq.s32.totalorder %s20, 1
    %p59 = por %p57, %p58
    %p60 = scmp.ne.s32.totalorder %s51, %s52
    %p61 = scmp.eq.s32.totalorder %s20, 0
    %p62 = por %p60, %p61
    %p63 = scmp.ne.s32.totalorder %s51, %s52
    %p64 = scmp.eq.s32.totalorder %s21, 1
    %p65 = por %p63, %p64
    %p67 = scmp.ne.s32.totalorder %s52, %s66
    %p68 = scmp.eq.s32.totalorder %s21, 0
    %p69 = por %p67, %p68
    %s71 = sadd.s32 %s70, 1
    %p74 = scmp.eq.s32.totalorder %s15, 1
    %p75 = scmp.ne.s32.totalorder %s70, %s72
    %p76 = scmp.eq.s32.totalorder %s15, 0
    %p77 = por %p75, %p76
    %p78 = scmp.ne.s32.totalorder %s70, %s72
    %p79 = scmp.eq.s32.totalorder %s20, 1
    %p80 = por %p78, %p79
    %p81 = scmp.ne.s32.totalorder %s72, %s73
    %p82 = scmp.eq.s32.totalorder %s20, 0
    %p83 = por %p81, %p82
    %p84 = scmp.ne.s32.totalorder %s72, %s73
    %p85 = scmp.eq.s32.totalorder %s21, 1
    %p86 = por %p84, %p85
    %p88 = scmp.ne.s32.totalorder %s73, %s87
    %p89 = scmp.eq.s32.totalorder %s21, 0
    %p90 = por %p88, %p89
    %s92 = sadd.s32 %s91, 1
    %p95 = scmp.eq.s32.totalorder %s15, 1
    %p96 = scmp.ne.s32.totalorder %s91, %s93
    %p97 = scmp.eq.s32.totalorder %s15, 0
    %p98 = por %p96, %p97
    %p99 = scmp.ne.s32.totalorder %s91, %s93
    %p100 = scmp.eq.s32.totalorder %s20, 1
    %p101 = por %p99, %p100
    %p102 = scmp.ne.s32.totalorder %s93, %s94
    %p103 = scmp.eq.s32.totalorder %s20, 0
    %p104 = por %p102, %p103
    %p105 = scmp.ne.s32.totalorder %s93, %s94
    %p106 = scmp.eq.s32.totalorder %s21, 1
    %p107 = por %p105, %p106
    %p109 = scmp.ne.s32.totalorder %s94, %s108
    %p110 = scmp.eq.s32.totalorder %s21, 0
    %p111 = por %p109, %p110
    %s113 = sadd.s32 %s112, 1
    %p116 = scmp.eq.s32.totalorder %s15, 1
    %p117 = scmp.ne.s32.totalorder %s112, %s114
    %p118 = scmp.eq.s32.totalorder %s15, 0
    %p119 = por %p117, %p118
    %p120 = scmp.ne.s32.totalorder %s112, %s114
    %p121 = scmp.eq.s32.totalorder %s20, 1
    %p122 = por %p120, %p121
    %p123 = scmp.ne.s32.totalorder %s114, %s115
    %p124 = scmp.eq.s32.totalorder %s20, 0
    %p125 = por %p123, %p124
    %p126 = scmp.ne.s32.totalorder %s114, %s115
    %p127 = scmp.eq.s32.totalorder %s21, 1
    %p128 = por %p126, %p127
    %p130 = scmp.ne.s32.totalorder %s115, %s129
    %p131 = scmp.eq.s32.totalorder %s21, 0
    %p132 = por %p130, %p131
    %s134 = sadd.s32 %s133, 1
    %p137 = scmp.eq.s32.totalorder %s15, 1
    %p138 = scmp.ne.s32.totalorder %s133, %s135
    %p139 = scmp.eq.s32.totalorder %s15, 0
    %p140 = por %p138, %p139
    %p141 = scmp.ne.s32.totalorder %s133, %s135
    %p142 = scmp.eq.s32.totalorder %s20, 1
    %p143 = por %p141, %p142
    %p144 = scmp.ne.s32.totalorder %s135, %s136
    %p145 = scmp.eq.s32.totalorder %s20, 0
    %p146 = por %p144, %p145
    %p147 = scmp.ne.s32.totalorder %s135, %s136
    %p148 = scmp.eq.s32.totalorder %s21, 1
    %p149 = por %p147, %p148
    %p151 = scmp.ne.s32.totalorder %s136, %s150
    %p152 = scmp.eq.s32.totalorder %s21, 0
    %p153 = por %p151, %p152
    %s155 = sadd.s32 %s154, 1
    %p158 = scmp.eq.s32.totalorder %s15, 1
    %p159 = scmp.ne.s32.totalorder %s154, %s156
    %p160 = scmp.eq.s32.totalorder %s15, 0
    %p161 = por %p159, %p160
    %p162 = scmp.ne.s32.totalorder %s154, %s156
    %p163 = scmp.eq.s32.totalorder %s20, 1
    %p164 = por %p162, %p163
    %p165 = scmp.ne.s32.totalorder %s156, %s157
    %p166 = scmp.eq.s32.totalorder %s20, 0
    %p167 = por %p165, %p166
    %p168 = scmp.ne.s32.totalorder %s156, %s157
    %p169 = scmp.eq.s32.totalorder %s21, 1
    %p170 = por %p168, %p169
    %p172 = scmp.ne.s32.totalorder %s157, %s171
    %p173 = scmp.eq.s32.totalorder %s21, 0
    %p174 = por %p172, %p173
    %s176 = sadd.s32 %s175, 1
    %p179 = scmp.eq.s32.totalorder %s15, 1
    %p180 = scmp.ne.s32.totalorder %s175, %s177
    %p181 = scmp.eq.s32.totalorder %s15, 0
    %p182 = por %p180, %p181
    %p183 = scmp.ne.s32.totalorder %s175, %s177
    %p184 = scmp.eq.s32.totalorder %s20, 1
    %p185 = por %p183, %p184
    %p186 = scmp.ne.s32.totalorder %s177, %s178
    %p187 = scmp.eq.s32.totalorder %s20, 0
    %p188 = por %p186, %p187
    %p189 = scmp.ne.s32.totalorder %s177, %s178
    %p190 = scmp.eq.s32.totalorder %s21, 1
    %p191 = por %p189, %p190
    %p193 = scmp.ne.s32.totalorder %s178, %s192
    %p194 = scmp.eq.s32.totalorder %s21, 0
    %p195 = por %p193, %p194
    %s197 = sadd.s32 %s196, 1
    %p200 = scmp.eq.s32.totalorder %s15, 1
    %p201 = scmp.ne.s32.totalorder %s196, %s198
    %p202 = scmp.eq.s32.totalorder %s15, 0
    %p203 = por %p201, %p202
    %p204 = scmp.ne.s32.totalorder %s196, %s198
    %p205 = scmp.eq.s32.totalorder %s20, 1
    %p206 = por %p204, %p205
    %p207 = scmp.ne.s32.totalorder %s198, %s199
    %p208 = scmp.eq.s32.totalorder %s20, 0
    %p209 = por %p207, %p208
    %p210 = scmp.ne.s32.totalorder %s198, %s199
    %p211 = scmp.eq.s32.totalorder %s21, 1
    %p212 = por %p210, %p211
    %p214 = scmp.ne.s32.totalorder %s199, %s213
    %p215 = scmp.eq.s32.totalorder %s21, 0
    %p216 = por %p214, %p215
    %s217 = ssub.s32 %s15, %s22
    %p218 = scmp.eq.s32.totalorder %s217, 0
    %s220 = sadd.s32 %s219, 1
    %s221 = scalar_select %p218, %s219, %s220
    %p224 = pneg %p218
    %p225 = scmp.eq.s32.totalorder %s15, 1
    %p226 = por %p224, %p225
    %p227 = scmp.ne.s32.totalorder %s219, %s222
    %p228 = scmp.eq.s32.totalorder %s15, 0
    %p229 = por %p227, %p228
    %p230 = scmp.ne.s32.totalorder %s219, %s222
    %p231 = scmp.eq.s32.totalorder %s20, 1
    %p232 = por %p230, %p231
    %p233 = scmp.ne.s32.totalorder %s222, %s223
    %p234 = scmp.eq.s32.totalorder %s20, 0
    %p235 = por %p233, %p234
    %p236 = scmp.ne.s32.totalorder %s222, %s223
    %p237 = scmp.eq.s32.totalorder %s21, 1
    %p238 = por %p236, %p237
    %p240 = scmp.ne.s32.totalorder %s223, %s239
    %p241 = scmp.eq.s32.totalorder %s21, 0
    %p242 = por %p240, %p241
    %p243 = scmp.le.s32.totalorder 1, %s15
    %p244 = scmp.lt.s32.totalorder %s15, 3
    %p245 = pnand %p243, %p244
    %p246 = pneg %p245
    // Predicated region
    $region9: #{multi_scale_conv.1} parent=5 // pred_check
      _
    $region10: #{multi_scale_conv.1} parent=5 // pred_check_branch
      %248 = sbr.rel (%p245) target = $region12
    $region11: #{multi_scale_conv.1} parent=5 // pred_region
      %s249 = ssub.s32 %s15, 1
      // Predicated region
      $region13: #{multi_scale_conv.1} parent=11 // pred_check
        %p250 = pneg %p62
      $region14: #{multi_scale_conv.1} parent=11 // pred_check_branch
        %252 = sbr.rel (%p250) target = $region16
      $region15: #{multi_scale_conv.1} parent=11 // pred_region
        _
      $region16: #{multi_scale_conv.1} parent=11 // pred_fallthru
        _
      // Predicated region
      $region17: #{multi_scale_conv.1} parent=11 // pred_check
        %p253 = pneg %p83
      $region18: #{multi_scale_conv.1} parent=11 // pred_check_branch
        %255 = sbr.rel (%p253) target = $region20
      $region19: #{multi_scale_conv.1} parent=11 // pred_region
        _
      $region20: #{multi_scale_conv.1} parent=11 // pred_fallthru
        _
      // Predicated region
      $region21: #{multi_scale_conv.1} parent=11 // pred_check
        %p256 = pneg %p104
      $region22: #{multi_scale_conv.1} parent=11 // pred_check_branch
        %258 = sbr.rel (%p256) target = $region24
      $region23: #{multi_scale_conv.1} parent=11 // pred_region
        _
      $region24: #{multi_scale_conv.1} parent=11 // pred_fallthru
        _
      // Predicated region
      $region25: #{multi_scale_conv.1} parent=11 // pred_check
        %p259 = pneg %p125
      $region26: #{multi_scale_conv.1} parent=11 // pred_check_branch
        %261 = sbr.rel (%p259) target = $region28
      $region27: #{multi_scale_conv.1} parent=11 // pred_region
        _
      $region28: #{multi_scale_conv.1} parent=11 // pred_fallthru
        _
      // Predicated region
      $region29: #{multi_scale_conv.1} parent=11 // pred_check
        %p262 = pneg %p146
      $region30: #{multi_scale_conv.1} parent=11 // pred_check_branch
        %264 = sbr.rel (%p262) target = $region32
      $region31: #{multi_scale_conv.1} parent=11 // pred_region
        _
      $region32: #{multi_scale_conv.1} parent=11 // pred_fallthru
        _
      // Predicated region
      $region33: #{multi_scale_conv.1} parent=11 // pred_check
        %p265 = pneg %p167
      $region34: #{multi_scale_conv.1} parent=11 // pred_check_branch
        %267 = sbr.rel (%p265) target = $region36
      $region35: #{multi_scale_conv.1} parent=11 // pred_region
        _
      $region36: #{multi_scale_conv.1} parent=11 // pred_fallthru
        _
      // Predicated region
      $region37: #{multi_scale_conv.1} parent=11 // pred_check
        %p268 = pneg %p188
      $region38: #{multi_scale_conv.1} parent=11 // pred_check_branch
        %270 = sbr.rel (%p268) target = $region40
      $region39: #{multi_scale_conv.1} parent=11 // pred_region
        _
      $region40: #{multi_scale_conv.1} parent=11 // pred_fallthru
        _
      // Predicated region
      $region41: #{multi_scale_conv.1} parent=11 // pred_check
        %p271 = pneg %p209
      $region42: #{multi_scale_conv.1} parent=11 // pred_check_branch
        %273 = sbr.rel (%p271) target = $region44
      $region43: #{multi_scale_conv.1} parent=11 // pred_region
        _
      $region44: #{multi_scale_conv.1} parent=11 // pred_fallthru
        _
    $region12: #{multi_scale_conv.1} parent=5 // pred_fallthru
      _
    %p274 = scmp.lt.s32.totalorder %s15, 2
    // Predicated region
    $region45: #{multi_scale_conv.1} parent=5 // pred_check
      %p275 = pneg %p274
    $region46: #{multi_scale_conv.1} parent=5 // pred_check_branch
      %277 = sbr.rel (%p275) target = $region48
    $region47: #{multi_scale_conv.1} parent=5 // pred_region
      // Predicated region
      $region49: #{multi_scale_conv.1} parent=47 // pred_check
        %p278 = pneg %p35
      $region50: #{multi_scale_conv.1} parent=47 // pred_check_branch
        %280 = sbr.rel (%p278) target = $region52
      $region51: #{multi_scale_conv.1} parent=47 // pred_region
        %p281 = scmp.lt.s32.totalorder %s15, 1
        %s282 = scalar_select %p281, %s15, 1
        %s283 = smul.addr %s282, 2
        %s284 = smul.addr %s283, 4
        %s285 = scalar_lea.vmem %s0, %s284
      $region52: #{multi_scale_conv.1} parent=47 // pred_fallthru
        _
    $region48: #{multi_scale_conv.1} parent=5 // pred_fallthru
      _
    %p286 = scmp.le.s32.totalorder 1, %s15
    %p287 = scmp.lt.s32.totalorder %s15, 3
    %p288 = pnand %p286, %p287
    %p289 = pneg %p288
    // Predicated region
    $region53: #{multi_scale_conv.1} parent=5 // pred_check
      _
    $region54: #{multi_scale_conv.1} parent=5 // pred_check_branch
      %291 = sbr.rel (%p288) target = $region56
    $region55: #{multi_scale_conv.1} parent=5 // pred_region
      %s292 = ssub.s32 %s15, 1
      %p293 = scmp.lt.s32.totalorder %s20, 1
      %s294 = scalar_select %p293, %s20, 1
      %s295 = smul.addr %s294, 2
      %s296 = smul.addr %s295, 4
      %s297 = scalar_lea.vmem %s0, %s296
      %p298 = pneg %p41
      %p299 = pneg %p38
      %p300 = pneg %p62
      %p301 = pneg %p59
      %p302 = pneg %p83
      %p303 = pneg %p80
      %p304 = pneg %p104
      %p305 = pneg %p101
      %p306 = pneg %p125
      %p307 = pneg %p122
      %p308 = pneg %p146
      %p309 = pneg %p143
      %p310 = pneg %p167
      %p311 = pneg %p164
      %p312 = pneg %p188
      %p313 = pneg %p185
      %p314 = pneg %p209
      %p315 = pneg %p206
      %p316 = pneg %p235
      %p317 = pneg %p232
      %p318 = scmp.lt.s32.totalorder %s20, 1
      %s319 = scalar_select %p318, %s20, 1
      %s320 = smul.addr %s319, 2
      %s321 = smul.addr %s320, 8
      %s322 = scalar_lea.vmem %s9, %s321
      %p323 = scmp.lt.s32.totalorder %s20, 1
      %s324 = scalar_select %p323, %s20, 1
      %s325 = smul.addr %s324, 2
      %s326 = smul.addr %s325, 4
      %s327 = scalar_lea.vmem %s0, %s326
      %p328 = scmp.lt.s32.totalorder %s20, 1
      %s329 = scalar_select %p328, %s20, 1
      %s330 = smul.addr %s329, 2
      %s331 = smul.addr %s330, 8
      %s332 = scalar_lea.vmem %s9, %s331
      %334 = vst [vmem:[#allocation2] sm:$0xf] 0.0
      %335 = vst [vmem:[#allocation2 + $0x14] sm:$0xf] 0.0
      %v336 = vld [vmem:[%s327] sm:$0xf]
      %v337 = vld [vmem:[%s327 + $0x4] sm:$0xf]
      %v338 = vunpack.c.l.bf16 %v336
      %v339 = vunpack.c.l.bf16 %v337
      %340 = vst [vmem:[#allocation2 + $0x4] sm:$0xff] %v338
      %341 = vst [vmem:[#allocation2 + $0xc] sm:$0xff] %v339
      %v342 = vld [vmem:[%s7] sm:$0x3f]
      %v343 = vld [vmem:[%s8] sm:$0x3f]
      %v344 = vld [vmem:[%s327] sm:$0xf]
      %v345 = vld [vmem:[%s327 + $0x4] sm:$0xf]
      %v346 = vld [vmem:[%s1] sm:$0xf]
      %v347 = vld [vmem:[%s1 + $0x4] sm:$0xf]
      %v348 = vld [vmem:[%s1 + $0x8] sm:$0xf]
      %v349 = vld [vmem:[%s1 + $0xc] sm:$0xf]
      %v350 = vld [vmem:[%s1 + $0x10] sm:$0xf]
      %v351 = vld [vmem:[%s1 + $0x14] sm:$0xf]
      %v352 = vld [vmem:[%s1 + $0x18] sm:$0xf]
      %v353 = vld [vmem:[%s1 + $0x1c] sm:$0xf]
      %v354 = vld [vmem:[%s1 + $0x20] sm:$0xf]
      %v355 = vld [vmem:[%s1 + $0x24] sm:$0xf]
      %v356 = vld [vmem:[%s1 + $0x28] sm:$0xf]
      %v357 = vld [vmem:[%s1 + $0x2c] sm:$0xf]
      %v358 = vld [vmem:[%s1 + $0x30] sm:$0xf]
      %v359 = vld [vmem:[%s1 + $0x34] sm:$0xf]
      %v360 = vld [vmem:[%s1 + $0x38] sm:$0xf]
      %v361 = vld [vmem:[%s1 + $0x3c] sm:$0xf]
      %v364 = vunpack.c.l.b16 %v344
      %v365 = vunpack.c.l.b16 %v345
      %v366 = vpack.c.b16 %v365, %v364
      %v384 = vunpack.c.l.b16 %v346
      %v385 = vunpack.c.l.b16 %v347
      %v386 = vunpack.c.l.b16 %v348
      %v387 = vunpack.c.l.b16 %v349
      %v388 = vunpack.c.l.b16 %v350
      %v389 = vunpack.c.l.b16 %v351
      %v390 = vunpack.c.l.b16 %v352
      %v391 = vunpack.c.l.b16 %v353
      %v392 = vunpack.c.l.b16 %v354
      %v393 = vunpack.c.l.b16 %v355
      %v394 = vunpack.c.l.b16 %v356
      %v395 = vunpack.c.l.b16 %v357
      %v396 = vunpack.c.l.b16 %v358
      %v397 = vunpack.c.l.b16 %v359
      %v398 = vunpack.c.l.b16 %v360
      %v399 = vunpack.c.l.b16 %v361
      %v400 = vpack.c.b16 %v385, %v384
      %v401 = vpack.c.b16 %v387, %v386
      %v402 = vpack.c.b16 %v389, %v388
      %v403 = vpack.c.b16 %v391, %v390
      %v404 = vpack.c.b16 %v393, %v392
      %v405 = vpack.c.b16 %v395, %v394
      %v406 = vpack.c.b16 %v397, %v396
      %v407 = vpack.c.b16 %v399, %v398
      %416 = vmatprep.subr.bf16.mxu0 0
      %417 = vmatpush1.bf16.msra.mxu0 %v407
      %418 = vmatprep.subr.bf16.mxu0 0
      %419 = vmatpush1.bf16.msra.mxu0 %v406
      %420 = vmatprep.subr.bf16.mxu0 0
      %421 = vmatpush1.bf16.msra.mxu0 %v405
      %422 = vmatprep.subr.bf16.mxu0 0
      %423 = vmatpush1.bf16.msra.mxu0 %v404
      %424 = vmatprep.subr.bf16.mxu0 0
      %425 = vmatpush1.bf16.msra.mxu0 %v403
      %426 = vmatprep.subr.bf16.mxu0 0
      %427 = vmatpush1.bf16.msra.mxu0 %v402
      %428 = vmatprep.subr.bf16.mxu0 0
      %429 = vmatpush1.bf16.msra.mxu0 %v401
      %430 = vmatprep.subr.bf16.mxu0 0
      %431 = vmatpush1.bf16.msra.mxu0 %v400
      %432 = vmatprep.subr.bf16.mxu0 0
      %433 = vmatpush2.bf16.msra.mxu0 0
      %434 = vmatprep.subr.bf16.mxu0 0
      %435 = vmatpush2.bf16.msra.mxu0 0
      %436 = vmatprep.subr.bf16.mxu0 0
      %437 = vmatpush2.bf16.msra.mxu0 0
      %438 = vmatprep.subr.bf16.mxu0 0
      %439 = vmatpush2.bf16.msra.mxu0 0
      %440 = vmatprep.subr.bf16.mxu0 0
      %441 = vmatpush2.bf16.msra.mxu0 0
      %442 = vmatprep.subr.bf16.mxu0 0
      %443 = vmatpush2.bf16.msra.mxu0 0
      %444 = vmatprep.subr.bf16.mxu0 0
      %445 = vmatpush2.bf16.msra.mxu0 0
      %446 = vmatprep.subr.bf16.mxu0 0
      %447 = vmatpush2.bf16.msra.mxu0 0
      %448 = vmatprep.mubr.bf16.mxu0 0
      %449 = vmatmul.mubr.bf16.gmra.mxu0 %v366
      %v450 = vpop.f32.mrf.mxu0
      %v451 = vadd.f32 0.0, %v450
      %v452 = vpop.f32.mrf.mxu0
      %v453 = vpop.f32.mrf.mxu0
      %v454 = vadd.f32 0.0, %v453
      %v455 = vpop.f32.mrf.mxu0
      %456 = vdwg.mxu0
      %v457 = vlaneseq
      %v458 = vshrl.u32 %v457, 7
      %v459 = vsub.s32 0, %v458
      %v460 = vrot.slane %v342, %v459
      %v461 = vmul.f32 %v451, %v460
      %v462 = vmul.f32 %v454, %v460
      %v463 = vlaneseq
      %v464 = vshrl.u32 %v463, 7
      %v465 = vsub.s32 0, %v464
      %v466 = vrot.slane %v343, %v465
      %v467 = vadd.f32 %v461, %v466
      %v468 = vadd.f32 %v462, %v466
      %v469 = vmax.f32 %v467, 0.0
      %v470 = vmax.f32 %v468, 0.0
      %v471 = vld [vmem:[#allocation2] sm:$0xff]
      %v472 = vld [vmem:[#allocation2 + $0x8] sm:$0xff]
      %473 = vrot.lane.b32.xlu0 %v471, 32
      %v474 = vpop.permute.xlu0 %473
      %475 = vrot.lane.b32.xlu0 %v472, 32
      %v476 = vpop.permute.xlu0 %475
      %v477 = vld [vmem:[%s6] sm:$0x1]
      %v478 = vlaneseq
      %v479 = vshrl.u32 %v478, 7
      %v480 = vsub.s32 0, %v479
      %v481 = vrot.slane %v477, %v480
      %v482 = vmul.f32 %v474, %v481
      %v483 = vmul.f32 %v476, %v481
      %v484 = vadd.f32 %v482, 0.0
      %v485 = vadd.f32 %v483, 0.0
      %486 = vrot.lane.b32.xlu0 %v471, 24
      %v487 = vpop.permute.xlu0 %486
      %488 = vrot.lane.b32.xlu0 %v472, 24
      %v489 = vpop.permute.xlu0 %488
      %v490 = vld [vmem:[%s6 + $0x1] sm:$0x1]
      %v491 = vlaneseq
      %v492 = vshrl.u32 %v491, 7
      %v493 = vsub.s32 0, %v492
      %v494 = vrot.slane %v490, %v493
      %v495 = vmul.f32 %v487, %v494
      %v496 = vmul.f32 %v489, %v494
      %v497 = vadd.f32 %v484, %v495
      %v498 = vadd.f32 %v485, %v496
      %499 = vrot.lane.b32.xlu0 %v471, 16
      %v500 = vpop.permute.xlu0 %499
      %501 = vrot.lane.b32.xlu0 %v472, 16
      %v502 = vpop.permute.xlu0 %501
      %v503 = vld [vmem:[%s6 + $0x2] sm:$0x1]
      %v504 = vlaneseq
      %v505 = vshrl.u32 %v504, 7
      %v506 = vsub.s32 0, %v505
      %v507 = vrot.slane %v503, %v506
      %v508 = vmul.f32 %v500, %v507
      %v509 = vmul.f32 %v502, %v507
      %v510 = vadd.f32 %v497, %v508
      %v511 = vadd.f32 %v498, %v509
      %512 = vrot.lane.b32.xlu0 %v471, 8
      %v513 = vpop.permute.xlu0 %512
      %514 = vrot.lane.b32.xlu0 %v472, 8
      %v515 = vpop.permute.xlu0 %514
      %v516 = vld [vmem:[%s6 + $0x3] sm:$0x1]
      %v517 = vlaneseq
      %v518 = vshrl.u32 %v517, 7
      %v519 = vsub.s32 0, %v518
      %v520 = vrot.slane %v516, %v519
      %v521 = vmul.f32 %v513, %v520
      %v522 = vmul.f32 %v515, %v520
      %v523 = vadd.f32 %v510, %v521
      %v524 = vadd.f32 %v511, %v522
      %v525 = vld [vmem:[%s6 + $0x4] sm:$0x1]
      %v526 = vlaneseq
      %v527 = vshrl.u32 %v526, 7
      %v528 = vsub.s32 0, %v527
      %v529 = vrot.slane %v525, %v528
      %v530 = vmul.f32 %v471, %v529
      %v531 = vmul.f32 %v472, %v529
      %v532 = vadd.f32 %v523, %v530
      %v533 = vadd.f32 %v524, %v531
      %534 = vrot.lane.b32.xlu0 %v471, 120
      %v535 = vpop.permute.xlu0 %534
      %536 = vrot.lane.b32.xlu0 %v472, 120
      %v537 = vpop.permute.xlu0 %536
      %v538 = vld [vmem:[%s6 + $0x5] sm:$0x1]
      %v539 = vlaneseq
      %v540 = vshrl.u32 %v539, 7
      %v541 = vsub.s32 0, %v540
      %v542 = vrot.slane %v538, %v541
      %v543 = vmul.f32 %v535, %v542
      %v544 = vmul.f32 %v537, %v542
      %v545 = vadd.f32 %v532, %v543
      %v546 = vadd.f32 %v533, %v544
      %547 = vrot.lane.b32.xlu0 %v471, 112
      %v548 = vpop.permute.xlu0 %547
      %549 = vrot.lane.b32.xlu0 %v472, 112
      %v550 = vpop.permute.xlu0 %549
      %v551 = vld [vmem:[%s6 + $0x6] sm:$0x1]
      %v552 = vlaneseq
      %v553 = vshrl.u32 %v552, 7
      %v554 = vsub.s32 0, %v553
      %v555 = vrot.slane %v551, %v554
      %v556 = vmul.f32 %v548, %v555
      %v557 = vmul.f32 %v550, %v555
      %v558 = vadd.f32 %v545, %v556
      %v559 = vadd.f32 %v546, %v557
      %560 = vrot.lane.b32.xlu0 %v471, 104
      %v561 = vpop.permute.xlu0 %560
      %562 = vrot.lane.b32.xlu0 %v472, 104
      %v563 = vpop.permute.xlu0 %562
      %v564 = vld [vmem:[%s6 + $0x7] sm:$0x1]
      %v565 = vlaneseq
      %v566 = vshrl.u32 %v565, 7
      %v567 = vsub.s32 0, %v566
      %v568 = vrot.slane %v564, %v567
      %v569 = vmul.f32 %v561, %v568
      %v570 = vmul.f32 %v563, %v568
      %v571 = vadd.f32 %v558, %v569
      %v572 = vadd.f32 %v559, %v570
      %573 = vrot.lane.b32.xlu0 %v471, 96
      %v574 = vpop.permute.xlu0 %573
      %575 = vrot.lane.b32.xlu0 %v472, 96
      %v576 = vpop.permute.xlu0 %575
      %v577 = vld [vmem:[%s6 + $0x8] sm:$0x1]
      %v578 = vlaneseq
      %v579 = vshrl.u32 %v578, 7
      %v580 = vsub.s32 0, %v579
      %v581 = vrot.slane %v577, %v580
      %v582 = vmul.f32 %v574, %v581
      %v583 = vmul.f32 %v576, %v581
      %v584 = vadd.f32 %v571, %v582
      %v585 = vadd.f32 %v572, %v583
      %v586 = vld [vmem:[#allocation2 + $0x1] sm:$0xff]
      %v587 = vld [vmem:[#allocation2 + $0x9] sm:$0xff]
      %588 = vrot.lane.b32.xlu0 %v586, 32
      %v589 = vpop.permute.xlu0 %588
      %590 = vrot.lane.b32.xlu0 %v587, 32
      %v591 = vpop.permute.xlu0 %590
      %v592 = vld [vmem:[%s6 + $0x9] sm:$0x1]
      %v593 = vlaneseq
      %v594 = vshrl.u32 %v593, 7
      %v595 = vsub.s32 0, %v594
      %v596 = vrot.slane %v592, %v595
      %v597 = vmul.f32 %v589, %v596
      %v598 = vmul.f32 %v591, %v596
      %v599 = vadd.f32 %v584, %v597
      %v600 = vadd.f32 %v585, %v598
      %601 = vrot.lane.b32.xlu0 %v586, 24
      %v602 = vpop.permute.xlu0 %601
      %603 = vrot.lane.b32.xlu0 %v587, 24
      %v604 = vpop.permute.xlu0 %603
      %v605 = vld [vmem:[%s5] sm:$0x1]
      %v606 = vlaneseq
      %v607 = vshrl.u32 %v606, 7
      %v608 = vsub.s32 0, %v607
      %v609 = vrot.slane %v605, %v608
      %v610 = vmul.f32 %v602, %v609
      %v611 = vmul.f32 %v604, %v609
      %v612 = vadd.f32 %v610, 0.0
      %v613 = vadd.f32 %v611, 0.0
      %v614 = vld [vmem:[%s6 + $0xa] sm:$0x1]
      %v615 = vlaneseq
      %v616 = vshrl.u32 %v615, 7
      %v617 = vsub.s32 0, %v616
      %v618 = vrot.slane %v614, %v617
      %v619 = vmul.f32 %v602, %v618
      %v620 = vmul.f32 %v604, %v618
      %v621 = vadd.f32 %v599, %v619
      %v622 = vadd.f32 %v600, %v620
      %623 = vrot.lane.b32.xlu0 %v586, 16
      %v624 = vpop.permute.xlu0 %623
      %625 = vrot.lane.b32.xlu0 %v587, 16
      %v626 = vpop.permute.xlu0 %625
      %v627 = vld [vmem:[%s5 + $0x1] sm:$0x1]
      %v628 = vlaneseq
      %v629 = vshrl.u32 %v628, 7
      %v630 = vsub.s32 0, %v629
      %v631 = vrot.slane %v627, %v630
      %v632 = vmul.f32 %v624, %v631
      %v633 = vmul.f32 %v626, %v631
      %v634 = vadd.f32 %v612, %v632
      %v635 = vadd.f32 %v613, %v633
      %v636 = vld [vmem:[%s6 + $0xb] sm:$0x1]
      %v637 = vlaneseq
      %v638 = vshrl.u32 %v637, 7
      %v639 = vsub.s32 0, %v638
      %v640 = vrot.slane %v636, %v639
      %v641 = vmul.f32 %v624, %v640
      %v642 = vmul.f32 %v626, %v640
      %v643 = vadd.f32 %v621, %v641
      %v644 = vadd.f32 %v622, %v642
      %645 = vrot.lane.b32.xlu0 %v586, 8
      %v646 = vpop.permute.xlu0 %645
      %647 = vrot.lane.b32.xlu0 %v587, 8
      %v648 = vpop.permute.xlu0 %647
      %v649 = vld [vmem:[%s5 + $0x2] sm:$0x1]
      %v650 = vlaneseq
      %v651 = vshrl.u32 %v650, 7
      %v652 = vsub.s32 0, %v651
      %v653 = vrot.slane %v649, %v652
      %v654 = vmul.f32 %v646, %v653
      %v655 = vmul.f32 %v648, %v653
      %v656 = vadd.f32 %v634, %v654
      %v657 = vadd.f32 %v635, %v655
      %v658 = vld [vmem:[%s6 + $0xc] sm:$0x1]
      %v659 = vlaneseq
      %v660 = vshrl.u32 %v659, 7
      %v661 = vsub.s32 0, %v660
      %v662 = vrot.slane %v658, %v661
      %v663 = vmul.f32 %v646, %v662
      %v664 = vmul.f32 %v648, %v662
      %v665 = vadd.f32 %v643, %v663
      %v666 = vadd.f32 %v644, %v664
      %v667 = vld [vmem:[%s5 + $0x3] sm:$0x1]
      %v668 = vlaneseq
      %v669 = vshrl.u32 %v668, 7
      %v670 = vsub.s32 0, %v669
      %v671 = vrot.slane %v667, %v670
      %v672 = vmul.f32 %v586, %v671
      %v673 = vmul.f32 %v587, %v671
      %v674 = vadd.f32 %v656, %v672
      %v675 = vadd.f32 %v657, %v673
      %v676 = vld [vmem:[%s6 + $0xd] sm:$0x1]
      %v677 = vlaneseq
      %v678 = vshrl.u32 %v677, 7
      %v679 = vsub.s32 0, %v678
      %v680 = vrot.slane %v676, %v679
      %v681 = vmul.f32 %v586, %v680
      %v682 = vmul.f32 %v587, %v680
      %v683 = vadd.f32 %v665, %v681
      %v684 = vadd.f32 %v666, %v682
      %685 = vrot.lane.b32.xlu0 %v586, 120
      %v686 = vpop.permute.xlu0 %685
      %687 = vrot.lane.b32.xlu0 %v587, 120
      %v688 = vpop.permute.xlu0 %687
      %v689 = vld [vmem:[%s5 + $0x4] sm:$0x1]
      %v690 = vlaneseq
      %v691 = vshrl.u32 %v690, 7
      %v692 = vsub.s32 0, %v691
      %v693 = vrot.slane %v689, %v692
      %v694 = vmul.f32 %v686, %v693
      %v695 = vmul.f32 %v688, %v693
      %v696 = vadd.f32 %v674, %v694
      %v697 = vadd.f32 %v675, %v695
      %v698 = vld [vmem:[%s6 + $0xe] sm:$0x1]
      %v699 = vlaneseq
      %v700 = vshrl.u32 %v699, 7
      %v701 = vsub.s32 0, %v700
      %v702 = vrot.slane %v698, %v701
      %v703 = vmul.f32 %v686, %v702
      %v704 = vmul.f32 %v688, %v702
      %v705 = vadd.f32 %v683, %v703
      %v706 = vadd.f32 %v684, %v704
      %707 = vrot.lane.b32.xlu0 %v586, 112
      %v708 = vpop.permute.xlu0 %707
      %709 = vrot.lane.b32.xlu0 %v587, 112
      %v710 = vpop.permute.xlu0 %709
      %v711 = vld [vmem:[%s5 + $0x5] sm:$0x1]
      %v712 = vlaneseq
      %v713 = vshrl.u32 %v712, 7
      %v714 = vsub.s32 0, %v713
      %v715 = vrot.slane %v711, %v714
      %v716 = vmul.f32 %v708, %v715
      %v717 = vmul.f32 %v710, %v715
      %v718 = vadd.f32 %v696, %v716
      %v719 = vadd.f32 %v697, %v717
      %v720 = vld [vmem:[%s6 + $0xf] sm:$0x1]
      %v721 = vlaneseq
      %v722 = vshrl.u32 %v721, 7
      %v723 = vsub.s32 0, %v722
      %v724 = vrot.slane %v720, %v723
      %v725 = vmul.f32 %v708, %v724
      %v726 = vmul.f32 %v710, %v724
      %v727 = vadd.f32 %v705, %v725
      %v728 = vadd.f32 %v706, %v726
      %729 = vrot.lane.b32.xlu0 %v586, 104
      %v730 = vpop.permute.xlu0 %729
      %731 = vrot.lane.b32.xlu0 %v587, 104
      %v732 = vpop.permute.xlu0 %731
      %v733 = vld [vmem:[%s5 + $0x6] sm:$0x1]
      %v734 = vlaneseq
      %v735 = vshrl.u32 %v734, 7
      %v736 = vsub.s32 0, %v735
      %v737 = vrot.slane %v733, %v736
      %v738 = vmul.f32 %v730, %v737
      %v739 = vmul.f32 %v732, %v737
      %v740 = vadd.f32 %v718, %v738
      %v741 = vadd.f32 %v719, %v739
      %v742 = vld [vmem:[%s6 + $0x10] sm:$0x1]
      %v743 = vlaneseq
      %v744 = vshrl.u32 %v743, 7
      %v745 = vsub.s32 0, %v744
      %v746 = vrot.slane %v742, %v745
      %v747 = vmul.f32 %v730, %v746
      %v748 = vmul.f32 %v732, %v746
      %v749 = vadd.f32 %v727, %v747
      %v750 = vadd.f32 %v728, %v748
      %751 = vrot.lane.b32.xlu0 %v586, 96
      %v752 = vpop.permute.xlu0 %751
      %753 = vrot.lane.b32.xlu0 %v587, 96
      %v754 = vpop.permute.xlu0 %753
      %v755 = vld [vmem:[%s6 + $0x11] sm:$0x1]
      %v756 = vlaneseq
      %v757 = vshrl.u32 %v756, 7
      %v758 = vsub.s32 0, %v757
      %v759 = vrot.slane %v755, %v758
      %v760 = vmul.f32 %v752, %v759
      %v761 = vmul.f32 %v754, %v759
      %v762 = vadd.f32 %v749, %v760
      %v763 = vadd.f32 %v750, %v761
      %v764 = vld [vmem:[#allocation2 + $0x2] sm:$0xff]
      %v765 = vld [vmem:[#allocation2 + $0xa] sm:$0xff]
      %766 = vrot.lane.b32.xlu0 %v764, 32
      %v767 = vpop.permute.xlu0 %766
      %768 = vrot.lane.b32.xlu0 %v765, 32
      %v769 = vpop.permute.xlu0 %768
      %v770 = vld [vmem:[%s6 + $0x12] sm:$0x1]
      %v771 = vlaneseq
      %v772 = vshrl.u32 %v771, 7
      %v773 = vsub.s32 0, %v772
      %v774 = vrot.slane %v770, %v773
      %v775 = vmul.f32 %v767, %v774
      %v776 = vmul.f32 %v769, %v774
      %v777 = vadd.f32 %v762, %v775
      %v778 = vadd.f32 %v763, %v776
      %779 = vrot.lane.b32.xlu0 %v764, 24
      %v780 = vpop.permute.xlu0 %779
      %781 = vrot.lane.b32.xlu0 %v765, 24
      %v782 = vpop.permute.xlu0 %781
      %v783 = vld [vmem:[%s5 + $0x7] sm:$0x1]
      %v784 = vlaneseq
      %v785 = vshrl.u32 %v784, 7
      %v786 = vsub.s32 0, %v785
      %v787 = vrot.slane %v783, %v786
      %v788 = vmul.f32 %v780, %v787
      %v789 = vmul.f32 %v782, %v787
      %v790 = vadd.f32 %v740, %v788
      %v791 = vadd.f32 %v741, %v789
      %v792 = vld [vmem:[%s6 + $0x13] sm:$0x1]
      %v793 = vlaneseq
      %v794 = vshrl.u32 %v793, 7
      %v795 = vsub.s32 0, %v794
      %v796 = vrot.slane %v792, %v795
      %v797 = vmul.f32 %v780, %v796
      %v798 = vmul.f32 %v782, %v796
      %v799 = vadd.f32 %v777, %v797
      %v800 = vadd.f32 %v778, %v798
      %801 = vrot.lane.b32.xlu0 %v764, 16
      %v802 = vpop.permute.xlu0 %801
      %803 = vrot.lane.b32.xlu0 %v765, 16
      %v804 = vpop.permute.xlu0 %803
      %v805 = vld [vmem:[%s4] sm:$0x1]
      %v806 = vlaneseq
      %v807 = vshrl.u32 %v806, 7
      %v808 = vsub.s32 0, %v807
      %v809 = vrot.slane %v805, %v808
      %v810 = vmul.f32 %v802, %v809
      %v811 = vmul.f32 %v804, %v809
      %v812 = vadd.f32 %v810, 0.0
      %v813 = vadd.f32 %v811, 0.0
      %v814 = vld [vmem:[%s5 + $0x8] sm:$0x1]
      %v815 = vlaneseq
      %v816 = vshrl.u32 %v815, 7
      %v817 = vsub.s32 0, %v816
      %v818 = vrot.slane %v814, %v817
      %v819 = vmul.f32 %v802, %v818
      %v820 = vmul.f32 %v804, %v818
      %v821 = vadd.f32 %v790, %v819
      %v822 = vadd.f32 %v791, %v820
      %v823 = vld [vmem:[%s6 + $0x14] sm:$0x1]
      %v824 = vlaneseq
      %v825 = vshrl.u32 %v824, 7
      %v826 = vsub.s32 0, %v825
      %v827 = vrot.slane %v823, %v826
      %v828 = vmul.f32 %v802, %v827
      %v829 = vmul.f32 %v804, %v827
      %v830 = vadd.f32 %v799, %v828
      %v831 = vadd.f32 %v800, %v829
      %832 = vrot.lane.b32.xlu0 %v764, 8
      %v833 = vpop.permute.xlu0 %832
      %834 = vrot.lane.b32.xlu0 %v765, 8
      %v835 = vpop.permute.xlu0 %834
      %v836 = vld [vmem:[%s4 + $0x1] sm:$0x1]
      %v837 = vlaneseq
      %v838 = vshrl.u32 %v837, 7
      %v839 = vsub.s32 0, %v838
      %v840 = vrot.slane %v836, %v839
      %v841 = vmul.f32 %v833, %v840
      %v842 = vmul.f32 %v835, %v840
      %v843 = vadd.f32 %v812, %v841
      %v844 = vadd.f32 %v813, %v842
      %v845 = vld [vmem:[%s5 + $0x9] sm:$0x1]
      %v846 = vlaneseq
      %v847 = vshrl.u32 %v846, 7
      %v848 = vsub.s32 0, %v847
      %v849 = vrot.slane %v845, %v848
      %v850 = vmul.f32 %v833, %v849
      %v851 = vmul.f32 %v835, %v849
      %v852 = vadd.f32 %v821, %v850
      %v853 = vadd.f32 %v822, %v851
      %v854 = vld [vmem:[%s6 + $0x15] sm:$0x1]
      %v855 = vlaneseq
      %v856 = vshrl.u32 %v855, 7
      %v857 = vsub.s32 0, %v856
      %v858 = vrot.slane %v854, %v857
      %v859 = vmul.f32 %v833, %v858
      %v860 = vmul.f32 %v835, %v858
      %v861 = vadd.f32 %v830, %v859
      %v862 = vadd.f32 %v831, %v860
      %v863 = vld [vmem:[%s4 + $0x2] sm:$0x1]
      %v864 = vlaneseq
      %v865 = vshrl.u32 %v864, 7
      %v866 = vsub.s32 0, %v865
      %v867 = vrot.slane %v863, %v866
      %v868 = vmul.f32 %v764, %v867
      %v869 = vmul.f32 %v765, %v867
      %v870 = vadd.f32 %v843, %v868
      %v871 = vadd.f32 %v844, %v869
      %v872 = vld [vmem:[%s5 + $0xa] sm:$0x1]
      %v873 = vlaneseq
      %v874 = vshrl.u32 %v873, 7
      %v875 = vsub.s32 0, %v874
      %v876 = vrot.slane %v872, %v875
      %v877 = vmul.f32 %v764, %v876
      %v878 = vmul.f32 %v765, %v876
      %v879 = vadd.f32 %v852, %v877
      %v880 = vadd.f32 %v853, %v878
      %v881 = vld [vmem:[%s6 + $0x16] sm:$0x1]
      %v882 = vlaneseq
      %v883 = vshrl.u32 %v882, 7
      %v884 = vsub.s32 0, %v883
      %v885 = vrot.slane %v881, %v884
      %v886 = vmul.f32 %v764, %v885
      %v887 = vmul.f32 %v765, %v885
      %v888 = vadd.f32 %v861, %v886
      %v889 = vadd.f32 %v862, %v887
      %890 = vrot.lane.b32.xlu0 %v764, 120
      %v891 = vpop.permute.xlu0 %890
      %892 = vrot.lane.b32.xlu0 %v765, 120
      %v893 = vpop.permute.xlu0 %892
      %v894 = vld [vmem:[%s4 + $0x3] sm:$0x1]
      %v895 = vlaneseq
      %v896 = vshrl.u32 %v895, 7
      %v897 = vsub.s32 0, %v896
      %v898 = vrot.slane %v894, %v897
      %v899 = vmul.f32 %v891, %v898
      %v900 = vmul.f32 %v893, %v898
      %v901 = vadd.f32 %v870, %v899
      %v902 = vadd.f32 %v871, %v900
      %v903 = vld [vmem:[%s5 + $0xb] sm:$0x1]
      %v904 = vlaneseq
      %v905 = vshrl.u32 %v904, 7
      %v906 = vsub.s32 0, %v905
      %v907 = vrot.slane %v903, %v906
      %v908 = vmul.f32 %v891, %v907
      %v909 = vmul.f32 %v893, %v907
      %v910 = vadd.f32 %v879, %v908
      %v911 = vadd.f32 %v880, %v909
      %v912 = vld [vmem:[%s6 + $0x17] sm:$0x1]
      %v913 = vlaneseq
      %v914 = vshrl.u32 %v913, 7
      %v915 = vsub.s32 0, %v914
      %v916 = vrot.slane %v912, %v915
      %v917 = vmul.f32 %v891, %v916
      %v918 = vmul.f32 %v893, %v916
      %v919 = vadd.f32 %v888, %v917
      %v920 = vadd.f32 %v889, %v918
      %921 = vrot.lane.b32.xlu0 %v764, 112
      %v922 = vpop.permute.xlu0 %921
      %923 = vrot.lane.b32.xlu0 %v765, 112
      %v924 = vpop.permute.xlu0 %923
      %v925 = vld [vmem:[%s4 + $0x4] sm:$0x1]
      %v926 = vlaneseq
      %v927 = vshrl.u32 %v926, 7
      %v928 = vsub.s32 0, %v927
      %v929 = vrot.slane %v925, %v928
      %v930 = vmul.f32 %v922, %v929
      %v931 = vmul.f32 %v924, %v929
      %v932 = vadd.f32 %v901, %v930
      %v933 = vadd.f32 %v902, %v931
      %v934 = vld [vmem:[%s5 + $0xc] sm:$0x1]
      %v935 = vlaneseq
      %v936 = vshrl.u32 %v935, 7
      %v937 = vsub.s32 0, %v936
      %v938 = vrot.slane %v934, %v937
      %v939 = vmul.f32 %v922, %v938
      %v940 = vmul.f32 %v924, %v938
      %v941 = vadd.f32 %v910, %v939
      %v942 = vadd.f32 %v911, %v940
      %v943 = vld [vmem:[%s6 + $0x18] sm:$0x1]
      %v944 = vlaneseq
      %v945 = vshrl.u32 %v944, 7
      %v946 = vsub.s32 0, %v945
      %v947 = vrot.slane %v943, %v946
      %v948 = vmul.f32 %v922, %v947
      %v949 = vmul.f32 %v924, %v947
      %v950 = vadd.f32 %v919, %v948
      %v951 = vadd.f32 %v920, %v949
      %952 = vrot.lane.b32.xlu0 %v764, 104
      %v953 = vpop.permute.xlu0 %952
      %954 = vrot.lane.b32.xlu0 %v765, 104
      %v955 = vpop.permute.xlu0 %954
      %v956 = vld [vmem:[%s5 + $0xd] sm:$0x1]
      %v957 = vlaneseq
      %v958 = vshrl.u32 %v957, 7
      %v959 = vsub.s32 0, %v958
      %v960 = vrot.slane %v956, %v959
      %v961 = vmul.f32 %v953, %v960
      %v962 = vmul.f32 %v955, %v960
      %v963 = vadd.f32 %v941, %v961
      %v964 = vadd.f32 %v942, %v962
      %v965 = vld [vmem:[%s6 + $0x19] sm:$0x1]
      %v966 = vlaneseq
      %v967 = vshrl.u32 %v966, 7
      %v968 = vsub.s32 0, %v967
      %v969 = vrot.slane %v965, %v968
      %v970 = vmul.f32 %v953, %v969
      %v971 = vmul.f32 %v955, %v969
      %v972 = vadd.f32 %v950, %v970
      %v973 = vadd.f32 %v951, %v971
      %974 = vrot.lane.b32.xlu0 %v764, 96
      %v975 = vpop.permute.xlu0 %974
      %976 = vrot.lane.b32.xlu0 %v765, 96
      %v977 = vpop.permute.xlu0 %976
      %v978 = vld [vmem:[%s6 + $0x1a] sm:$0x1]
      %v979 = vlaneseq
      %v980 = vshrl.u32 %v979, 7
      %v981 = vsub.s32 0, %v980
      %v982 = vrot.slane %v978, %v981
      %v983 = vmul.f32 %v975, %v982
      %v984 = vmul.f32 %v977, %v982
      %v985 = vadd.f32 %v972, %v983
      %v986 = vadd.f32 %v973, %v984
      %v987 = vld [vmem:[#allocation2 + $0x3] sm:$0xff]
      %v988 = vld [vmem:[#allocation2 + $0xb] sm:$0xff]
      %989 = vrot.lane.b32.xlu0 %v987, 32
      %v990 = vpop.permute.xlu0 %989
      %991 = vrot.lane.b32.xlu0 %v988, 32
      %v992 = vpop.permute.xlu0 %991
      %v993 = vld [vmem:[%s6 + $0x1b] sm:$0x1]
      %v994 = vlaneseq
      %v995 = vshrl.u32 %v994, 7
      %v996 = vsub.s32 0, %v995
      %v997 = vrot.slane %v993, %v996
      %v998 = vmul.f32 %v990, %v997
      %v999 = vmul.f32 %v992, %v997
      %v1000 = vadd.f32 %v985, %v998
      %v1001 = vadd.f32 %v986, %v999
      %1002 = vrot.lane.b32.xlu0 %v987, 24
      %v1003 = vpop.permute.xlu0 %1002
      %1004 = vrot.lane.b32.xlu0 %v988, 24
      %v1005 = vpop.permute.xlu0 %1004
      %v1006 = vld [vmem:[%s5 + $0xe] sm:$0x1]
      %v1007 = vlaneseq
      %v1008 = vshrl.u32 %v1007, 7
      %v1009 = vsub.s32 0, %v1008
      %v1010 = vrot.slane %v1006, %v1009
      %v1011 = vmul.f32 %v1003, %v1010
      %v1012 = vmul.f32 %v1005, %v1010
      %v1013 = vadd.f32 %v963, %v1011
      %v1014 = vadd.f32 %v964, %v1012
      %v1015 = vld [vmem:[%s6 + $0x1c] sm:$0x1]
      %v1016 = vlaneseq
      %v1017 = vshrl.u32 %v1016, 7
      %v1018 = vsub.s32 0, %v1017
      %v1019 = vrot.slane %v1015, %v1018
      %v1020 = vmul.f32 %v1003, %v1019
      %v1021 = vmul.f32 %v1005, %v1019
      %v1022 = vadd.f32 %v1000, %v1020
      %v1023 = vadd.f32 %v1001, %v1021
      %1024 = vrot.lane.b32.xlu0 %v987, 16
      %v1025 = vpop.permute.xlu0 %1024
      %1026 = vrot.lane.b32.xlu0 %v988, 16
      %v1027 = vpop.permute.xlu0 %1026
      %v1028 = vld [vmem:[%s4 + $0x5] sm:$0x1]
      %v1029 = vlaneseq
      %v1030 = vshrl.u32 %v1029, 7
      %v1031 = vsub.s32 0, %v1030
      %v1032 = vrot.slane %v1028, %v1031
      %v1033 = vmul.f32 %v1025, %v1032
      %v1034 = vmul.f32 %v1027, %v1032
      %v1035 = vadd.f32 %v932, %v1033
      %v1036 = vadd.f32 %v933, %v1034
      %v1037 = vld [vmem:[%s5 + $0xf] sm:$0x1]
      %v1038 = vlaneseq
      %v1039 = vshrl.u32 %v1038, 7
      %v1040 = vsub.s32 0, %v1039
      %v1041 = vrot.slane %v1037, %v1040
      %v1042 = vmul.f32 %v1025, %v1041
      %v1043 = vmul.f32 %v1027, %v1041
      %v1044 = vadd.f32 %v1013, %v1042
      %v1045 = vadd.f32 %v1014, %v1043
      %v1046 = vld [vmem:[%s6 + $0x1d] sm:$0x1]
      %v1047 = vlaneseq
      %v1048 = vshrl.u32 %v1047, 7
      %v1049 = vsub.s32 0, %v1048
      %v1050 = vrot.slane %v1046, %v1049
      %v1051 = vmul.f32 %v1025, %v1050
      %v1052 = vmul.f32 %v1027, %v1050
      %v1053 = vadd.f32 %v1022, %v1051
      %v1054 = vadd.f32 %v1023, %v1052
      %1055 = vrot.lane.b32.xlu0 %v987, 8
      %v1056 = vpop.permute.xlu0 %1055
      %1057 = vrot.lane.b32.xlu0 %v988, 8
      %v1058 = vpop.permute.xlu0 %1057
      %v1059 = vld [vmem:[%s3] sm:$0x1]
      %v1060 = vlaneseq
      %v1061 = vshrl.u32 %v1060, 7
      %v1062 = vsub.s32 0, %v1061
      %v1063 = vrot.slane %v1059, %v1062
      %v1064 = vmul.f32 %v1056, %v1063
      %v1065 = vmul.f32 %v1058, %v1063
      %v1066 = vadd.f32 %v1064, 0.0
      %v1067 = vadd.f32 %v1065, 0.0
      %v1068 = vld [vmem:[%s4 + $0x6] sm:$0x1]
      %v1069 = vlaneseq
      %v1070 = vshrl.u32 %v1069, 7
      %v1071 = vsub.s32 0, %v1070
      %v1072 = vrot.slane %v1068, %v1071
      %v1073 = vmul.f32 %v1056, %v1072
      %v1074 = vmul.f32 %v1058, %v1072
      %v1075 = vadd.f32 %v1035, %v1073
      %v1076 = vadd.f32 %v1036, %v1074
      %v1077 = vld [vmem:[%s5 + $0x10] sm:$0x1]
      %v1078 = vlaneseq
      %v1079 = vshrl.u32 %v1078, 7
      %v1080 = vsub.s32 0, %v1079
      %v1081 = vrot.slane %v1077, %v1080
      %v1082 = vmul.f32 %v1056, %v1081
      %v1083 = vmul.f32 %v1058, %v1081
      %v1084 = vadd.f32 %v1044, %v1082
      %v1085 = vadd.f32 %v1045, %v1083
      %v1086 = vld [vmem:[%s6 + $0x1e] sm:$0x1]
      %v1087 = vlaneseq
      %v1088 = vshrl.u32 %v1087, 7
      %v1089 = vsub.s32 0, %v1088
      %v1090 = vrot.slane %v1086, %v1089
      %v1091 = vmul.f32 %v1056, %v1090
      %v1092 = vmul.f32 %v1058, %v1090
      %v1093 = vadd.f32 %v1053, %v1091
      %v1094 = vadd.f32 %v1054, %v1092
      %v1095 = vld [vmem:[%s3 + $0x1] sm:$0x1]
      %v1096 = vlaneseq
      %v1097 = vshrl.u32 %v1096, 7
      %v1098 = vsub.s32 0, %v1097
      %v1099 = vrot.slane %v1095, %v1098
      %v1100 = vmul.f32 %v987, %v1099
      %v1101 = vmul.f32 %v988, %v1099
      %v1102 = vadd.f32 %v1066, %v1100
      %v1103 = vadd.f32 %v1067, %v1101
      %v1104 = vld [vmem:[%s4 + $0x7] sm:$0x1]
      %v1105 = vlaneseq
      %v1106 = vshrl.u32 %v1105, 7
      %v1107 = vsub.s32 0, %v1106
      %v1108 = vrot.slane %v1104, %v1107
      %v1109 = vmul.f32 %v987, %v1108
      %v1110 = vmul.f32 %v988, %v1108
      %v1111 = vadd.f32 %v1075, %v1109
      %v1112 = vadd.f32 %v1076, %v1110
      %v1113 = vld [vmem:[%s5 + $0x11] sm:$0x1]
      %v1114 = vlaneseq
      %v1115 = vshrl.u32 %v1114, 7
      %v1116 = vsub.s32 0, %v1115
      %v1117 = vrot.slane %v1113, %v1116
      %v1118 = vmul.f32 %v987, %v1117
      %v1119 = vmul.f32 %v988, %v1117
      %v1120 = vadd.f32 %v1084, %v1118
      %v1121 = vadd.f32 %v1085, %v1119
      %v1122 = vld [vmem:[%s6 + $0x1f] sm:$0x1]
      %v1123 = vlaneseq
      %v1124 = vshrl.u32 %v1123, 7
      %v1125 = vsub.s32 0, %v1124
      %v1126 = vrot.slane %v1122, %v1125
      %v1127 = vmul.f32 %v987, %v1126
      %v1128 = vmul.f32 %v988, %v1126
      %v1129 = vadd.f32 %v1093, %v1127
      %v1130 = vadd.f32 %v1094, %v1128
      %1131 = vrot.lane.b32.xlu0 %v987, 120
      %v1132 = vpop.permute.xlu0 %1131
      %1133 = vrot.lane.b32.xlu0 %v988, 120
      %v1134 = vpop.permute.xlu0 %1133
      %v1135 = vld [vmem:[%s3 + $0x2] sm:$0x1]
      %v1136 = vlaneseq
      %v1137 = vshrl.u32 %v1136, 7
      %v1138 = vsub.s32 0, %v1137
      %v1139 = vrot.slane %v1135, %v1138
      %v1140 = vmul.f32 %v1132, %v1139
      %v1141 = vmul.f32 %v1134, %v1139
      %v1142 = vadd.f32 %v1102, %v1140
      %v1143 = vadd.f32 %v1103, %v1141
      %v1144 = vld [vmem:[%s4 + $0x8] sm:$0x1]
      %v1145 = vlaneseq
      %v1146 = vshrl.u32 %v1145, 7
      %v1147 = vsub.s32 0, %v1146
      %v1148 = vrot.slane %v1144, %v1147
      %v1149 = vmul.f32 %v1132, %v1148
      %v1150 = vmul.f32 %v1134, %v1148
      %v1151 = vadd.f32 %v1111, %v1149
      %v1152 = vadd.f32 %v1112, %v1150
      %v1153 = vld [vmem:[%s5 + $0x12] sm:$0x1]
      %v1154 = vlaneseq
      %v1155 = vshrl.u32 %v1154, 7
      %v1156 = vsub.s32 0, %v1155
      %v1157 = vrot.slane %v1153, %v1156
      %v1158 = vmul.f32 %v1132, %v1157
      %v1159 = vmul.f32 %v1134, %v1157
      %v1160 = vadd.f32 %v1120, %v1158
      %v1161 = vadd.f32 %v1121, %v1159
      %v1162 = vld [vmem:[%s6 + $0x20] sm:$0x1]
      %v1163 = vlaneseq
      %v1164 = vshrl.u32 %v1163, 7
      %v1165 = vsub.s32 0, %v1164
      %v1166 = vrot.slane %v1162, %v1165
      %v1167 = vmul.f32 %v1132, %v1166
      %v1168 = vmul.f32 %v1134, %v1166
      %v1169 = vadd.f32 %v1129, %v1167
      %v1170 = vadd.f32 %v1130, %v1168
      %1171 = vrot.lane.b32.xlu0 %v987, 112
      %v1172 = vpop.permute.xlu0 %1171
      %1173 = vrot.lane.b32.xlu0 %v988, 112
      %v1174 = vpop.permute.xlu0 %1173
      %v1175 = vld [vmem:[%s4 + $0x9] sm:$0x1]
      %v1176 = vlaneseq
      %v1177 = vshrl.u32 %v1176, 7
      %v1178 = vsub.s32 0, %v1177
      %v1179 = vrot.slane %v1175, %v1178
      %v1180 = vmul.f32 %v1172, %v1179
      %v1181 = vmul.f32 %v1174, %v1179
      %v1182 = vadd.f32 %v1151, %v1180
      %v1183 = vadd.f32 %v1152, %v1181
      %v1184 = vld [vmem:[%s5 + $0x13] sm:$0x1]
      %v1185 = vlaneseq
      %v1186 = vshrl.u32 %v1185, 7
      %v1187 = vsub.s32 0, %v1186
      %v1188 = vrot.slane %v1184, %v1187
      %v1189 = vmul.f32 %v1172, %v1188
      %v1190 = vmul.f32 %v1174, %v1188
      %v1191 = vadd.f32 %v1160, %v1189
      %v1192 = vadd.f32 %v1161, %v1190
      %v1193 = vld [vmem:[%s6 + $0x21] sm:$0x1]
      %v1194 = vlaneseq
      %v1195 = vshrl.u32 %v1194, 7
      %v1196 = vsub.s32 0, %v1195
      %v1197 = vrot.slane %v1193, %v1196
      %v1198 = vmul.f32 %v1172, %v1197
      %v1199 = vmul.f32 %v1174, %v1197
      %v1200 = vadd.f32 %v1169, %v1198
      %v1201 = vadd.f32 %v1170, %v1199
      %1202 = vrot.lane.b32.xlu0 %v987, 104
      %v1203 = vpop.permute.xlu0 %1202
      %1204 = vrot.lane.b32.xlu0 %v988, 104
      %v1205 = vpop.permute.xlu0 %1204
      %v1206 = vld [vmem:[%s5 + $0x14] sm:$0x1]
      %v1207 = vlaneseq
      %v1208 = vshrl.u32 %v1207, 7
      %v1209 = vsub.s32 0, %v1208
      %v1210 = vrot.slane %v1206, %v1209
      %v1211 = vmul.f32 %v1203, %v1210
      %v1212 = vmul.f32 %v1205, %v1210
      %v1213 = vadd.f32 %v1191, %v1211
      %v1214 = vadd.f32 %v1192, %v1212
      %v1215 = vld [vmem:[%s6 + $0x22] sm:$0x1]
      %v1216 = vlaneseq
      %v1217 = vshrl.u32 %v1216, 7
      %v1218 = vsub.s32 0, %v1217
      %v1219 = vrot.slane %v1215, %v1218
      %v1220 = vmul.f32 %v1203, %v1219
      %v1221 = vmul.f32 %v1205, %v1219
      %v1222 = vadd.f32 %v1200, %v1220
      %v1223 = vadd.f32 %v1201, %v1221
      %1224 = vrot.lane.b32.xlu0 %v987, 96
      %v1225 = vpop.permute.xlu0 %1224
      %1226 = vrot.lane.b32.xlu0 %v988, 96
      %v1227 = vpop.permute.xlu0 %1226
      %v1228 = vld [vmem:[%s6 + $0x23] sm:$0x1]
      %v1229 = vlaneseq
      %v1230 = vshrl.u32 %v1229, 7
      %v1231 = vsub.s32 0, %v1230
      %v1232 = vrot.slane %v1228, %v1231
      %v1233 = vmul.f32 %v1225, %v1232
      %v1234 = vmul.f32 %v1227, %v1232
      %v1235 = vadd.f32 %v1222, %v1233
      %v1236 = vadd.f32 %v1223, %v1234
      %v1237 = vld [vmem:[#allocation2 + $0x4] sm:$0xff]
      %v1238 = vld [vmem:[#allocation2 + $0xc] sm:$0xff]
      %1239 = vrot.lane.b32.xlu0 %v1237, 32
      %v1240 = vpop.permute.xlu0 %1239
      %1241 = vrot.lane.b32.xlu0 %v1238, 32
      %v1242 = vpop.permute.xlu0 %1241
      %v1243 = vld [vmem:[%s6 + $0x24] sm:$0x1]
      %v1244 = vlaneseq
      %v1245 = vshrl.u32 %v1244, 7
      %v1246 = vsub.s32 0, %v1245
      %v1247 = vrot.slane %v1243, %v1246
      %v1248 = vmul.f32 %v1240, %v1247
      %v1249 = vmul.f32 %v1242, %v1247
      %v1250 = vadd.f32 %v1235, %v1248
      %v1251 = vadd.f32 %v1236, %v1249
      %1252 = vrot.lane.b32.xlu0 %v1237, 24
      %v1253 = vpop.permute.xlu0 %1252
      %1254 = vrot.lane.b32.xlu0 %v1238, 24
      %v1255 = vpop.permute.xlu0 %1254
      %v1256 = vld [vmem:[%s5 + $0x15] sm:$0x1]
      %v1257 = vlaneseq
      %v1258 = vshrl.u32 %v1257, 7
      %v1259 = vsub.s32 0, %v1258
      %v1260 = vrot.slane %v1256, %v1259
      %v1261 = vmul.f32 %v1253, %v1260
      %v1262 = vmul.f32 %v1255, %v1260
      %v1263 = vadd.f32 %v1213, %v1261
      %v1264 = vadd.f32 %v1214, %v1262
      %v1265 = vld [vmem:[%s6 + $0x25] sm:$0x1]
      %v1266 = vlaneseq
      %v1267 = vshrl.u32 %v1266, 7
      %v1268 = vsub.s32 0, %v1267
      %v1269 = vrot.slane %v1265, %v1268
      %v1270 = vmul.f32 %v1253, %v1269
      %v1271 = vmul.f32 %v1255, %v1269
      %v1272 = vadd.f32 %v1250, %v1270
      %v1273 = vadd.f32 %v1251, %v1271
      %1274 = vrot.lane.b32.xlu0 %v1237, 16
      %v1275 = vpop.permute.xlu0 %1274
      %1276 = vrot.lane.b32.xlu0 %v1238, 16
      %v1277 = vpop.permute.xlu0 %1276
      %v1278 = vld [vmem:[%s4 + $0xa] sm:$0x1]
      %v1279 = vlaneseq
      %v1280 = vshrl.u32 %v1279, 7
      %v1281 = vsub.s32 0, %v1280
      %v1282 = vrot.slane %v1278, %v1281
      %v1283 = vmul.f32 %v1275, %v1282
      %v1284 = vmul.f32 %v1277, %v1282
      %v1285 = vadd.f32 %v1182, %v1283
      %v1286 = vadd.f32 %v1183, %v1284
      %v1287 = vld [vmem:[%s5 + $0x16] sm:$0x1]
      %v1288 = vlaneseq
      %v1289 = vshrl.u32 %v1288, 7
      %v1290 = vsub.s32 0, %v1289
      %v1291 = vrot.slane %v1287, %v1290
      %v1292 = vmul.f32 %v1275, %v1291
      %v1293 = vmul.f32 %v1277, %v1291
      %v1294 = vadd.f32 %v1263, %v1292
      %v1295 = vadd.f32 %v1264, %v1293
      %v1296 = vld [vmem:[%s6 + $0x26] sm:$0x1]
      %v1297 = vlaneseq
      %v1298 = vshrl.u32 %v1297, 7
      %v1299 = vsub.s32 0, %v1298
      %v1300 = vrot.slane %v1296, %v1299
      %v1301 = vmul.f32 %v1275, %v1300
      %v1302 = vmul.f32 %v1277, %v1300
      %v1303 = vadd.f32 %v1272, %v1301
      %v1304 = vadd.f32 %v1273, %v1302
      %1305 = vrot.lane.b32.xlu0 %v1237, 8
      %v1306 = vpop.permute.xlu0 %1305
      %1307 = vrot.lane.b32.xlu0 %v1238, 8
      %v1308 = vpop.permute.xlu0 %1307
      %v1309 = vld [vmem:[%s3 + $0x3] sm:$0x1]
      %v1310 = vlaneseq
      %v1311 = vshrl.u32 %v1310, 7
      %v1312 = vsub.s32 0, %v1311
      %v1313 = vrot.slane %v1309, %v1312
      %v1314 = vmul.f32 %v1306, %v1313
      %v1315 = vmul.f32 %v1308, %v1313
      %v1316 = vadd.f32 %v1142, %v1314
      %v1317 = vadd.f32 %v1143, %v1315
      %v1318 = vld [vmem:[%s4 + $0xb] sm:$0x1]
      %v1319 = vlaneseq
      %v1320 = vshrl.u32 %v1319, 7
      %v1321 = vsub.s32 0, %v1320
      %v1322 = vrot.slane %v1318, %v1321
      %v1323 = vmul.f32 %v1306, %v1322
      %v1324 = vmul.f32 %v1308, %v1322
      %v1325 = vadd.f32 %v1285, %v1323
      %v1326 = vadd.f32 %v1286, %v1324
      %v1327 = vld [vmem:[%s5 + $0x17] sm:$0x1]
      %v1328 = vlaneseq
      %v1329 = vshrl.u32 %v1328, 7
      %v1330 = vsub.s32 0, %v1329
      %v1331 = vrot.slane %v1327, %v1330
      %v1332 = vmul.f32 %v1306, %v1331
      %v1333 = vmul.f32 %v1308, %v1331
      %v1334 = vadd.f32 %v1294, %v1332
      %v1335 = vadd.f32 %v1295, %v1333
      %v1336 = vld [vmem:[%s6 + $0x27] sm:$0x1]
      %v1337 = vlaneseq
      %v1338 = vshrl.u32 %v1337, 7
      %v1339 = vsub.s32 0, %v1338
      %v1340 = vrot.slane %v1336, %v1339
      %v1341 = vmul.f32 %v1306, %v1340
      %v1342 = vmul.f32 %v1308, %v1340
      %v1343 = vadd.f32 %v1303, %v1341
      %v1344 = vadd.f32 %v1304, %v1342
      %v1345 = vld [vmem:[%s3 + $0x4] sm:$0x1]
      %v1346 = vlaneseq
      %v1347 = vshrl.u32 %v1346, 7
      %v1348 = vsub.s32 0, %v1347
      %v1349 = vrot.slane %v1345, %v1348
      %v1350 = vmul.f32 %v1237, %v1349
      %v1351 = vmul.f32 %v1238, %v1349
      %v1352 = vadd.f32 %v1316, %v1350
      %v1353 = vadd.f32 %v1317, %v1351
      %v1354 = vld [vmem:[%s4 + $0xc] sm:$0x1]
      %v1355 = vlaneseq
      %v1356 = vshrl.u32 %v1355, 7
      %v1357 = vsub.s32 0, %v1356
      %v1358 = vrot.slane %v1354, %v1357
      %v1359 = vmul.f32 %v1237, %v1358
      %v1360 = vmul.f32 %v1238, %v1358
      %v1361 = vadd.f32 %v1325, %v1359
      %v1362 = vadd.f32 %v1326, %v1360
      %v1363 = vld [vmem:[%s5 + $0x18] sm:$0x1]
      %v1364 = vlaneseq
      %v1365 = vshrl.u32 %v1364, 7
      %v1366 = vsub.s32 0, %v1365
      %v1367 = vrot.slane %v1363, %v1366
      %v1368 = vmul.f32 %v1237, %v1367
      %v1369 = vmul.f32 %v1238, %v1367
      %v1370 = vadd.f32 %v1334, %v1368
      %v1371 = vadd.f32 %v1335, %v1369
      %v1372 = vld [vmem:[%s6 + $0x28] sm:$0x1]
      %v1373 = vlaneseq
      %v1374 = vshrl.u32 %v1373, 7
      %v1375 = vsub.s32 0, %v1374
      %v1376 = vrot.slane %v1372, %v1375
      %v1377 = vmul.f32 %v1237, %v1376
      %v1378 = vmul.f32 %v1238, %v1376
      %v1379 = vadd.f32 %v1343, %v1377
      %v1380 = vadd.f32 %v1344, %v1378
      %1381 = vrot.lane.b32.xlu0 %v1237, 120
      %v1382 = vpop.permute.xlu0 %1381
      %1383 = vrot.lane.b32.xlu0 %v1238, 120
      %v1384 = vpop.permute.xlu0 %1383
      %v1385 = vld [vmem:[%s3 + $0x5] sm:$0x1]
      %v1386 = vlaneseq
      %v1387 = vshrl.u32 %v1386, 7
      %v1388 = vsub.s32 0, %v1387
      %v1389 = vrot.slane %v1385, %v1388
      %v1390 = vmul.f32 %v1382, %v1389
      %v1391 = vmul.f32 %v1384, %v1389
      %v1392 = vadd.f32 %v1352, %v1390
      %v1393 = vadd.f32 %v1353, %v1391
      %v1394 = vld [vmem:[%s4 + $0xd] sm:$0x1]
      %v1395 = vlaneseq
      %v1396 = vshrl.u32 %v1395, 7
      %v1397 = vsub.s32 0, %v1396
      %v1398 = vrot.slane %v1394, %v1397
      %v1399 = vmul.f32 %v1382, %v1398
      %v1400 = vmul.f32 %v1384, %v1398
      %v1401 = vadd.f32 %v1361, %v1399
      %v1402 = vadd.f32 %v1362, %v1400
      %v1403 = vld [vmem:[%s5 + $0x19] sm:$0x1]
      %v1404 = vlaneseq
      %v1405 = vshrl.u32 %v1404, 7
      %v1406 = vsub.s32 0, %v1405
      %v1407 = vrot.slane %v1403, %v1406
      %v1408 = vmul.f32 %v1382, %v1407
      %v1409 = vmul.f32 %v1384, %v1407
      %v1410 = vadd.f32 %v1370, %v1408
      %v1411 = vadd.f32 %v1371, %v1409
      %v1412 = vld [vmem:[%s6 + $0x29] sm:$0x1]
      %v1413 = vlaneseq
      %v1414 = vshrl.u32 %v1413, 7
      %v1415 = vsub.s32 0, %v1414
      %v1416 = vrot.slane %v1412, %v1415
      %v1417 = vmul.f32 %v1382, %v1416
      %v1418 = vmul.f32 %v1384, %v1416
      %v1419 = vadd.f32 %v1379, %v1417
      %v1420 = vadd.f32 %v1380, %v1418
      %1421 = vrot.lane.b32.xlu0 %v1237, 112
      %v1422 = vpop.permute.xlu0 %1421
      %1423 = vrot.lane.b32.xlu0 %v1238, 112
      %v1424 = vpop.permute.xlu0 %1423
      %v1425 = vld [vmem:[%s4 + $0xe] sm:$0x1]
      %v1426 = vlaneseq
      %v1427 = vshrl.u32 %v1426, 7
      %v1428 = vsub.s32 0, %v1427
      %v1429 = vrot.slane %v1425, %v1428
      %v1430 = vmul.f32 %v1422, %v1429
      %v1431 = vmul.f32 %v1424, %v1429
      %v1432 = vadd.f32 %v1401, %v1430
      %v1433 = vadd.f32 %v1402, %v1431
      %v1434 = vld [vmem:[%s5 + $0x1a] sm:$0x1]
      %v1435 = vlaneseq
      %v1436 = vshrl.u32 %v1435, 7
      %v1437 = vsub.s32 0, %v1436
      %v1438 = vrot.slane %v1434, %v1437
      %v1439 = vmul.f32 %v1422, %v1438
      %v1440 = vmul.f32 %v1424, %v1438
      %v1441 = vadd.f32 %v1410, %v1439
      %v1442 = vadd.f32 %v1411, %v1440
      %v1443 = vld [vmem:[%s6 + $0x2a] sm:$0x1]
      %v1444 = vlaneseq
      %v1445 = vshrl.u32 %v1444, 7
      %v1446 = vsub.s32 0, %v1445
      %v1447 = vrot.slane %v1443, %v1446
      %v1448 = vmul.f32 %v1422, %v1447
      %v1449 = vmul.f32 %v1424, %v1447
      %v1450 = vadd.f32 %v1419, %v1448
      %v1451 = vadd.f32 %v1420, %v1449
      %1452 = vrot.lane.b32.xlu0 %v1237, 104
      %v1453 = vpop.permute.xlu0 %1452
      %1454 = vrot.lane.b32.xlu0 %v1238, 104
      %v1455 = vpop.permute.xlu0 %1454
      %v1456 = vld [vmem:[%s5 + $0x1b] sm:$0x1]
      %v1457 = vlaneseq
      %v1458 = vshrl.u32 %v1457, 7
      %v1459 = vsub.s32 0, %v1458
      %v1460 = vrot.slane %v1456, %v1459
      %v1461 = vmul.f32 %v1453, %v1460
      %v1462 = vmul.f32 %v1455, %v1460
      %v1463 = vadd.f32 %v1441, %v1461
      %v1464 = vadd.f32 %v1442, %v1462
      %v1465 = vld [vmem:[%s6 + $0x2b] sm:$0x1]
      %v1466 = vlaneseq
      %v1467 = vshrl.u32 %v1466, 7
      %v1468 = vsub.s32 0, %v1467
      %v1469 = vrot.slane %v1465, %v1468
      %v1470 = vmul.f32 %v1453, %v1469
      %v1471 = vmul.f32 %v1455, %v1469
      %v1472 = vadd.f32 %v1450, %v1470
      %v1473 = vadd.f32 %v1451, %v1471
      %1474 = vrot.lane.b32.xlu0 %v1237, 96
      %v1475 = vpop.permute.xlu0 %1474
      %1476 = vrot.lane.b32.xlu0 %v1238, 96
      %v1477 = vpop.permute.xlu0 %1476
      %v1478 = vld [vmem:[%s6 + $0x2c] sm:$0x1]
      %v1479 = vlaneseq
      %v1480 = vshrl.u32 %v1479, 7
      %v1481 = vsub.s32 0, %v1480
      %v1482 = vrot.slane %v1478, %v1481
      %v1483 = vmul.f32 %v1475, %v1482
      %v1484 = vmul.f32 %v1477, %v1482
      %v1485 = vadd.f32 %v1472, %v1483
      %v1486 = vadd.f32 %v1473, %v1484
      %v1487 = vld [vmem:[#allocation2 + $0x5] sm:$0xff]
      %v1488 = vld [vmem:[#allocation2 + $0xd] sm:$0xff]
      %1489 = vrot.lane.b32.xlu0 %v1487, 32
      %v1490 = vpop.permute.xlu0 %1489
      %1491 = vrot.lane.b32.xlu0 %v1488, 32
      %v1492 = vpop.permute.xlu0 %1491
      %v1493 = vld [vmem:[%s6 + $0x2d] sm:$0x1]
      %v1494 = vlaneseq
      %v1495 = vshrl.u32 %v1494, 7
      %v1496 = vsub.s32 0, %v1495
      %v1497 = vrot.slane %v1493, %v1496
      %v1498 = vmul.f32 %v1490, %v1497
      %v1499 = vmul.f32 %v1492, %v1497
      %v1500 = vadd.f32 %v1485, %v1498
      %v1501 = vadd.f32 %v1486, %v1499
      %1502 = vrot.lane.b32.xlu0 %v1487, 24
      %v1503 = vpop.permute.xlu0 %1502
      %1504 = vrot.lane.b32.xlu0 %v1488, 24
      %v1505 = vpop.permute.xlu0 %1504
      %v1506 = vld [vmem:[%s5 + $0x1c] sm:$0x1]
      %v1507 = vlaneseq
      %v1508 = vshrl.u32 %v1507, 7
      %v1509 = vsub.s32 0, %v1508
      %v1510 = vrot.slane %v1506, %v1509
      %v1511 = vmul.f32 %v1503, %v1510
      %v1512 = vmul.f32 %v1505, %v1510
      %v1513 = vadd.f32 %v1463, %v1511
      %v1514 = vadd.f32 %v1464, %v1512
      %v1515 = vld [vmem:[%s6 + $0x2e] sm:$0x1]
      %v1516 = vlaneseq
      %v1517 = vshrl.u32 %v1516, 7
      %v1518 = vsub.s32 0, %v1517
      %v1519 = vrot.slane %v1515, %v1518
      %v1520 = vmul.f32 %v1503, %v1519
      %v1521 = vmul.f32 %v1505, %v1519
      %v1522 = vadd.f32 %v1500, %v1520
      %v1523 = vadd.f32 %v1501, %v1521
      %1524 = vrot.lane.b32.xlu0 %v1487, 16
      %v1525 = vpop.permute.xlu0 %1524
      %1526 = vrot.lane.b32.xlu0 %v1488, 16
      %v1527 = vpop.permute.xlu0 %1526
      %v1528 = vld [vmem:[%s4 + $0xf] sm:$0x1]
      %v1529 = vlaneseq
      %v1530 = vshrl.u32 %v1529, 7
      %v1531 = vsub.s32 0, %v1530
      %v1532 = vrot.slane %v1528, %v1531
      %v1533 = vmul.f32 %v1525, %v1532
      %v1534 = vmul.f32 %v1527, %v1532
      %v1535 = vadd.f32 %v1432, %v1533
      %v1536 = vadd.f32 %v1433, %v1534
      %v1537 = vld [vmem:[%s5 + $0x1d] sm:$0x1]
      %v1538 = vlaneseq
      %v1539 = vshrl.u32 %v1538, 7
      %v1540 = vsub.s32 0, %v1539
      %v1541 = vrot.slane %v1537, %v1540
      %v1542 = vmul.f32 %v1525, %v1541
      %v1543 = vmul.f32 %v1527, %v1541
      %v1544 = vadd.f32 %v1513, %v1542
      %v1545 = vadd.f32 %v1514, %v1543
      %v1546 = vld [vmem:[%s6 + $0x2f] sm:$0x1]
      %v1547 = vlaneseq
      %v1548 = vshrl.u32 %v1547, 7
      %v1549 = vsub.s32 0, %v1548
      %v1550 = vrot.slane %v1546, %v1549
      %v1551 = vmul.f32 %v1525, %v1550
      %v1552 = vmul.f32 %v1527, %v1550
      %v1553 = vadd.f32 %v1522, %v1551
      %v1554 = vadd.f32 %v1523, %v1552
      %1555 = vrot.lane.b32.xlu0 %v1487, 8
      %v1556 = vpop.permute.xlu0 %1555
      %1557 = vrot.lane.b32.xlu0 %v1488, 8
      %v1558 = vpop.permute.xlu0 %1557
      %v1559 = vld [vmem:[%s3 + $0x6] sm:$0x1]
      %v1560 = vlaneseq
      %v1561 = vshrl.u32 %v1560, 7
      %v1562 = vsub.s32 0, %v1561
      %v1563 = vrot.slane %v1559, %v1562
      %v1564 = vmul.f32 %v1556, %v1563
      %v1565 = vmul.f32 %v1558, %v1563
      %v1566 = vadd.f32 %v1392, %v1564
      %v1567 = vadd.f32 %v1393, %v1565
      %v1568 = vld [vmem:[%s4 + $0x10] sm:$0x1]
      %v1569 = vlaneseq
      %v1570 = vshrl.u32 %v1569, 7
      %v1571 = vsub.s32 0, %v1570
      %v1572 = vrot.slane %v1568, %v1571
      %v1573 = vmul.f32 %v1556, %v1572
      %v1574 = vmul.f32 %v1558, %v1572
      %v1575 = vadd.f32 %v1535, %v1573
      %v1576 = vadd.f32 %v1536, %v1574
      %v1577 = vld [vmem:[%s5 + $0x1e] sm:$0x1]
      %v1578 = vlaneseq
      %v1579 = vshrl.u32 %v1578, 7
      %v1580 = vsub.s32 0, %v1579
      %v1581 = vrot.slane %v1577, %v1580
      %v1582 = vmul.f32 %v1556, %v1581
      %v1583 = vmul.f32 %v1558, %v1581
      %v1584 = vadd.f32 %v1544, %v1582
      %v1585 = vadd.f32 %v1545, %v1583
      %v1586 = vld [vmem:[%s6 + $0x30] sm:$0x1]
      %v1587 = vlaneseq
      %v1588 = vshrl.u32 %v1587, 7
      %v1589 = vsub.s32 0, %v1588
      %v1590 = vrot.slane %v1586, %v1589
      %v1591 = vmul.f32 %v1556, %v1590
      %v1592 = vmul.f32 %v1558, %v1590
      %v1593 = vadd.f32 %v1553, %v1591
      %v1594 = vadd.f32 %v1554, %v1592
      %v1595 = vld [vmem:[%s3 + $0x7] sm:$0x1]
      %v1596 = vlaneseq
      %v1597 = vshrl.u32 %v1596, 7
      %v1598 = vsub.s32 0, %v1597
      %v1599 = vrot.slane %v1595, %v1598
      %v1600 = vmul.f32 %v1487, %v1599
      %v1601 = vmul.f32 %v1488, %v1599
      %v1602 = vadd.f32 %v1566, %v1600
      %v1603 = vadd.f32 %v1567, %v1601
      %v1604 = vld [vmem:[%s4 + $0x11] sm:$0x1]
      %v1605 = vlaneseq
      %v1606 = vshrl.u32 %v1605, 7
      %v1607 = vsub.s32 0, %v1606
      %v1608 = vrot.slane %v1604, %v1607
      %v1609 = vmul.f32 %v1487, %v1608
      %v1610 = vmul.f32 %v1488, %v1608
      %v1611 = vadd.f32 %v1575, %v1609
      %v1612 = vadd.f32 %v1576, %v1610
      %v1613 = vld [vmem:[%s5 + $0x1f] sm:$0x1]
      %v1614 = vlaneseq
      %v1615 = vshrl.u32 %v1614, 7
      %v1616 = vsub.s32 0, %v1615
      %v1617 = vrot.slane %v1613, %v1616
      %v1618 = vmul.f32 %v1487, %v1617
      %v1619 = vmul.f32 %v1488, %v1617
      %v1620 = vadd.f32 %v1584, %v1618
      %v1621 = vadd.f32 %v1585, %v1619
      %v1622 = vld [vmem:[%s6 + $0x31] sm:$0x1]
      %v1623 = vlaneseq
      %v1624 = vshrl.u32 %v1623, 7
      %v1625 = vsub.s32 0, %v1624
      %v1626 = vrot.slane %v1622, %v1625
      %v1627 = vmul.f32 %v1487, %v1626
      %v1628 = vmul.f32 %v1488, %v1626
      %v1629 = vadd.f32 %v1593, %v1627
      %v1630 = vadd.f32 %v1594, %v1628
      %1631 = vrot.lane.b32.xlu0 %v1487, 120
      %v1632 = vpop.permute.xlu0 %1631
      %1633 = vrot.lane.b32.xlu0 %v1488, 120
      %v1634 = vpop.permute.xlu0 %1633
      %v1635 = vld [vmem:[%s3 + $0x8] sm:$0x1]
      %v1636 = vlaneseq
      %v1637 = vshrl.u32 %v1636, 7
      %v1638 = vsub.s32 0, %v1637
      %v1639 = vrot.slane %v1635, %v1638
      %v1640 = vmul.f32 %v1632, %v1639
      %v1641 = vmul.f32 %v1634, %v1639
      %v1642 = vadd.f32 %v1602, %v1640
      %v1643 = vadd.f32 %v1603, %v1641
      %v1644 = vld [vmem:[%s4 + $0x12] sm:$0x1]
      %v1645 = vlaneseq
      %v1646 = vshrl.u32 %v1645, 7
      %v1647 = vsub.s32 0, %v1646
      %v1648 = vrot.slane %v1644, %v1647
      %v1649 = vmul.f32 %v1632, %v1648
      %v1650 = vmul.f32 %v1634, %v1648
      %v1651 = vadd.f32 %v1611, %v1649
      %v1652 = vadd.f32 %v1612, %v1650
      %v1653 = vld [vmem:[%s5 + $0x20] sm:$0x1]
      %v1654 = vlaneseq
      %v1655 = vshrl.u32 %v1654, 7
      %v1656 = vsub.s32 0, %v1655
      %v1657 = vrot.slane %v1653, %v1656
      %v1658 = vmul.f32 %v1632, %v1657
      %v1659 = vmul.f32 %v1634, %v1657
      %v1660 = vadd.f32 %v1620, %v1658
      %v1661 = vadd.f32 %v1621, %v1659
      %v1662 = vld [vmem:[%s6 + $0x32] sm:$0x1]
      %v1663 = vlaneseq
      %v1664 = vshrl.u32 %v1663, 7
      %v1665 = vsub.s32 0, %v1664
      %v1666 = vrot.slane %v1662, %v1665
      %v1667 = vmul.f32 %v1632, %v1666
      %v1668 = vmul.f32 %v1634, %v1666
      %v1669 = vadd.f32 %v1629, %v1667
      %v1670 = vadd.f32 %v1630, %v1668
      %1671 = vrot.lane.b32.xlu0 %v1487, 112
      %v1672 = vpop.permute.xlu0 %1671
      %1673 = vrot.lane.b32.xlu0 %v1488, 112
      %v1674 = vpop.permute.xlu0 %1673
      %v1675 = vld [vmem:[%s4 + $0x13] sm:$0x1]
      %v1676 = vlaneseq
      %v1677 = vshrl.u32 %v1676, 7
      %v1678 = vsub.s32 0, %v1677
      %v1679 = vrot.slane %v1675, %v1678
      %v1680 = vmul.f32 %v1672, %v1679
      %v1681 = vmul.f32 %v1674, %v1679
      %v1682 = vadd.f32 %v1651, %v1680
      %v1683 = vadd.f32 %v1652, %v1681
      %v1684 = vld [vmem:[%s5 + $0x21] sm:$0x1]
      %v1685 = vlaneseq
      %v1686 = vshrl.u32 %v1685, 7
      %v1687 = vsub.s32 0, %v1686
      %v1688 = vrot.slane %v1684, %v1687
      %v1689 = vmul.f32 %v1672, %v1688
      %v1690 = vmul.f32 %v1674, %v1688
      %v1691 = vadd.f32 %v1660, %v1689
      %v1692 = vadd.f32 %v1661, %v1690
      %v1693 = vld [vmem:[%s6 + $0x33] sm:$0x1]
      %v1694 = vlaneseq
      %v1695 = vshrl.u32 %v1694, 7
      %v1696 = vsub.s32 0, %v1695
      %v1697 = vrot.slane %v1693, %v1696
      %v1698 = vmul.f32 %v1672, %v1697
      %v1699 = vmul.f32 %v1674, %v1697
      %v1700 = vadd.f32 %v1669, %v1698
      %v1701 = vadd.f32 %v1670, %v1699
      %1702 = vrot.lane.b32.xlu0 %v1487, 104
      %v1703 = vpop.permute.xlu0 %1702
      %1704 = vrot.lane.b32.xlu0 %v1488, 104
      %v1705 = vpop.permute.xlu0 %1704
      %v1706 = vld [vmem:[%s5 + $0x22] sm:$0x1]
      %v1707 = vlaneseq
      %v1708 = vshrl.u32 %v1707, 7
      %v1709 = vsub.s32 0, %v1708
      %v1710 = vrot.slane %v1706, %v1709
      %v1711 = vmul.f32 %v1703, %v1710
      %v1712 = vmul.f32 %v1705, %v1710
      %v1713 = vadd.f32 %v1691, %v1711
      %v1714 = vadd.f32 %v1692, %v1712
      %v1715 = vld [vmem:[%s6 + $0x34] sm:$0x1]
      %v1716 = vlaneseq
      %v1717 = vshrl.u32 %v1716, 7
      %v1718 = vsub.s32 0, %v1717
      %v1719 = vrot.slane %v1715, %v1718
      %v1720 = vmul.f32 %v1703, %v1719
      %v1721 = vmul.f32 %v1705, %v1719
      %v1722 = vadd.f32 %v1700, %v1720
      %v1723 = vadd.f32 %v1701, %v1721
      %1724 = vrot.lane.b32.xlu0 %v1487, 96
      %v1725 = vpop.permute.xlu0 %1724
      %1726 = vrot.lane.b32.xlu0 %v1488, 96
      %v1727 = vpop.permute.xlu0 %1726
      %v1728 = vld [vmem:[%s6 + $0x35] sm:$0x1]
      %v1729 = vlaneseq
      %v1730 = vshrl.u32 %v1729, 7
      %v1731 = vsub.s32 0, %v1730
      %v1732 = vrot.slane %v1728, %v1731
      %v1733 = vmul.f32 %v1725, %v1732
      %v1734 = vmul.f32 %v1727, %v1732
      %v1735 = vadd.f32 %v1722, %v1733
      %v1736 = vadd.f32 %v1723, %v1734
      %v1737 = vld [vmem:[#allocation2 + $0x6] sm:$0xff]
      %v1738 = vld [vmem:[#allocation2 + $0xe] sm:$0xff]
      %1739 = vrot.lane.b32.xlu0 %v1737, 32
      %v1740 = vpop.permute.xlu0 %1739
      %1741 = vrot.lane.b32.xlu0 %v1738, 32
      %v1742 = vpop.permute.xlu0 %1741
      %v1743 = vld [vmem:[%s6 + $0x36] sm:$0x1]
      %v1744 = vlaneseq
      %v1745 = vshrl.u32 %v1744, 7
      %v1746 = vsub.s32 0, %v1745
      %v1747 = vrot.slane %v1743, %v1746
      %v1748 = vmul.f32 %v1740, %v1747
      %v1749 = vmul.f32 %v1742, %v1747
      %v1750 = vadd.f32 %v1735, %v1748
      %v1751 = vadd.f32 %v1736, %v1749
      %1752 = vrot.lane.b32.xlu0 %v1737, 24
      %v1753 = vpop.permute.xlu0 %1752
      %1754 = vrot.lane.b32.xlu0 %v1738, 24
      %v1755 = vpop.permute.xlu0 %1754
      %v1756 = vld [vmem:[%s5 + $0x23] sm:$0x1]
      %v1757 = vlaneseq
      %v1758 = vshrl.u32 %v1757, 7
      %v1759 = vsub.s32 0, %v1758
      %v1760 = vrot.slane %v1756, %v1759
      %v1761 = vmul.f32 %v1753, %v1760
      %v1762 = vmul.f32 %v1755, %v1760
      %v1763 = vadd.f32 %v1713, %v1761
      %v1764 = vadd.f32 %v1714, %v1762
      %v1765 = vld [vmem:[%s6 + $0x37] sm:$0x1]
      %v1766 = vlaneseq
      %v1767 = vshrl.u32 %v1766, 7
      %v1768 = vsub.s32 0, %v1767
      %v1769 = vrot.slane %v1765, %v1768
      %v1770 = vmul.f32 %v1753, %v1769
      %v1771 = vmul.f32 %v1755, %v1769
      %v1772 = vadd.f32 %v1750, %v1770
      %v1773 = vadd.f32 %v1751, %v1771
      %1774 = vrot.lane.b32.xlu0 %v1737, 16
      %v1775 = vpop.permute.xlu0 %1774
      %1776 = vrot.lane.b32.xlu0 %v1738, 16
      %v1777 = vpop.permute.xlu0 %1776
      %v1778 = vld [vmem:[%s4 + $0x14] sm:$0x1]
      %v1779 = vlaneseq
      %v1780 = vshrl.u32 %v1779, 7
      %v1781 = vsub.s32 0, %v1780
      %v1782 = vrot.slane %v1778, %v1781
      %v1783 = vmul.f32 %v1775, %v1782
      %v1784 = vmul.f32 %v1777, %v1782
      %v1785 = vadd.f32 %v1682, %v1783
      %v1786 = vadd.f32 %v1683, %v1784
      %v1787 = vld [vmem:[%s5 + $0x24] sm:$0x1]
      %v1788 = vlaneseq
      %v1789 = vshrl.u32 %v1788, 7
      %v1790 = vsub.s32 0, %v1789
      %v1791 = vrot.slane %v1787, %v1790
      %v1792 = vmul.f32 %v1775, %v1791
      %v1793 = vmul.f32 %v1777, %v1791
      %v1794 = vadd.f32 %v1763, %v1792
      %v1795 = vadd.f32 %v1764, %v1793
      %v1796 = vld [vmem:[%s6 + $0x38] sm:$0x1]
      %v1797 = vlaneseq
      %v1798 = vshrl.u32 %v1797, 7
      %v1799 = vsub.s32 0, %v1798
      %v1800 = vrot.slane %v1796, %v1799
      %v1801 = vmul.f32 %v1775, %v1800
      %v1802 = vmul.f32 %v1777, %v1800
      %v1803 = vadd.f32 %v1772, %v1801
      %v1804 = vadd.f32 %v1773, %v1802
      %1805 = vrot.lane.b32.xlu0 %v1737, 8
      %v1806 = vpop.permute.xlu0 %1805
      %1807 = vrot.lane.b32.xlu0 %v1738, 8
      %v1808 = vpop.permute.xlu0 %1807
      %v1809 = vld [vmem:[%s4 + $0x15] sm:$0x1]
      %v1810 = vlaneseq
      %v1811 = vshrl.u32 %v1810, 7
      %v1812 = vsub.s32 0, %v1811
      %v1813 = vrot.slane %v1809, %v1812
      %v1814 = vmul.f32 %v1806, %v1813
      %v1815 = vmul.f32 %v1808, %v1813
      %v1816 = vadd.f32 %v1785, %v1814
      %v1817 = vadd.f32 %v1786, %v1815
      %v1818 = vld [vmem:[%s5 + $0x25] sm:$0x1]
      %v1819 = vlaneseq
      %v1820 = vshrl.u32 %v1819, 7
      %v1821 = vsub.s32 0, %v1820
      %v1822 = vrot.slane %v1818, %v1821
      %v1823 = vmul.f32 %v1806, %v1822
      %v1824 = vmul.f32 %v1808, %v1822
      %v1825 = vadd.f32 %v1794, %v1823
      %v1826 = vadd.f32 %v1795, %v1824
      %v1827 = vld [vmem:[%s6 + $0x39] sm:$0x1]
      %v1828 = vlaneseq
      %v1829 = vshrl.u32 %v1828, 7
      %v1830 = vsub.s32 0, %v1829
      %v1831 = vrot.slane %v1827, %v1830
      %v1832 = vmul.f32 %v1806, %v1831
      %v1833 = vmul.f32 %v1808, %v1831
      %v1834 = vadd.f32 %v1803, %v1832
      %v1835 = vadd.f32 %v1804, %v1833
      %v1836 = vld [vmem:[%s4 + $0x16] sm:$0x1]
      %v1837 = vlaneseq
      %v1838 = vshrl.u32 %v1837, 7
      %v1839 = vsub.s32 0, %v1838
      %v1840 = vrot.slane %v1836, %v1839
      %v1841 = vmul.f32 %v1737, %v1840
      %v1842 = vmul.f32 %v1738, %v1840
      %v1843 = vadd.f32 %v1816, %v1841
      %v1844 = vadd.f32 %v1817, %v1842
      %v1845 = vld [vmem:[%s5 + $0x26] sm:$0x1]
      %v1846 = vlaneseq
      %v1847 = vshrl.u32 %v1846, 7
      %v1848 = vsub.s32 0, %v1847
      %v1849 = vrot.slane %v1845, %v1848
      %v1850 = vmul.f32 %v1737, %v1849
      %v1851 = vmul.f32 %v1738, %v1849
      %v1852 = vadd.f32 %v1825, %v1850
      %v1853 = vadd.f32 %v1826, %v1851
      %v1854 = vld [vmem:[%s6 + $0x3a] sm:$0x1]
      %v1855 = vlaneseq
      %v1856 = vshrl.u32 %v1855, 7
      %v1857 = vsub.s32 0, %v1856
      %v1858 = vrot.slane %v1854, %v1857
      %v1859 = vmul.f32 %v1737, %v1858
      %v1860 = vmul.f32 %v1738, %v1858
      %v1861 = vadd.f32 %v1834, %v1859
      %v1862 = vadd.f32 %v1835, %v1860
      %1863 = vrot.lane.b32.xlu0 %v1737, 120
      %v1864 = vpop.permute.xlu0 %1863
      %1865 = vrot.lane.b32.xlu0 %v1738, 120
      %v1866 = vpop.permute.xlu0 %1865
      %v1867 = vld [vmem:[%s4 + $0x17] sm:$0x1]
      %v1868 = vlaneseq
      %v1869 = vshrl.u32 %v1868, 7
      %v1870 = vsub.s32 0, %v1869
      %v1871 = vrot.slane %v1867, %v1870
      %v1872 = vmul.f32 %v1864, %v1871
      %v1873 = vmul.f32 %v1866, %v1871
      %v1874 = vadd.f32 %v1843, %v1872
      %v1875 = vadd.f32 %v1844, %v1873
      %v1876 = vld [vmem:[%s5 + $0x27] sm:$0x1]
      %v1877 = vlaneseq
      %v1878 = vshrl.u32 %v1877, 7
      %v1879 = vsub.s32 0, %v1878
      %v1880 = vrot.slane %v1876, %v1879
      %v1881 = vmul.f32 %v1864, %v1880
      %v1882 = vmul.f32 %v1866, %v1880
      %v1883 = vadd.f32 %v1852, %v1881
      %v1884 = vadd.f32 %v1853, %v1882
      %v1885 = vld [vmem:[%s6 + $0x3b] sm:$0x1]
      %v1886 = vlaneseq
      %v1887 = vshrl.u32 %v1886, 7
      %v1888 = vsub.s32 0, %v1887
      %v1889 = vrot.slane %v1885, %v1888
      %v1890 = vmul.f32 %v1864, %v1889
      %v1891 = vmul.f32 %v1866, %v1889
      %v1892 = vadd.f32 %v1861, %v1890
      %v1893 = vadd.f32 %v1862, %v1891
      %1894 = vrot.lane.b32.xlu0 %v1737, 112
      %v1895 = vpop.permute.xlu0 %1894
      %1896 = vrot.lane.b32.xlu0 %v1738, 112
      %v1897 = vpop.permute.xlu0 %1896
      %v1898 = vld [vmem:[%s4 + $0x18] sm:$0x1]
      %v1899 = vlaneseq
      %v1900 = vshrl.u32 %v1899, 7
      %v1901 = vsub.s32 0, %v1900
      %v1902 = vrot.slane %v1898, %v1901
      %v1903 = vmul.f32 %v1895, %v1902
      %v1904 = vmul.f32 %v1897, %v1902
      %v1905 = vadd.f32 %v1874, %v1903
      %v1906 = vadd.f32 %v1875, %v1904
      %v1907 = vld [vmem:[%s5 + $0x28] sm:$0x1]
      %v1908 = vlaneseq
      %v1909 = vshrl.u32 %v1908, 7
      %v1910 = vsub.s32 0, %v1909
      %v1911 = vrot.slane %v1907, %v1910
      %v1912 = vmul.f32 %v1895, %v1911
      %v1913 = vmul.f32 %v1897, %v1911
      %v1914 = vadd.f32 %v1883, %v1912
      %v1915 = vadd.f32 %v1884, %v1913
      %v1916 = vld [vmem:[%s6 + $0x3c] sm:$0x1]
      %v1917 = vlaneseq
      %v1918 = vshrl.u32 %v1917, 7
      %v1919 = vsub.s32 0, %v1918
      %v1920 = vrot.slane %v1916, %v1919
      %v1921 = vmul.f32 %v1895, %v1920
      %v1922 = vmul.f32 %v1897, %v1920
      %v1923 = vadd.f32 %v1892, %v1921
      %v1924 = vadd.f32 %v1893, %v1922
      %1925 = vrot.lane.b32.xlu0 %v1737, 104
      %v1926 = vpop.permute.xlu0 %1925
      %1927 = vrot.lane.b32.xlu0 %v1738, 104
      %v1928 = vpop.permute.xlu0 %1927
      %v1929 = vld [vmem:[%s5 + $0x29] sm:$0x1]
      %v1930 = vlaneseq
      %v1931 = vshrl.u32 %v1930, 7
      %v1932 = vsub.s32 0, %v1931
      %v1933 = vrot.slane %v1929, %v1932
      %v1934 = vmul.f32 %v1926, %v1933
      %v1935 = vmul.f32 %v1928, %v1933
      %v1936 = vadd.f32 %v1914, %v1934
      %v1937 = vadd.f32 %v1915, %v1935
      %v1938 = vld [vmem:[%s6 + $0x3d] sm:$0x1]
      %v1939 = vlaneseq
      %v1940 = vshrl.u32 %v1939, 7
      %v1941 = vsub.s32 0, %v1940
      %v1942 = vrot.slane %v1938, %v1941
      %v1943 = vmul.f32 %v1926, %v1942
      %v1944 = vmul.f32 %v1928, %v1942
      %v1945 = vadd.f32 %v1923, %v1943
      %v1946 = vadd.f32 %v1924, %v1944
      %1947 = vrot.lane.b32.xlu0 %v1737, 96
      %v1948 = vpop.permute.xlu0 %1947
      %1949 = vrot.lane.b32.xlu0 %v1738, 96
      %v1950 = vpop.permute.xlu0 %1949
      %v1951 = vld [vmem:[%s6 + $0x3e] sm:$0x1]
      %v1952 = vlaneseq
      %v1953 = vshrl.u32 %v1952, 7
      %v1954 = vsub.s32 0, %v1953
      %v1955 = vrot.slane %v1951, %v1954
      %v1956 = vmul.f32 %v1948, %v1955
      %v1957 = vmul.f32 %v1950, %v1955
      %v1958 = vadd.f32 %v1945, %v1956
      %v1959 = vadd.f32 %v1946, %v1957
      %v1960 = vld [vmem:[#allocation2 + $0x7] sm:$0xff]
      %v1961 = vld [vmem:[#allocation2 + $0xf] sm:$0xff]
      %1962 = vrot.lane.b32.xlu0 %v1960, 32
      %v1963 = vpop.permute.xlu0 %1962
      %1964 = vrot.lane.b32.xlu0 %v1961, 32
      %v1965 = vpop.permute.xlu0 %1964
      %v1966 = vld [vmem:[%s6 + $0x3f] sm:$0x1]
      %v1967 = vlaneseq
      %v1968 = vshrl.u32 %v1967, 7
      %v1969 = vsub.s32 0, %v1968
      %v1970 = vrot.slane %v1966, %v1969
      %v1971 = vmul.f32 %v1963, %v1970
      %v1972 = vmul.f32 %v1965, %v1970
      %v1973 = vadd.f32 %v1958, %v1971
      %v1974 = vadd.f32 %v1959, %v1972
      %1975 = vrot.lane.b32.xlu0 %v1960, 24
      %v1976 = vpop.permute.xlu0 %1975
      %1977 = vrot.lane.b32.xlu0 %v1961, 24
      %v1978 = vpop.permute.xlu0 %1977
      %v1979 = vld [vmem:[%s5 + $0x2a] sm:$0x1]
      %v1980 = vlaneseq
      %v1981 = vshrl.u32 %v1980, 7
      %v1982 = vsub.s32 0, %v1981
      %v1983 = vrot.slane %v1979, %v1982
      %v1984 = vmul.f32 %v1976, %v1983
      %v1985 = vmul.f32 %v1978, %v1983
      %v1986 = vadd.f32 %v1936, %v1984
      %v1987 = vadd.f32 %v1937, %v1985
      %v1988 = vld [vmem:[%s6 + $0x40] sm:$0x1]
      %v1989 = vlaneseq
      %v1990 = vshrl.u32 %v1989, 7
      %v1991 = vsub.s32 0, %v1990
      %v1992 = vrot.slane %v1988, %v1991
      %v1993 = vmul.f32 %v1976, %v1992
      %v1994 = vmul.f32 %v1978, %v1992
      %v1995 = vadd.f32 %v1973, %v1993
      %v1996 = vadd.f32 %v1974, %v1994
      %1997 = vrot.lane.b32.xlu0 %v1960, 16
      %v1998 = vpop.permute.xlu0 %1997
      %1999 = vrot.lane.b32.xlu0 %v1961, 16
      %v2000 = vpop.permute.xlu0 %1999
      %v2001 = vld [vmem:[%s5 + $0x2b] sm:$0x1]
      %v2002 = vlaneseq
      %v2003 = vshrl.u32 %v2002, 7
      %v2004 = vsub.s32 0, %v2003
      %v2005 = vrot.slane %v2001, %v2004
      %v2006 = vmul.f32 %v1998, %v2005
      %v2007 = vmul.f32 %v2000, %v2005
      %v2008 = vadd.f32 %v1986, %v2006
      %v2009 = vadd.f32 %v1987, %v2007
      %v2010 = vld [vmem:[%s6 + $0x41] sm:$0x1]
      %v2011 = vlaneseq
      %v2012 = vshrl.u32 %v2011, 7
      %v2013 = vsub.s32 0, %v2012
      %v2014 = vrot.slane %v2010, %v2013
      %v2015 = vmul.f32 %v1998, %v2014
      %v2016 = vmul.f32 %v2000, %v2014
      %v2017 = vadd.f32 %v1995, %v2015
      %v2018 = vadd.f32 %v1996, %v2016
      %2019 = vrot.lane.b32.xlu0 %v1960, 8
      %v2020 = vpop.permute.xlu0 %2019
      %2021 = vrot.lane.b32.xlu0 %v1961, 8
      %v2022 = vpop.permute.xlu0 %2021
      %v2023 = vld [vmem:[%s5 + $0x2c] sm:$0x1]
      %v2024 = vlaneseq
      %v2025 = vshrl.u32 %v2024, 7
      %v2026 = vsub.s32 0, %v2025
      %v2027 = vrot.slane %v2023, %v2026
      %v2028 = vmul.f32 %v2020, %v2027
      %v2029 = vmul.f32 %v2022, %v2027
      %v2030 = vadd.f32 %v2008, %v2028
      %v2031 = vadd.f32 %v2009, %v2029
      %v2032 = vld [vmem:[%s6 + $0x42] sm:$0x1]
      %v2033 = vlaneseq
      %v2034 = vshrl.u32 %v2033, 7
      %v2035 = vsub.s32 0, %v2034
      %v2036 = vrot.slane %v2032, %v2035
      %v2037 = vmul.f32 %v2020, %v2036
      %v2038 = vmul.f32 %v2022, %v2036
      %v2039 = vadd.f32 %v2017, %v2037
      %v2040 = vadd.f32 %v2018, %v2038
      %v2041 = vld [vmem:[%s5 + $0x2d] sm:$0x1]
      %v2042 = vlaneseq
      %v2043 = vshrl.u32 %v2042, 7
      %v2044 = vsub.s32 0, %v2043
      %v2045 = vrot.slane %v2041, %v2044
      %v2046 = vmul.f32 %v1960, %v2045
      %v2047 = vmul.f32 %v1961, %v2045
      %v2048 = vadd.f32 %v2030, %v2046
      %v2049 = vadd.f32 %v2031, %v2047
      %v2050 = vld [vmem:[%s6 + $0x43] sm:$0x1]
      %v2051 = vlaneseq
      %v2052 = vshrl.u32 %v2051, 7
      %v2053 = vsub.s32 0, %v2052
      %v2054 = vrot.slane %v2050, %v2053
      %v2055 = vmul.f32 %v1960, %v2054
      %v2056 = vmul.f32 %v1961, %v2054
      %v2057 = vadd.f32 %v2039, %v2055
      %v2058 = vadd.f32 %v2040, %v2056
      %2059 = vrot.lane.b32.xlu0 %v1960, 120
      %v2060 = vpop.permute.xlu0 %2059
      %2061 = vrot.lane.b32.xlu0 %v1961, 120
      %v2062 = vpop.permute.xlu0 %2061
      %v2063 = vld [vmem:[%s5 + $0x2e] sm:$0x1]
      %v2064 = vlaneseq
      %v2065 = vshrl.u32 %v2064, 7
      %v2066 = vsub.s32 0, %v2065
      %v2067 = vrot.slane %v2063, %v2066
      %v2068 = vmul.f32 %v2060, %v2067
      %v2069 = vmul.f32 %v2062, %v2067
      %v2070 = vadd.f32 %v2048, %v2068
      %v2071 = vadd.f32 %v2049, %v2069
      %v2072 = vld [vmem:[%s6 + $0x44] sm:$0x1]
      %v2073 = vlaneseq
      %v2074 = vshrl.u32 %v2073, 7
      %v2075 = vsub.s32 0, %v2074
      %v2076 = vrot.slane %v2072, %v2075
      %v2077 = vmul.f32 %v2060, %v2076
      %v2078 = vmul.f32 %v2062, %v2076
      %v2079 = vadd.f32 %v2057, %v2077
      %v2080 = vadd.f32 %v2058, %v2078
      %2081 = vrot.lane.b32.xlu0 %v1960, 112
      %v2082 = vpop.permute.xlu0 %2081
      %2083 = vrot.lane.b32.xlu0 %v1961, 112
      %v2084 = vpop.permute.xlu0 %2083
      %v2085 = vld [vmem:[%s5 + $0x2f] sm:$0x1]
      %v2086 = vlaneseq
      %v2087 = vshrl.u32 %v2086, 7
      %v2088 = vsub.s32 0, %v2087
      %v2089 = vrot.slane %v2085, %v2088
      %v2090 = vmul.f32 %v2082, %v2089
      %v2091 = vmul.f32 %v2084, %v2089
      %v2092 = vadd.f32 %v2070, %v2090
      %v2093 = vadd.f32 %v2071, %v2091
      %v2094 = vld [vmem:[%s6 + $0x45] sm:$0x1]
      %v2095 = vlaneseq
      %v2096 = vshrl.u32 %v2095, 7
      %v2097 = vsub.s32 0, %v2096
      %v2098 = vrot.slane %v2094, %v2097
      %v2099 = vmul.f32 %v2082, %v2098
      %v2100 = vmul.f32 %v2084, %v2098
      %v2101 = vadd.f32 %v2079, %v2099
      %v2102 = vadd.f32 %v2080, %v2100
      %2103 = vrot.lane.b32.xlu0 %v1960, 104
      %v2104 = vpop.permute.xlu0 %2103
      %2105 = vrot.lane.b32.xlu0 %v1961, 104
      %v2106 = vpop.permute.xlu0 %2105
      %v2107 = vld [vmem:[%s5 + $0x30] sm:$0x1]
      %v2108 = vlaneseq
      %v2109 = vshrl.u32 %v2108, 7
      %v2110 = vsub.s32 0, %v2109
      %v2111 = vrot.slane %v2107, %v2110
      %v2112 = vmul.f32 %v2104, %v2111
      %v2113 = vmul.f32 %v2106, %v2111
      %v2114 = vadd.f32 %v2092, %v2112
      %v2115 = vadd.f32 %v2093, %v2113
      %v2116 = vld [vmem:[%s6 + $0x46] sm:$0x1]
      %v2117 = vlaneseq
      %v2118 = vshrl.u32 %v2117, 7
      %v2119 = vsub.s32 0, %v2118
      %v2120 = vrot.slane %v2116, %v2119
      %v2121 = vmul.f32 %v2104, %v2120
      %v2122 = vmul.f32 %v2106, %v2120
      %v2123 = vadd.f32 %v2101, %v2121
      %v2124 = vadd.f32 %v2102, %v2122
      %2125 = vrot.lane.b32.xlu0 %v1960, 96
      %v2126 = vpop.permute.xlu0 %2125
      %2127 = vrot.lane.b32.xlu0 %v1961, 96
      %v2128 = vpop.permute.xlu0 %2127
      %v2129 = vld [vmem:[%s6 + $0x47] sm:$0x1]
      %v2130 = vlaneseq
      %v2131 = vshrl.u32 %v2130, 7
      %v2132 = vsub.s32 0, %v2131
      %v2133 = vrot.slane %v2129, %v2132
      %v2134 = vmul.f32 %v2126, %v2133
      %v2135 = vmul.f32 %v2128, %v2133
      %v2136 = vadd.f32 %v2123, %v2134
      %v2137 = vadd.f32 %v2124, %v2135
      %v2138 = vld [vmem:[#allocation2 + $0x8] sm:$0xff]
      %v2139 = vld [vmem:[#allocation2 + $0x10] sm:$0xff]
      %2140 = vrot.lane.b32.xlu0 %v2138, 32
      %v2141 = vpop.permute.xlu0 %2140
      %2142 = vrot.lane.b32.xlu0 %v2139, 32
      %v2143 = vpop.permute.xlu0 %2142
      %v2144 = vld [vmem:[%s6 + $0x48] sm:$0x1]
      %v2145 = vlaneseq
      %v2146 = vshrl.u32 %v2145, 7
      %v2147 = vsub.s32 0, %v2146
      %v2148 = vrot.slane %v2144, %v2147
      %v2149 = vmul.f32 %v2141, %v2148
      %v2150 = vmul.f32 %v2143, %v2148
      %v2151 = vadd.f32 %v2136, %v2149
      %v2152 = vadd.f32 %v2137, %v2150
      %2153 = vrot.lane.b32.xlu0 %v2138, 24
      %v2154 = vpop.permute.xlu0 %2153
      %2155 = vrot.lane.b32.xlu0 %v2139, 24
      %v2156 = vpop.permute.xlu0 %2155
      %v2157 = vld [vmem:[%s6 + $0x49] sm:$0x1]
      %v2158 = vlaneseq
      %v2159 = vshrl.u32 %v2158, 7
      %v2160 = vsub.s32 0, %v2159
      %v2161 = vrot.slane %v2157, %v2160
      %v2162 = vmul.f32 %v2154, %v2161
      %v2163 = vmul.f32 %v2156, %v2161
      %v2164 = vadd.f32 %v2151, %v2162
      %v2165 = vadd.f32 %v2152, %v2163
      %2166 = vrot.lane.b32.xlu0 %v2138, 16
      %v2167 = vpop.permute.xlu0 %2166
      %2168 = vrot.lane.b32.xlu0 %v2139, 16
      %v2169 = vpop.permute.xlu0 %2168
      %v2170 = vld [vmem:[%s6 + $0x4a] sm:$0x1]
      %v2171 = vlaneseq
      %v2172 = vshrl.u32 %v2171, 7
      %v2173 = vsub.s32 0, %v2172
      %v2174 = vrot.slane %v2170, %v2173
      %v2175 = vmul.f32 %v2167, %v2174
      %v2176 = vmul.f32 %v2169, %v2174
      %v2177 = vadd.f32 %v2164, %v2175
      %v2178 = vadd.f32 %v2165, %v2176
      %2179 = vrot.lane.b32.xlu0 %v2138, 8
      %v2180 = vpop.permute.xlu0 %2179
      %2181 = vrot.lane.b32.xlu0 %v2139, 8
      %v2182 = vpop.permute.xlu0 %2181
      %v2183 = vld [vmem:[%s6 + $0x4b] sm:$0x1]
      %v2184 = vlaneseq
      %v2185 = vshrl.u32 %v2184, 7
      %v2186 = vsub.s32 0, %v2185
      %v2187 = vrot.slane %v2183, %v2186
      %v2188 = vmul.f32 %v2180, %v2187
      %v2189 = vmul.f32 %v2182, %v2187
      %v2190 = vadd.f32 %v2177, %v2188
      %v2191 = vadd.f32 %v2178, %v2189
      %v2192 = vld [vmem:[%s6 + $0x4c] sm:$0x1]
      %v2193 = vlaneseq
      %v2194 = vshrl.u32 %v2193, 7
      %v2195 = vsub.s32 0, %v2194
      %v2196 = vrot.slane %v2192, %v2195
      %v2197 = vmul.f32 %v2138, %v2196
      %v2198 = vmul.f32 %v2139, %v2196
      %v2199 = vadd.f32 %v2190, %v2197
      %v2200 = vadd.f32 %v2191, %v2198
      %2201 = vrot.lane.b32.xlu0 %v2138, 120
      %v2202 = vpop.permute.xlu0 %2201
      %2203 = vrot.lane.b32.xlu0 %v2139, 120
      %v2204 = vpop.permute.xlu0 %2203
      %v2205 = vld [vmem:[%s6 + $0x4d] sm:$0x1]
      %v2206 = vlaneseq
      %v2207 = vshrl.u32 %v2206, 7
      %v2208 = vsub.s32 0, %v2207
      %v2209 = vrot.slane %v2205, %v2208
      %v2210 = vmul.f32 %v2202, %v2209
      %v2211 = vmul.f32 %v2204, %v2209
      %v2212 = vadd.f32 %v2199, %v2210
      %v2213 = vadd.f32 %v2200, %v2211
      %2214 = vrot.lane.b32.xlu0 %v2138, 112
      %v2215 = vpop.permute.xlu0 %2214
      %2216 = vrot.lane.b32.xlu0 %v2139, 112
      %v2217 = vpop.permute.xlu0 %2216
      %v2218 = vld [vmem:[%s6 + $0x4e] sm:$0x1]
      %v2219 = vlaneseq
      %v2220 = vshrl.u32 %v2219, 7
      %v2221 = vsub.s32 0, %v2220
      %v2222 = vrot.slane %v2218, %v2221
      %v2223 = vmul.f32 %v2215, %v2222
      %v2224 = vmul.f32 %v2217, %v2222
      %v2225 = vadd.f32 %v2212, %v2223
      %v2226 = vadd.f32 %v2213, %v2224
      %2227 = vrot.lane.b32.xlu0 %v2138, 104
      %v2228 = vpop.permute.xlu0 %2227
      %2229 = vrot.lane.b32.xlu0 %v2139, 104
      %v2230 = vpop.permute.xlu0 %2229
      %v2231 = vld [vmem:[%s6 + $0x4f] sm:$0x1]
      %v2232 = vlaneseq
      %v2233 = vshrl.u32 %v2232, 7
      %v2234 = vsub.s32 0, %v2233
      %v2235 = vrot.slane %v2231, %v2234
      %v2236 = vmul.f32 %v2228, %v2235
      %v2237 = vmul.f32 %v2230, %v2235
      %v2238 = vadd.f32 %v2225, %v2236
      %v2239 = vadd.f32 %v2226, %v2237
      %2240 = vrot.lane.b32.xlu0 %v2138, 96
      %v2241 = vpop.permute.xlu0 %2240
      %2242 = vrot.lane.b32.xlu0 %v2139, 96
      %v2243 = vpop.permute.xlu0 %2242
      %v2244 = vld [vmem:[%s6 + $0x50] sm:$0x1]
      %v2245 = vlaneseq
      %v2246 = vshrl.u32 %v2245, 7
      %v2247 = vsub.s32 0, %v2246
      %v2248 = vrot.slane %v2244, %v2247
      %v2249 = vmul.f32 %v2241, %v2248
      %v2250 = vmul.f32 %v2243, %v2248
      %v2251 = vadd.f32 %v2238, %v2249
      %v2252 = vadd.f32 %v2239, %v2250
      %v2253 = vpack.c.bf16 %v470, %v469
      %v2254 = vlaneseq
      %v2255 = vshrl.u32 %v2254, 7
      %v2256 = vsub.s32 1, %v2255
      %v2257 = vrot.slane %v342, %v2256
      %v2258 = vmul.f32 %v1642, %v2257
      %v2259 = vmul.f32 %v1643, %v2257
      %v2260 = vlaneseq
      %v2261 = vshrl.u32 %v2260, 7
      %v2262 = vsub.s32 1, %v2261
      %v2263 = vrot.slane %v343, %v2262
      %v2264 = vadd.f32 %v2258, %v2263
      %v2265 = vadd.f32 %v2259, %v2263
      %v2266 = vmax.f32 %v2264, 0.0
      %v2267 = vmax.f32 %v2265, 0.0
      %v2268 = vpack.c.bf16 %v2267, %v2266
      %v2269 = vlaneseq
      %v2270 = vshrl.u32 %v2269, 7
      %v2271 = vsub.s32 2, %v2270
      %v2272 = vrot.slane %v342, %v2271
      %v2273 = vmul.f32 %v1905, %v2272
      %v2274 = vmul.f32 %v1906, %v2272
      %v2275 = vlaneseq
      %v2276 = vshrl.u32 %v2275, 7
      %v2277 = vsub.s32 2, %v2276
      %v2278 = vrot.slane %v343, %v2277
      %v2279 = vadd.f32 %v2273, %v2278
      %v2280 = vadd.f32 %v2274, %v2278
      %v2281 = vmax.f32 %v2279, 0.0
      %v2282 = vmax.f32 %v2280, 0.0
      %v2283 = vpack.c.bf16 %v2282, %v2281
      %v2284 = vlaneseq
      %v2285 = vshrl.u32 %v2284, 7
      %v2286 = vsub.s32 3, %v2285
      %v2287 = vrot.slane %v342, %v2286
      %v2288 = vmul.f32 %v2114, %v2287
      %v2289 = vmul.f32 %v2115, %v2287
      %v2290 = vlaneseq
      %v2291 = vshrl.u32 %v2290, 7
      %v2292 = vsub.s32 3, %v2291
      %v2293 = vrot.slane %v343, %v2292
      %v2294 = vadd.f32 %v2288, %v2293
      %v2295 = vadd.f32 %v2289, %v2293
      %v2296 = vmax.f32 %v2294, 0.0
      %v2297 = vmax.f32 %v2295, 0.0
      %v2298 = vpack.c.bf16 %v2297, %v2296
      %v2299 = vlaneseq
      %v2300 = vshrl.u32 %v2299, 7
      %v2301 = vsub.s32 4, %v2300
      %v2302 = vrot.slane %v342, %v2301
      %v2303 = vmul.f32 %v2251, %v2302
      %v2304 = vmul.f32 %v2252, %v2302
      %v2305 = vlaneseq
      %v2306 = vshrl.u32 %v2305, 7
      %v2307 = vsub.s32 4, %v2306
      %v2308 = vrot.slane %v343, %v2307
      %v2309 = vadd.f32 %v2303, %v2308
      %v2310 = vadd.f32 %v2304, %v2308
      %v2311 = vmax.f32 %v2309, 0.0
      %v2312 = vmax.f32 %v2310, 0.0
      %v2313 = vpack.c.bf16 %v2312, %v2311
      %v2314 = vld [vmem:[%s2] sm:$0xf]
      %v2315 = vld [vmem:[%s2 + $0x4] sm:$0xf]
      %v2316 = vld [vmem:[%s2 + $0x8] sm:$0xf]
      %v2317 = vld [vmem:[%s2 + $0xc] sm:$0xf]
      %v2318 = vld [vmem:[%s2 + $0x10] sm:$0xf]
      %v2319 = vld [vmem:[%s2 + $0x14] sm:$0xf]
      %v2320 = vld [vmem:[%s2 + $0x18] sm:$0xf]
      %v2321 = vld [vmem:[%s2 + $0x1c] sm:$0xf]
      %v2322 = vld [vmem:[%s2 + $0x20] sm:$0xf]
      %v2323 = vld [vmem:[%s2 + $0x24] sm:$0xf]
      %v2324 = vld [vmem:[%s2 + $0x28] sm:$0xf]
      %v2325 = vld [vmem:[%s2 + $0x2c] sm:$0xf]
      %v2326 = vld [vmem:[%s2 + $0x30] sm:$0xf]
      %v2327 = vld [vmem:[%s2 + $0x34] sm:$0xf]
      %v2328 = vld [vmem:[%s2 + $0x38] sm:$0xf]
      %v2329 = vld [vmem:[%s2 + $0x3c] sm:$0xf]
      %v2330 = vld [vmem:[%s2 + $0x40] sm:$0xf]
      %v2331 = vld [vmem:[%s2 + $0x44] sm:$0xf]
      %v2332 = vld [vmem:[%s2 + $0x48] sm:$0xf]
      %v2333 = vld [vmem:[%s2 + $0x4c] sm:$0xf]
      %v2334 = vld [vmem:[%s2 + $0x50] sm:$0xf]
      %v2335 = vld [vmem:[%s2 + $0x54] sm:$0xf]
      %v2336 = vld [vmem:[%s2 + $0x58] sm:$0xf]
      %v2337 = vld [vmem:[%s2 + $0x5c] sm:$0xf]
      %v2338 = vld [vmem:[%s2 + $0x60] sm:$0xf]
      %v2339 = vld [vmem:[%s2 + $0x64] sm:$0xf]
      %v2340 = vld [vmem:[%s2 + $0x68] sm:$0xf]
      %v2341 = vld [vmem:[%s2 + $0x6c] sm:$0xf]
      %v2342 = vld [vmem:[%s2 + $0x70] sm:$0xf]
      %v2343 = vld [vmem:[%s2 + $0x74] sm:$0xf]
      %v2344 = vld [vmem:[%s2 + $0x78] sm:$0xf]
      %v2345 = vld [vmem:[%s2 + $0x7c] sm:$0xf]
      %v2346 = vld [vmem:[%s2 + $0x80] sm:$0xf]
      %v2347 = vld [vmem:[%s2 + $0x84] sm:$0xf]
      %v2348 = vld [vmem:[%s2 + $0x88] sm:$0xf]
      %v2349 = vld [vmem:[%s2 + $0x8c] sm:$0xf]
      %v2350 = vld [vmem:[%s2 + $0x90] sm:$0xf]
      %v2351 = vld [vmem:[%s2 + $0x94] sm:$0xf]
      %v2352 = vld [vmem:[%s2 + $0x98] sm:$0xf]
      %v2353 = vld [vmem:[%s2 + $0x9c] sm:$0xf]
      %v2354 = vld [vmem:[%s2 + $0xa0] sm:$0xf]
      %v2355 = vld [vmem:[%s2 + $0xa4] sm:$0xf]
      %v2356 = vld [vmem:[%s2 + $0xa8] sm:$0xf]
      %v2357 = vld [vmem:[%s2 + $0xac] sm:$0xf]
      %v2358 = vld [vmem:[%s2 + $0xb0] sm:$0xf]
      %v2359 = vld [vmem:[%s2 + $0xb4] sm:$0xf]
      %v2360 = vld [vmem:[%s2 + $0xb8] sm:$0xf]
      %v2361 = vld [vmem:[%s2 + $0xbc] sm:$0xf]
      %v2362 = vld [vmem:[%s2 + $0xc0] sm:$0xf]
      %v2363 = vld [vmem:[%s2 + $0xc4] sm:$0xf]
      %v2364 = vld [vmem:[%s2 + $0xc8] sm:$0xf]
      %v2365 = vld [vmem:[%s2 + $0xcc] sm:$0xf]
      %v2366 = vld [vmem:[%s2 + $0xd0] sm:$0xf]
      %v2367 = vld [vmem:[%s2 + $0xd4] sm:$0xf]
      %v2368 = vld [vmem:[%s2 + $0xd8] sm:$0xf]
      %v2369 = vld [vmem:[%s2 + $0xdc] sm:$0xf]
      %v2370 = vld [vmem:[%s2 + $0xe0] sm:$0xf]
      %v2371 = vld [vmem:[%s2 + $0xe4] sm:$0xf]
      %v2372 = vld [vmem:[%s2 + $0xe8] sm:$0xf]
      %v2373 = vld [vmem:[%s2 + $0xec] sm:$0xf]
      %v2374 = vld [vmem:[%s2 + $0xf0] sm:$0xf]
      %v2375 = vld [vmem:[%s2 + $0xf4] sm:$0xf]
      %v2376 = vld [vmem:[%s2 + $0xf8] sm:$0xf]
      %v2377 = vld [vmem:[%s2 + $0xfc] sm:$0xf]
      %v2378 = vld [vmem:[%s2 + $0x100] sm:$0xf]
      %v2379 = vld [vmem:[%s2 + $0x104] sm:$0xf]
      %v2380 = vld [vmem:[%s2 + $0x108] sm:$0xf]
      %v2381 = vld [vmem:[%s2 + $0x10c] sm:$0xf]
      %v2382 = vld [vmem:[%s2 + $0x110] sm:$0xf]
      %v2383 = vld [vmem:[%s2 + $0x114] sm:$0xf]
      %v2384 = vld [vmem:[%s2 + $0x118] sm:$0xf]
      %v2385 = vld [vmem:[%s2 + $0x11c] sm:$0xf]
      %v2386 = vld [vmem:[%s2 + $0x120] sm:$0xf]
      %v2387 = vld [vmem:[%s2 + $0x124] sm:$0xf]
      %v2388 = vld [vmem:[%s2 + $0x128] sm:$0xf]
      %v2389 = vld [vmem:[%s2 + $0x12c] sm:$0xf]
      %v2390 = vld [vmem:[%s2 + $0x130] sm:$0xf]
      %v2391 = vld [vmem:[%s2 + $0x134] sm:$0xf]
      %v2392 = vld [vmem:[%s2 + $0x138] sm:$0xf]
      %v2393 = vld [vmem:[%s2 + $0x13c] sm:$0xf]
      %v2474 = vunpack.c.l.b16 %v2314
      %v2475 = vunpack.c.l.b16 %v2315
      %v2476 = vunpack.c.l.b16 %v2316
      %v2477 = vunpack.c.l.b16 %v2317
      %v2478 = vunpack.c.l.b16 %v2318
      %v2479 = vunpack.c.l.b16 %v2319
      %v2480 = vunpack.c.l.b16 %v2320
      %v2481 = vunpack.c.l.b16 %v2321
      %v2482 = vunpack.c.l.b16 %v2322
      %v2483 = vunpack.c.l.b16 %v2323
      %v2484 = vunpack.c.l.b16 %v2324
      %v2485 = vunpack.c.l.b16 %v2325
      %v2486 = vunpack.c.l.b16 %v2326
      %v2487 = vunpack.c.l.b16 %v2327
      %v2488 = vunpack.c.l.b16 %v2328
      %v2489 = vunpack.c.l.b16 %v2329
      %v2490 = vunpack.c.l.b16 %v2330
      %v2491 = vunpack.c.l.b16 %v2331
      %v2492 = vunpack.c.l.b16 %v2332
      %v2493 = vunpack.c.l.b16 %v2333
      %v2494 = vunpack.c.l.b16 %v2334
      %v2495 = vunpack.c.l.b16 %v2335
      %v2496 = vunpack.c.l.b16 %v2336
      %v2497 = vunpack.c.l.b16 %v2337
      %v2498 = vunpack.c.l.b16 %v2338
      %v2499 = vunpack.c.l.b16 %v2339
      %v2500 = vunpack.c.l.b16 %v2340
      %v2501 = vunpack.c.l.b16 %v2341
      %v2502 = vunpack.c.l.b16 %v2342
      %v2503 = vunpack.c.l.b16 %v2343
      %v2504 = vunpack.c.l.b16 %v2344
      %v2505 = vunpack.c.l.b16 %v2345
      %v2506 = vunpack.c.l.b16 %v2346
      %v2507 = vunpack.c.l.b16 %v2347
      %v2508 = vunpack.c.l.b16 %v2348
      %v2509 = vunpack.c.l.b16 %v2349
      %v2510 = vunpack.c.l.b16 %v2350
      %v2511 = vunpack.c.l.b16 %v2351
      %v2512 = vunpack.c.l.b16 %v2352
      %v2513 = vunpack.c.l.b16 %v2353
      %v2514 = vunpack.c.l.b16 %v2354
      %v2515 = vunpack.c.l.b16 %v2355
      %v2516 = vunpack.c.l.b16 %v2356
      %v2517 = vunpack.c.l.b16 %v2357
      %v2518 = vunpack.c.l.b16 %v2358
      %v2519 = vunpack.c.l.b16 %v2359
      %v2520 = vunpack.c.l.b16 %v2360
      %v2521 = vunpack.c.l.b16 %v2361
      %v2522 = vunpack.c.l.b16 %v2362
      %v2523 = vunpack.c.l.b16 %v2363
      %v2524 = vunpack.c.l.b16 %v2364
      %v2525 = vunpack.c.l.b16 %v2365
      %v2526 = vunpack.c.l.b16 %v2366
      %v2527 = vunpack.c.l.b16 %v2367
      %v2528 = vunpack.c.l.b16 %v2368
      %v2529 = vunpack.c.l.b16 %v2369
      %v2530 = vunpack.c.l.b16 %v2370
      %v2531 = vunpack.c.l.b16 %v2371
      %v2532 = vunpack.c.l.b16 %v2372
      %v2533 = vunpack.c.l.b16 %v2373
      %v2534 = vunpack.c.l.b16 %v2374
      %v2535 = vunpack.c.l.b16 %v2375
      %v2536 = vunpack.c.l.b16 %v2376
      %v2537 = vunpack.c.l.b16 %v2377
      %v2538 = vunpack.c.l.b16 %v2378
      %v2539 = vunpack.c.l.b16 %v2379
      %v2540 = vunpack.c.l.b16 %v2380
      %v2541 = vunpack.c.l.b16 %v2381
      %v2542 = vunpack.c.l.b16 %v2382
      %v2543 = vunpack.c.l.b16 %v2383
      %v2544 = vunpack.c.l.b16 %v2384
      %v2545 = vunpack.c.l.b16 %v2385
      %v2546 = vunpack.c.l.b16 %v2386
      %v2547 = vunpack.c.l.b16 %v2387
      %v2548 = vunpack.c.l.b16 %v2388
      %v2549 = vunpack.c.l.b16 %v2389
      %v2550 = vunpack.c.l.b16 %v2390
      %v2551 = vunpack.c.l.b16 %v2391
      %v2552 = vunpack.c.l.b16 %v2392
      %v2553 = vunpack.c.l.b16 %v2393
      %v2554 = vpack.c.b16 %v2475, %v2474
      %v2555 = vpack.c.b16 %v2477, %v2476
      %v2556 = vpack.c.b16 %v2479, %v2478
      %v2557 = vpack.c.b16 %v2481, %v2480
      %v2558 = vpack.c.b16 %v2483, %v2482
      %v2559 = vpack.c.b16 %v2485, %v2484
      %v2560 = vpack.c.b16 %v2487, %v2486
      %v2561 = vpack.c.b16 %v2489, %v2488
      %v2562 = vpack.c.b16 %v2491, %v2490
      %v2563 = vpack.c.b16 %v2493, %v2492
      %v2564 = vpack.c.b16 %v2495, %v2494
      %v2565 = vpack.c.b16 %v2497, %v2496
      %v2566 = vpack.c.b16 %v2499, %v2498
      %v2567 = vpack.c.b16 %v2501, %v2500
      %v2568 = vpack.c.b16 %v2503, %v2502
      %v2569 = vpack.c.b16 %v2505, %v2504
      %v2570 = vpack.c.b16 %v2507, %v2506
      %v2571 = vpack.c.b16 %v2509, %v2508
      %v2572 = vpack.c.b16 %v2511, %v2510
      %v2573 = vpack.c.b16 %v2513, %v2512
      %v2574 = vpack.c.b16 %v2515, %v2514
      %v2575 = vpack.c.b16 %v2517, %v2516
      %v2576 = vpack.c.b16 %v2519, %v2518
      %v2577 = vpack.c.b16 %v2521, %v2520
      %v2578 = vpack.c.b16 %v2523, %v2522
      %v2579 = vpack.c.b16 %v2525, %v2524
      %v2580 = vpack.c.b16 %v2527, %v2526
      %v2581 = vpack.c.b16 %v2529, %v2528
      %v2582 = vpack.c.b16 %v2531, %v2530
      %v2583 = vpack.c.b16 %v2533, %v2532
      %v2584 = vpack.c.b16 %v2535, %v2534
      %v2585 = vpack.c.b16 %v2537, %v2536
      %v2586 = vpack.c.b16 %v2539, %v2538
      %v2587 = vpack.c.b16 %v2541, %v2540
      %v2588 = vpack.c.b16 %v2543, %v2542
      %v2589 = vpack.c.b16 %v2545, %v2544
      %v2590 = vpack.c.b16 %v2547, %v2546
      %v2591 = vpack.c.b16 %v2549, %v2548
      %v2592 = vpack.c.b16 %v2551, %v2550
      %v2593 = vpack.c.b16 %v2553, %v2552
      %2634 = vmatprep.subr.bf16.mxu0 0
      %2635 = vmatpush1.bf16.msra.mxu0 %v2561
      %2636 = vmatprep.subr.bf16.mxu0 0
      %2637 = vmatpush1.bf16.msra.mxu0 %v2560
      %2638 = vmatprep.subr.bf16.mxu0 0
      %2639 = vmatpush1.bf16.msra.mxu0 %v2559
      %2640 = vmatprep.subr.bf16.mxu0 0
      %2641 = vmatpush1.bf16.msra.mxu0 %v2558
      %2642 = vmatprep.subr.bf16.mxu0 0
      %2643 = vmatpush1.bf16.msra.mxu0 %v2557
      %2644 = vmatprep.subr.bf16.mxu0 0
      %2645 = vmatpush1.bf16.msra.mxu0 %v2556
      %2646 = vmatprep.subr.bf16.mxu0 0
      %2647 = vmatpush1.bf16.msra.mxu0 %v2555
      %2648 = vmatprep.subr.bf16.mxu0 0
      %2649 = vmatpush1.bf16.msra.mxu0 %v2554
      %2650 = vmatprep.subr.bf16.mxu0 0
      %2651 = vmatpush2.bf16.msra.mxu0 %v2569
      %2652 = vmatprep.subr.bf16.mxu0 0
      %2653 = vmatpush2.bf16.msra.mxu0 %v2568
      %2654 = vmatprep.subr.bf16.mxu0 0
      %2655 = vmatpush2.bf16.msra.mxu0 %v2567
      %2656 = vmatprep.subr.bf16.mxu0 0
      %2657 = vmatpush2.bf16.msra.mxu0 %v2566
      %2658 = vmatprep.subr.bf16.mxu0 0
      %2659 = vmatpush2.bf16.msra.mxu0 %v2565
      %2660 = vmatprep.subr.bf16.mxu0 0
      %2661 = vmatpush2.bf16.msra.mxu0 %v2564
      %2662 = vmatprep.subr.bf16.mxu0 0
      %2663 = vmatpush2.bf16.msra.mxu0 %v2563
      %2664 = vmatprep.subr.bf16.mxu0 0
      %2665 = vmatpush2.bf16.msra.mxu0 %v2562
      %2666 = vmatprep.mubr.bf16.mxu0 %v2268
      %2667 = vmatmul.mubr.bf16.gmra.mxu0 %v2253
      %v2668 = vpop.f32.mrf.mxu0
      %v2669 = vadd.f32 0.0, %v2668
      %v2670 = vpop.f32.mrf.mxu0
      %v2671 = vpop.f32.mrf.mxu0
      %v2672 = vadd.f32 0.0, %v2671
      %v2673 = vpop.f32.mrf.mxu0
      %2674 = vdwg.mxu0
      %2675 = vmatprep.subr.bf16.mxu0 0
      %2676 = vmatpush1.bf16.msra.mxu0 %v2577
      %2677 = vmatprep.subr.bf16.mxu0 0
      %2678 = vmatpush1.bf16.msra.mxu0 %v2576
      %2679 = vmatprep.subr.bf16.mxu0 0
      %2680 = vmatpush1.bf16.msra.mxu0 %v2575
      %2681 = vmatprep.subr.bf16.mxu0 0
      %2682 = vmatpush1.bf16.msra.mxu0 %v2574
      %2683 = vmatprep.subr.bf16.mxu0 0
      %2684 = vmatpush1.bf16.msra.mxu0 %v2573
      %2685 = vmatprep.subr.bf16.mxu0 0
      %2686 = vmatpush1.bf16.msra.mxu0 %v2572
      %2687 = vmatprep.subr.bf16.mxu0 0
      %2688 = vmatpush1.bf16.msra.mxu0 %v2571
      %2689 = vmatprep.subr.bf16.mxu0 0
      %2690 = vmatpush1.bf16.msra.mxu0 %v2570
      %2691 = vmatprep.subr.bf16.mxu0 0
      %2692 = vmatpush2.bf16.msra.mxu0 %v2585
      %2693 = vmatprep.subr.bf16.mxu0 0
      %2694 = vmatpush2.bf16.msra.mxu0 %v2584
      %2695 = vmatprep.subr.bf16.mxu0 0
      %2696 = vmatpush2.bf16.msra.mxu0 %v2583
      %2697 = vmatprep.subr.bf16.mxu0 0
      %2698 = vmatpush2.bf16.msra.mxu0 %v2582
      %2699 = vmatprep.subr.bf16.mxu0 0
      %2700 = vmatpush2.bf16.msra.mxu0 %v2581
      %2701 = vmatprep.subr.bf16.mxu0 0
      %2702 = vmatpush2.bf16.msra.mxu0 %v2580
      %2703 = vmatprep.subr.bf16.mxu0 0
      %2704 = vmatpush2.bf16.msra.mxu0 %v2579
      %2705 = vmatprep.subr.bf16.mxu0 0
      %2706 = vmatpush2.bf16.msra.mxu0 %v2578
      %2707 = vmatprep.mubr.bf16.mxu0 %v2298
      %2708 = vmatmul.mubr.bf16.gmra.mxu0 %v2283
      %v2709 = vpop.f32.mrf.mxu0
      %v2710 = vadd.f32 %v2669, %v2709
      %v2711 = vpop.f32.mrf.mxu0
      %v2712 = vpop.f32.mrf.mxu0
      %v2713 = vadd.f32 %v2672, %v2712
      %v2714 = vpop.f32.mrf.mxu0
      %2715 = vdwg.mxu0
      %2716 = vmatprep.subr.bf16.mxu0 0
      %2717 = vmatpush1.bf16.msra.mxu0 %v2593
      %2718 = vmatprep.subr.bf16.mxu0 0
      %2719 = vmatpush1.bf16.msra.mxu0 %v2592
      %2720 = vmatprep.subr.bf16.mxu0 0
      %2721 = vmatpush1.bf16.msra.mxu0 %v2591
      %2722 = vmatprep.subr.bf16.mxu0 0
      %2723 = vmatpush1.bf16.msra.mxu0 %v2590
      %2724 = vmatprep.subr.bf16.mxu0 0
      %2725 = vmatpush1.bf16.msra.mxu0 %v2589
      %2726 = vmatprep.subr.bf16.mxu0 0
      %2727 = vmatpush1.bf16.msra.mxu0 %v2588
      %2728 = vmatprep.subr.bf16.mxu0 0
      %2729 = vmatpush1.bf16.msra.mxu0 %v2587
      %2730 = vmatprep.subr.bf16.mxu0 0
      %2731 = vmatpush1.bf16.msra.mxu0 %v2586
      %2732 = vmatprep.subr.bf16.mxu0 0
      %2733 = vmatpush2.bf16.msra.mxu0 0
      %2734 = vmatprep.subr.bf16.mxu0 0
      %2735 = vmatpush2.bf16.msra.mxu0 0
      %2736 = vmatprep.subr.bf16.mxu0 0
      %2737 = vmatpush2.bf16.msra.mxu0 0
      %2738 = vmatprep.subr.bf16.mxu0 0
      %2739 = vmatpush2.bf16.msra.mxu0 0
      %2740 = vmatprep.subr.bf16.mxu0 0
      %2741 = vmatpush2.bf16.msra.mxu0 0
      %2742 = vmatprep.subr.bf16.mxu0 0
      %2743 = vmatpush2.bf16.msra.mxu0 0
      %2744 = vmatprep.subr.bf16.mxu0 0
      %2745 = vmatpush2.bf16.msra.mxu0 0
      %2746 = vmatprep.subr.bf16.mxu0 0
      %2747 = vmatpush2.bf16.msra.mxu0 0
      %2748 = vmatprep.mubr.bf16.mxu0 0
      %2749 = vmatmul.mubr.bf16.gmra.mxu0 %v2313
      %v2750 = vpop.f32.mrf.mxu0
      %v2751 = vadd.f32 %v2710, %v2750
      %v2752 = vpop.f32.mrf.mxu0
      %v2753 = vpop.f32.mrf.mxu0
      %v2754 = vadd.f32 %v2713, %v2753
      %v2755 = vpop.f32.mrf.mxu0
      %2756 = vdwg.mxu0
      %v2757 = vlaneseq
      %v2758 = vshrl.u32 %v2757, 7
      %v2759 = vsub.s32 5, %v2758
      %v2760 = vrot.slane %v342, %v2759
      %v2761 = vmul.f32 %v2751, %v2760
      %v2762 = vmul.f32 %v2754, %v2760
      %v2763 = vlaneseq
      %v2764 = vshrl.u32 %v2763, 7
      %v2765 = vsub.s32 5, %v2764
      %v2766 = vrot.slane %v343, %v2765
      %v2767 = vadd.f32 %v2761, %v2766
      %v2768 = vadd.f32 %v2762, %v2766
      %v2769 = vmax.f32 %v2767, 0.0
      %v2770 = vmax.f32 %v2768, 0.0
      %2771 = vst [vmem:[%s332] sm:$0xff] %v2769
      %2772 = vst [vmem:[%s332 + $0x8] sm:$0xff] %v2770
      %p2773 = scmp.lt.s32.totalorder %s20, 1
      %s2774 = scalar_select %p2773, %s20, 1
      %s2775 = smul.addr %s2774, 2
      %s2776 = smul.addr %s2775, 8
      %s2777 = scalar_lea.vmem %s9, %s2776
      // Predicated region
      $region57: #{multi_scale_conv.1} parent=55 // pred_check
        %p2778 = pneg %p232
      $region58: #{multi_scale_conv.1} parent=55 // pred_check_branch
        %2780 = sbr.rel (%p2778) target = $region60
      $region59: #{multi_scale_conv.1} parent=55 // pred_region
        _
      $region60: #{multi_scale_conv.1} parent=55 // pred_fallthru
        _
    $region56: #{multi_scale_conv.1} parent=5 // pred_fallthru
      _
    %p2781 = scmp.le.s32.totalorder 2, %s15
    // Predicated region
    $region61: #{multi_scale_conv.1} parent=5 // pred_check
      %p2782 = pneg %p2781
    $region62: #{multi_scale_conv.1} parent=5 // pred_check_branch
      %2784 = sbr.rel (%p2782) target = $region64
    $region63: #{multi_scale_conv.1} parent=5 // pred_region
      %s2785 = ssub.s32 %s15, 2
      // Predicated region
      $region65: #{multi_scale_conv.1} parent=63 // pred_check
        %p2786 = pneg %p238
      $region66: #{multi_scale_conv.1} parent=63 // pred_check_branch
        %2788 = sbr.rel (%p2786) target = $region68
      $region67: #{multi_scale_conv.1} parent=63 // pred_region
        %p2789 = scmp.lt.s32.totalorder %s21, 1
        %s2790 = scalar_select %p2789, %s21, 1
        %s2791 = smul.addr %s2790, 2
        %s2792 = smul.addr %s2791, 8
        %s2793 = scalar_lea.vmem %s9, %s2792
      $region68: #{multi_scale_conv.1} parent=63 // pred_fallthru
        _
    $region64: #{multi_scale_conv.1} parent=5 // pred_fallthru
      _
  $region6: #{multi_scale_conv.1} parent=0 // loop_footer
    %s19 = sadd.s32 1, %s15
  $region7: #{multi_scale_conv.1} parent=0 // loop_footer_branch
    %14 = sbr.rel target = $region3
  $region8: #{multi_scale_conv.1} parent=0 // loop_exit
    _

</llo_original>
